<compile_context>
chip_gen: v5e
topology: v5e:2x2
jax: 0.10.0
libtpu: 0.0.40
codegen_flags: <defaults>
</compile_context>

<pallas_src>
import math
import functools

import jax
import jax.numpy as jnp
from jax import lax
from jax.experimental import pallas as pl
from jax.experimental.pallas import tpu as pltpu

# ----------------------------- config (small) -------------------------------
N_TOKEN = 256
N_LAYER = 2
N_HEAD = 2
D_MODEL = 32
D_HEAD = 16
D_INNER = 64
TGT_LEN = 8
MEM_LEN = 8
EXT_LEN = 0
BSZ = 2
LN_EPS = 1e-5  # torch.nn.LayerNorm default

# MXU operand dtype: bfloat16 is MXU-native on v5e/v6e/v7x (accumulation stays f32
# via preferred_element_type; softmax / LayerNorm / residual math stays f32).
# Set to jnp.float32 for bit-closer parity with the f32 PyTorch reference.
MXU_DTYPE = jnp.bfloat16


# ------------------------------ kernel helpers -------------------------------
def _layernorm(x, g, b):
    mu = jnp.mean(x, axis=-1, keepdims=True)
    var = jnp.mean((x - mu) ** 2, axis=-1, keepdims=True)
    return (x - mu) * lax.rsqrt(var + LN_EPS) * g + b


def _mm(a, b, ca, cb):
    return lax.dot_general(a, b, (((ca,), (cb,)), ((), ())),
                           preferred_element_type=jnp.float32)


# --------------------------- fused forward kernel ----------------------------
def _fused_forward_kernel(x_ref, pos_ref, bias_ref, selT_ref, tgt_ref,
                          wqkv_ref, wr_ref, woT_ref, rwb_ref, rrb_ref,
                          ln1g_ref, ln1b_ref, w1_ref, b1_ref, w2_ref, b2_ref,
                          ln2g_ref, ln2b_ref,
                          ong_ref, onb_ref, otw_ref, otb_ref, embw_ref, outb_ref,
                          nll_ref, hids_ref, *, H, DH, L):
    HD = H * DH
    x = x_ref[0]                      # (Q, D) f32 activations of this batch element
    P = pos_ref[...]                  # (K, D) sinusoidal positional emb (MXU dtype)
    bias = bias_ref[...]              # (Q, K) additive causal mask (0 / -1e30)
    selT = selT_ref[...]              # (Q, K, K) rel-shift: selT[q,k,m]=1 iff m=k+Q-1-q
    rwb = rwb_ref[...]                # (1, HD) pre-scaled r_w_bias (head-major)
    rrb = rrb_ref[...]                # (1, HD) pre-scaled r_r_bias

    # ------------- N_LAYER x RelPartialLearnableDecoderLayer (post-LN) -------------
    for l in range(L):
        # merged projections for all heads (one wide MXU matmul each)
        qkv = _mm(x.astype(wqkv_ref.dtype), wqkv_ref[l], 1, 1)      # (Q, 3*HD) f32
        r_all = _mm(P, wr_ref[l], 1, 1)                             # (K, HD)   f32
        q = qkv[:, 0:HD]
        k = qkv[:, HD:2 * HD]
        v = qkv[:, 2 * HD:3 * HD]
        rw_q = q + rwb                     # (+ r_w_bias, 1/sqrt(d_head) folded in)
        rr_q = q + rrb                     # (+ r_r_bias, 1/sqrt(d_head) folded in)

        av_heads = []
        for h in range(H):
            s0, s1 = h * DH, (h + 1) * DH
            ac = _mm(rw_q[:, s0:s1], k[:, s0:s1], 1, 1)             # (Q, K) content-content
            bd_raw = _mm(rr_q[:, s0:s1], r_all[:, s0:s1], 1, 1)     # (Q, K) content-position
            # Transformer-XL rel-shift: bd[q, kk] = bd_raw[q, kk - q + Q - 1]
            # TODO(synk): replace with pltpu.roll(stride=1) at production K.
            bd = jnp.sum(bd_raw[:, None, :] * selT, axis=-1)        # (Q, K)
            score = ac + bd + bias
            smax = jnp.max(score, axis=-1, keepdims=True)
            e = jnp.exp(score - smax)
            denom = jnp.sum(e, axis=-1, keepdims=True)
            prob = e * pl.reciprocal(denom, approx=True)            # softmax (EUP recip)
            av_heads.append(_mm(prob, v[:, s0:s1], 1, 0))           # (Q, DH)

        av = jnp.concatenate(av_heads, axis=-1)                     # (Q, HD) head concat
        attn = _mm(av.astype(woT_ref.dtype), woT_ref[l], 1, 0)      # (Q, D) single o_net

        h1 = _layernorm(x + attn, ln1g_ref[l], ln1b_ref[l])         # post-LN attention
        f = jnp.maximum(_mm(h1.astype(w1_ref.dtype), w1_ref[l], 1, 1) + b1_ref[l], 0.0)
        f = _mm(f.astype(w2_ref.dtype), w2_ref[l], 1, 1) + b2_ref[l]
        x = _layernorm(h1 + f, ln2g_ref[l], ln2b_ref[l])            # post-LN FF
        hids_ref[l, 0] = x                                          # layer output

    # -------- out_norm + out_trans_layer + tied ProjectedAdaptiveLogSoftmax --------
    hn = _layernorm(x, ong_ref[...], onb_ref[...])
    y = _mm(hn.astype(otw_ref.dtype), otw_ref[...], 1, 1) + otb_ref[...]         # (Q, D)
    # lane-dense (Q, V) logits; all reductions run along lanes
    logits = _mm(y.astype(embw_ref.dtype), embw_ref[...], 1, 1) + outb_ref[...]  # (Q, V)
    m = jnp.max(logits, axis=-1, keepdims=True)
    lse = m + jnp.log(jnp.sum(jnp.exp(logits - m), axis=-1, keepdims=True))      # (Q, 1)
    vocab_ids = lax.broadcasted_iota(jnp.int32, logits.shape, 1)
    tgt_logit = jnp.sum(jnp.where(vocab_ids == tgt_ref[0], logits, 0.0),
                        axis=-1, keepdims=True)                                  # (Q, 1)
    nll_ref[0] = lse - tgt_logit


# ------------------------------- parameters ----------------------------------
def init_params(key):
    keys = jax.random.split(key, 4 + N_LAYER)

    def nrm(k, shape, std=0.02):
        return jax.random.normal(k, shape, dtype=jnp.float32) * std

    params = {
        'emb_w': nrm(keys[0], (N_TOKEN, D_MODEL)),          # AdaptiveEmbedding (tied to crit)
        'r_w_bias': nrm(keys[1], (N_HEAD, D_HEAD)),
        'r_r_bias': nrm(keys[2], (N_HEAD, D_HEAD)),
        'out_norm_g': jnp.ones((1, D_MODEL), jnp.float32),
        'out_norm_b': jnp.zeros((1, D_MODEL), jnp.float32),
        'out_trans_w': nrm(keys[3], (D_MODEL, D_MODEL)),
        'out_trans_b': jnp.zeros((1, D_MODEL), jnp.float32),
        'out_bias': jnp.zeros((1, N_TOKEN), jnp.float32),    # crit.out_layers[0].bias
    }
    layers = []
    for i in range(N_LAYER):
        lk = jax.random.split(keys[4 + i], 5)
        layers.append(dict(
            wqkv=nrm(lk[0], (3 * N_HEAD * D_HEAD, D_MODEL)),
            wr=nrm(lk[1], (N_HEAD * D_HEAD, D_MODEL)),
            wo=nrm(lk[2], (D_MODEL, N_HEAD * D_HEAD)),
            ln1_g=jnp.ones((1, D_MODEL), jnp.float32),
            ln1_b=jnp.zeros((1, D_MODEL), jnp.float32),
            w1=nrm(lk[3], (D_INNER, D_MODEL)),
            b1=jnp.zeros((1, D_INNER), jnp.float32),
            w2=nrm(lk[4], (D_MODEL, D_INNER)),
            b2=jnp.zeros((1, D_MODEL), jnp.float32),
            ln2_g=jnp.ones((1, D_MODEL), jnp.float32),
            ln2_b=jnp.zeros((1, D_MODEL), jnp.float32),
        ))
    params['layers'] = layers
    return params


def pack_params(params):
    """Stack / pre-scale / cast weights ONCE, outside the jitted per-step forward."""
    H, DH, L = N_HEAD, D_HEAD, N_LAYER
    HD = H * DH
    scale = 1.0 / math.sqrt(DH)
    ls = params['layers']

    wqkv = jnp.stack([p['wqkv'] for p in ls])                 # (L, 3*HD, D)
    wqkv = wqkv.at[:, :HD, :].multiply(scale)                 # fold 1/sqrt(d_head) into q rows
    woT = jnp.stack([jnp.transpose(p['wo']) for p in ls])     # (L, HD, D)
    return {
        'wqkv': wqkv.astype(MXU_DTYPE),
        'wr': jnp.stack([p['wr'] for p in ls]).astype(MXU_DTYPE),     # (L, HD, D)
        'woT': woT.astype(MXU_DTYPE),
        'rwb': (params['r_w_bias'] * scale).reshape(1, HD),           # head-major, pre-scaled
        'rrb': (params['r_r_bias'] * scale).reshape(1, HD),
        'ln1g': jnp.stack([p['ln1_g'] for p in ls]),                  # (L, 1, D)
        'ln1b': jnp.stack([p['ln1_b'] for p in ls]),
        'w1': jnp.stack([p['w1'] for p in ls]).astype(MXU_DTYPE),     # (L, DI, D)
        'b1': jnp.stack([p['b1'] for p in ls]),                       # (L, 1, DI)
        'w2': jnp.stack([p['w2'] for p in ls]).astype(MXU_DTYPE),     # (L, D, DI)
        'b2': jnp.stack([p['b2'] for p in ls]),                       # (L, 1, D)
        'ln2g': jnp.stack([p['ln2_g'] for p in ls]),
        'ln2b': jnp.stack([p['ln2_b'] for p in ls]),
        'ong': params['out_norm_g'],
        'onb': params['out_norm_b'],
        'otw': params['out_trans_w'].astype(MXU_DTYPE),               # (D, D)
        'otb': params['out_trans_b'],
        'embw_mxu': params['emb_w'].astype(MXU_DTYPE),                # (V, D) tied softmax
        'outb': params['out_bias'],                                   # (1, V)
        'emb_w': params['emb_w'],                                     # f32, input gather
    }


# -------------------------------- forward ------------------------------------
def mem_transformer_forward(packed, data, target):
    # data, target: (qlen, bsz) int32 token ids (PyTorch (seq, batch) convention).
    Q, B = data.shape
    D, H, DH, L, V, DI = D_MODEL, N_HEAD, D_HEAD, N_LAYER, N_TOKEN, D_INNER
    K = Q                      # init_mems() -> empty mems -> mlen = 0, klen = qlen
    HD = H * DH

    # word_emb: embedding gather + emb_scale (data-dependent gather stays in XLA)
    emb_scale = D ** 0.5
    word_emb = jnp.take(packed['emb_w'], data, axis=0) * emb_scale       # (Q, B, D)
    x0 = jnp.transpose(word_emb, (1, 0, 2))                              # (B, Q, D)

    # additive causal mask (dec_attn_mask = triu(ones, diagonal=1+mlen), mlen = 0)
    rows = jnp.arange(Q)[:, None]
    cols = jnp.arange(K)[None, :]
    mask_bias = jnp.where(cols > rows, -1e30, 0.0).astype(jnp.float32)   # (Q, K)

    # sinusoidal PositionalEmbedding over pos_seq = [K-1, ..., 0]
    pos_seq = jnp.arange(K - 1, -1, -1, dtype=jnp.float32)
    inv_freq = 1.0 / (10000.0 ** (jnp.arange(0, D, 2, dtype=jnp.float32) / D))
    sin_inp = pos_seq[:, None] * inv_freq[None, :]
    P = jnp.concatenate([jnp.sin(sin_inp), jnp.cos(sin_inp)], axis=-1)   # (K, D)

    # rel-shift selector shared across batch & heads: selT[q,k,m] = 1 iff m = k + Q-1 - q
    # (out-of-range -> all-zero row; those positions are causally masked anyway)
    qq = jnp.arange(Q)[:, None, None]
    kk = jnp.arange(K)[None, :, None]
    mm = jnp.arange(K)[None, None, :]
    selT = (mm == kk + (Q - 1) - qq).astype(jnp.float32)                 # (Q, K, K)

    tgt = jnp.transpose(target, (1, 0)).reshape(B, Q, 1).astype(jnp.int32)

    def _const(shape):
        n = len(shape)
        return pl.BlockSpec(shape, lambda b, _n=n: (0,) * _n)

    in_specs = [
        pl.BlockSpec((1, Q, D), lambda b: (b, 0, 0)),        # x0 (per batch element)
        _const((K, D)),                                      # P
        _const((Q, K)),                                      # mask_bias
        _const((Q, K, K)),                                   # selT
        pl.BlockSpec((1, Q, 1), lambda b: (b, 0, 0)),        # tgt (per batch element)
        _const((L, 3 * HD, D)),                              # wqkv
        _const((L, HD, D)),                                  # wr
        _const((L, HD, D)),                                  # woT
        _const((1, HD)),                                     # rwb
        _const((1, HD)),                                     # rrb
        _const((L, 1, D)), _const((L, 1, D)),                # ln1 g / b
        _const((L, DI, D)), _const((L, 1, DI)),              # ff w1 / b1
        _const((L, D, DI)), _const((L, 1, D)),               # ff w2 / b2
        _const((L, 1, D)), _const((L, 1, D)),                # ln2 g / b
        _const((1, D)), _const((1, D)),                      # out_norm g / b
        _const((D, D)), _const((1, D)),                      # out_trans w / b
        _const((V, D)), _const((1, V)),                      # tied emb_w, out_bias
    ]

    kernel = functools.partial(_fused_forward_kernel, H=H, DH=DH, L=L)
    nll, hids = pl.pallas_call(
        kernel,
        grid=(B,),
        out_shape=(jax.ShapeDtypeStruct((B, Q, 1), jnp.float32),
                   jax.ShapeDtypeStruct((L, B, Q, D), jnp.float32)),
        in_specs=in_specs,
        out_specs=(pl.BlockSpec((1, Q, 1), lambda b: (b, 0, 0)),
                   pl.BlockSpec((L, 1, Q, D), lambda b: (0, b, 0, 0))),
        compiler_params=pltpu.CompilerParams(
            dimension_semantics=("parallel",),
            vmem_limit_bytes=32 * 1024 * 1024),
    )(x0, P.astype(MXU_DTYPE), mask_bias, selT, tgt,
      packed['wqkv'], packed['wr'], packed['woT'], packed['rwb'], packed['rrb'],
      packed['ln1g'], packed['ln1b'], packed['w1'], packed['b1'],
      packed['w2'], packed['b2'], packed['ln2g'], packed['ln2b'],
      packed['ong'], packed['onb'], packed['otw'], packed['otb'],
      packed['embw_mxu'], packed['outb'])

    loss = jnp.transpose(nll[:, :, 0], (1, 0))                           # (tgt_len, bsz)

    # _update_mems (original code swaps qlen/mlen at the call site; mlen = 0 here)
    hids_all = [word_emb] + [jnp.transpose(hids[l], (1, 0, 2)) for l in range(L)]
    mlen = 0
    end_idx = Q + max(0, mlen - EXT_LEN)
    beg_idx = max(0, end_idx - MEM_LEN)
    new_mems = [h[beg_idx:end_idx] for h in hids_all]
    return [loss] + new_mems


# ---------------------------------- main --------------------------------------
if __name__ == "__main__":
    key = jax.random.PRNGKey(0)
    pkey, dkey, tkey = jax.random.split(key, 3)
    params = init_params(pkey)
    packed = pack_params(params)

    data = jax.random.randint(dkey, (TGT_LEN, BSZ), 0, N_TOKEN, dtype=jnp.int32)
    target = jax.random.randint(tkey, (TGT_LEN, BSZ), 0, N_TOKEN, dtype=jnp.int32)

    outs = jax.jit(mem_transformer_forward)(packed, data, target)
    outs = jax.block_until_ready(outs)

    loss = outs[0]
    assert loss.shape == (TGT_LEN, BSZ), loss.shape
    assert len(outs) == 1 + N_LAYER + 1
    assert all(m.shape == (TGT_LEN, BSZ, D_MODEL) for m in outs[1:])
    assert bool(jnp.all(jnp.isfinite(loss)))
    print("KERNEL_OK")
</pallas_src>

<mosaic_0001>
module attributes {stable_mosaic.version = 11 : i64} {
  func.func @_fused_forward_kernel(%arg0: i32, %arg1: memref<1x8x32xf32, #tpu.memory_space<vmem>>, %arg2: memref<8x32xbf16, #tpu.memory_space<vmem>>, %arg3: memref<8x8xf32, #tpu.memory_space<vmem>>, %arg4: memref<8x8x8xf32, #tpu.memory_space<vmem>>, %arg5: memref<1x8x1xi32, #tpu.memory_space<vmem>>, %arg6: memref<2x96x32xbf16, #tpu.memory_space<vmem>>, %arg7: memref<2x32x32xbf16, #tpu.memory_space<vmem>>, %arg8: memref<2x32x32xbf16, #tpu.memory_space<vmem>>, %arg9: memref<1x32xf32, #tpu.memory_space<vmem>>, %arg10: memref<1x32xf32, #tpu.memory_space<vmem>>, %arg11: memref<2x1x32xf32, #tpu.memory_space<vmem>>, %arg12: memref<2x1x32xf32, #tpu.memory_space<vmem>>, %arg13: memref<2x64x32xbf16, #tpu.memory_space<vmem>>, %arg14: memref<2x1x64xf32, #tpu.memory_space<vmem>>, %arg15: memref<2x32x64xbf16, #tpu.memory_space<vmem>>, %arg16: memref<2x1x32xf32, #tpu.memory_space<vmem>>, %arg17: memref<2x1x32xf32, #tpu.memory_space<vmem>>, %arg18: memref<2x1x32xf32, #tpu.memory_space<vmem>>, %arg19: memref<1x32xf32, #tpu.memory_space<vmem>>, %arg20: memref<1x32xf32, #tpu.memory_space<vmem>>, %arg21: memref<32x32xbf16, #tpu.memory_space<vmem>>, %arg22: memref<1x32xf32, #tpu.memory_space<vmem>>, %arg23: memref<256x32xbf16, #tpu.memory_space<vmem>>, %arg24: memref<1x256xf32, #tpu.memory_space<vmem>>, %arg25: memref<1x8x1xf32, #tpu.memory_space<vmem>>, %arg26: memref<2x1x8x32xf32, #tpu.memory_space<vmem>>) attributes {dimension_semantics = [#tpu.dimension_semantics<parallel>], iteration_bounds = array<i64: 2>, scalar_prefetch = 0 : i64, scratch_operands = 0 : i64, tpu.core_type = #tpu.core_type<tc>, window_params = [{transform_indices = @transform_0, window_bounds = array<i64: 1, 8, 32>}, {pipeline_mode = #tpu.pipeline_mode<synchronous>, transform_indices = @transform_1, window_bounds = array<i64: 8, 32>}, {pipeline_mode = #tpu.pipeline_mode<synchronous>, transform_indices = @transform_2, window_bounds = array<i64: 8, 8>}, {pipeline_mode = #tpu.pipeline_mode<synchronous>, transform_indices = @transform_3, window_bounds = array<i64: 8, 8, 8>}, {transform_indices = @transform_4, window_bounds = array<i64: 1, 8, 1>}, {pipeline_mode = #tpu.pipeline_mode<synchronous>, transform_indices = @transform_5, window_bounds = array<i64: 2, 96, 32>}, {pipeline_mode = #tpu.pipeline_mode<synchronous>, transform_indices = @transform_6, window_bounds = array<i64: 2, 32, 32>}, {pipeline_mode = #tpu.pipeline_mode<synchronous>, transform_indices = @transform_7, window_bounds = array<i64: 2, 32, 32>}, {pipeline_mode = #tpu.pipeline_mode<synchronous>, transform_indices = @transform_8, window_bounds = array<i64: 1, 32>}, {pipeline_mode = #tpu.pipeline_mode<synchronous>, transform_indices = @transform_9, window_bounds = array<i64: 1, 32>}, {pipeline_mode = #tpu.pipeline_mode<synchronous>, transform_indices = @transform_10, window_bounds = array<i64: 2, 1, 32>}, {pipeline_mode = #tpu.pipeline_mode<synchronous>, transform_indices = @transform_11, window_bounds = array<i64: 2, 1, 32>}, {pipeline_mode = #tpu.pipeline_mode<synchronous>, transform_indices = @transform_12, window_bounds = array<i64: 2, 64, 32>}, {pipeline_mode = #tpu.pipeline_mode<synchronous>, transform_indices = @transform_13, window_bounds = array<i64: 2, 1, 64>}, {pipeline_mode = #tpu.pipeline_mode<synchronous>, transform_indices = @transform_14, window_bounds = array<i64: 2, 32, 64>}, {pipeline_mode = #tpu.pipeline_mode<synchronous>, transform_indices = @transform_15, window_bounds = array<i64: 2, 1, 32>}, {pipeline_mode = #tpu.pipeline_mode<synchronous>, transform_indices = @transform_16, window_bounds = array<i64: 2, 1, 32>}, {pipeline_mode = #tpu.pipeline_mode<synchronous>, transform_indices = @transform_17, window_bounds = array<i64: 2, 1, 32>}, {pipeline_mode = #tpu.pipeline_mode<synchronous>, transform_indices = @transform_18, window_bounds = array<i64: 1, 32>}, {pipeline_mode = #tpu.pipeline_mode<synchronous>, transform_indices = @transform_19, window_bounds = array<i64: 1, 32>}, {pipeline_mode = #tpu.pipeline_mode<synchronous>, transform_indices = @transform_20, window_bounds = array<i64: 32, 32>}, {pipeline_mode = #tpu.pipeline_mode<synchronous>, transform_indices = @transform_21, window_bounds = array<i64: 1, 32>}, {pipeline_mode = #tpu.pipeline_mode<synchronous>, transform_indices = @transform_22, window_bounds = array<i64: 256, 32>}, {pipeline_mode = #tpu.pipeline_mode<synchronous>, transform_indices = @transform_23, window_bounds = array<i64: 1, 256>}, {transform_indices = @transform_24, window_bounds = array<i64: 1, 8, 1>}, {transform_indices = @transform_25, window_bounds = array<i64: 2, 1, 8, 32>}]} {
    %c0 = arith.constant 0 : index
    %c0_0 = arith.constant 0 : index
    %c0_1 = arith.constant 0 : index
    %0 = vector.load %arg1[%c0, %c0_0, %c0_1] : memref<1x8x32xf32, #tpu.memory_space<vmem>>, vector<1x8x32xf32>
    %1 = vector.shape_cast %0 : vector<1x8x32xf32> to vector<8x32xf32>
    %c0_2 = arith.constant 0 : index
    %c0_3 = arith.constant 0 : index
    %2 = vector.load %arg2[%c0_2, %c0_3] : memref<8x32xbf16, #tpu.memory_space<vmem>>, vector<8x32xbf16>
    %c0_4 = arith.constant 0 : index
    %c0_5 = arith.constant 0 : index
    %3 = vector.load %arg3[%c0_4, %c0_5] : memref<8x8xf32, #tpu.memory_space<vmem>>, vector<8x8xf32>
    %c0_6 = arith.constant 0 : index
    %c0_7 = arith.constant 0 : index
    %c0_8 = arith.constant 0 : index
    %4 = vector.load %arg4[%c0_6, %c0_7, %c0_8] : memref<8x8x8xf32, #tpu.memory_space<vmem>>, vector<8x8x8xf32>
    %c0_9 = arith.constant 0 : index
    %c0_10 = arith.constant 0 : index
    %5 = vector.load %arg9[%c0_9, %c0_10] : memref<1x32xf32, #tpu.memory_space<vmem>>, vector<1x32xf32>
    %c0_11 = arith.constant 0 : index
    %c0_12 = arith.constant 0 : index
    %6 = vector.load %arg10[%c0_11, %c0_12] : memref<1x32xf32, #tpu.memory_space<vmem>>, vector<1x32xf32>
    %7 = arith.truncf %1 : vector<8x32xf32> to vector<8x32xbf16>
    %c0_13 = arith.constant 0 : index
    %c0_14 = arith.constant 0 : index
    %c0_15 = arith.constant 0 : index
    %8 = vector.load %arg6[%c0_13, %c0_14, %c0_15] : memref<2x96x32xbf16, #tpu.memory_space<vmem>>, vector<1x96x32xbf16>
    %9 = vector.shape_cast %8 : vector<1x96x32xbf16> to vector<96x32xbf16>
    %cst = arith.constant dense<0.000000e+00> : vector<8x96xf32>
    %10 = tpu.matmul %7, %9, %cst {dimension_numbers = #tpu.dot_dimension_numbers<[1], [1], [0], [0], [0, 0, 1, 0], [], []>} : vector<8x32xbf16>, vector<96x32xbf16>, vector<8x96xf32> -> vector<8x96xf32>
    %c0_16 = arith.constant 0 : index
    %c0_17 = arith.constant 0 : index
    %c0_18 = arith.constant 0 : index
    %11 = vector.load %arg7[%c0_16, %c0_17, %c0_18] : memref<2x32x32xbf16, #tpu.memory_space<vmem>>, vector<1x32x32xbf16>
    %12 = vector.shape_cast %11 : vector<1x32x32xbf16> to vector<32x32xbf16>
    %cst_19 = arith.constant dense<0.000000e+00> : vector<8x32xf32>
    %13 = tpu.matmul %2, %12, %cst_19 {dimension_numbers = #tpu.dot_dimension_numbers<[1], [1], [0], [0], [0, 0, 1, 0], [], []>} : vector<8x32xbf16>, vector<32x32xbf16>, vector<8x32xf32> -> vector<8x32xf32>
    %14 = vector.extract_strided_slice %10 {offsets = [0, 0], sizes = [8, 32], strides = [1, 1]} : vector<8x96xf32> to vector<8x32xf32>
    %15 = vector.extract_strided_slice %10 {offsets = [0, 32], sizes = [8, 32], strides = [1, 1]} : vector<8x96xf32> to vector<8x32xf32>
    %16 = vector.extract_strided_slice %10 {offsets = [0, 64], sizes = [8, 32], strides = [1, 1]} : vector<8x96xf32> to vector<8x32xf32>
    %17 = vector.broadcast %5 : vector<1x32xf32> to vector<8x32xf32>
    %18 = arith.addf %14, %17 : vector<8x32xf32>
    %19 = vector.broadcast %6 : vector<1x32xf32> to vector<8x32xf32>
    %20 = arith.addf %14, %19 : vector<8x32xf32>
    %21 = vector.extract_strided_slice %18 {offsets = [0, 0], sizes = [8, 16], strides = [1, 1]} : vector<8x32xf32> to vector<8x16xf32>
    %22 = vector.extract_strided_slice %15 {offsets = [0, 0], sizes = [8, 16], strides = [1, 1]} : vector<8x32xf32> to vector<8x16xf32>
    %cst_20 = arith.constant dense<0.000000e+00> : vector<8x8xf32>
    %23 = tpu.matmul %21, %22, %cst_20 {dimension_numbers = #tpu.dot_dimension_numbers<[1], [1], [0], [0], [0, 0, 1, 0], [], []>} : vector<8x16xf32>, vector<8x16xf32>, vector<8x8xf32> -> vector<8x8xf32>
    %24 = vector.extract_strided_slice %20 {offsets = [0, 0], sizes = [8, 16], strides = [1, 1]} : vector<8x32xf32> to vector<8x16xf32>
    %25 = vector.extract_strided_slice %13 {offsets = [0, 0], sizes = [8, 16], strides = [1, 1]} : vector<8x32xf32> to vector<8x16xf32>
    %cst_21 = arith.constant dense<0.000000e+00> : vector<8x8xf32>
    %26 = tpu.matmul %24, %25, %cst_21 {dimension_numbers = #tpu.dot_dimension_numbers<[1], [1], [0], [0], [0, 0, 1, 0], [], []>} : vector<8x16xf32>, vector<8x16xf32>, vector<8x8xf32> -> vector<8x8xf32>
    %27 = vector.shape_cast %26 : vector<8x8xf32> to vector<8x1x8xf32>
    %28 = vector.broadcast %27 : vector<8x1x8xf32> to vector<8x8x8xf32>
    %29 = arith.mulf %28, %4 : vector<8x8x8xf32>
    %cst_22 = arith.constant dense<0.000000e+00> : vector<8x8xf32>
    %30 = vector.multi_reduction <add>, %29, %cst_22 [2] : vector<8x8x8xf32> to vector<8x8xf32>
    %31 = arith.addf %23, %30 : vector<8x8xf32>
    %32 = arith.addf %31, %3 : vector<8x8xf32>
    %cst_23 = arith.constant dense<0xFF800000> : vector<8xf32>
    %33 = vector.multi_reduction <maximumf>, %32, %cst_23 [1] : vector<8x8xf32> to vector<8xf32>
    %34 = vector.shape_cast %33 : vector<8xf32> to vector<8x1xf32>
    %35 = vector.broadcast %34 : vector<8x1xf32> to vector<8x8xf32>
    %36 = arith.subf %32, %35 : vector<8x8xf32>
    %37 = math.exp %36 : vector<8x8xf32>
    %cst_24 = arith.constant dense<0.000000e+00> : vector<8xf32>
    %38 = vector.multi_reduction <add>, %37, %cst_24 [1] : vector<8x8xf32> to vector<8xf32>
    %39 = vector.shape_cast %38 : vector<8xf32> to vector<8x1xf32>
    %40 = tpu.reciprocal %39 {approx = true} : vector<8x1xf32> -> vector<8x1xf32>
    %41 = vector.broadcast %40 : vector<8x1xf32> to vector<8x8xf32>
    %42 = arith.mulf %37, %41 : vector<8x8xf32>
    %43 = vector.extract_strided_slice %16 {offsets = [0, 0], sizes = [8, 16], strides = [1, 1]} : vector<8x32xf32> to vector<8x16xf32>
    %cst_25 = arith.constant dense<0.000000e+00> : vector<8x16xf32>
    %44 = tpu.matmul %42, %43, %cst_25 {dimension_numbers = #tpu.dot_dimension_numbers<[1], [0], [0], [1], [0, 0, 1, 1], [], []>} : vector<8x8xf32>, vector<8x16xf32>, vector<8x16xf32> -> vector<8x16xf32>
    %45 = vector.extract_strided_slice %18 {offsets = [0, 16], sizes = [8, 16], strides = [1, 1]} : vector<8x32xf32> to vector<8x16xf32>
    %46 = vector.extract_strided_slice %15 {offsets = [0, 16], sizes = [8, 16], strides = [1, 1]} : vector<8x32xf32> to vector<8x16xf32>
    %cst_26 = arith.constant dense<0.000000e+00> : vector<8x8xf32>
    %47 = tpu.matmul %45, %46, %cst_26 {dimension_numbers = #tpu.dot_dimension_numbers<[1], [1], [0], [0], [0, 0, 1, 0], [], []>} : vector<8x16xf32>, vector<8x16xf32>, vector<8x8xf32> -> vector<8x8xf32>
    %48 = vector.extract_strided_slice %20 {offsets = [0, 16], sizes = [8, 16], strides = [1, 1]} : vector<8x32xf32> to vector<8x16xf32>
    %49 = vector.extract_strided_slice %13 {offsets = [0, 16], sizes = [8, 16], strides = [1, 1]} : vector<8x32xf32> to vector<8x16xf32>
    %cst_27 = arith.constant dense<0.000000e+00> : vector<8x8xf32>
    %50 = tpu.matmul %48, %49, %cst_27 {dimension_numbers = #tpu.dot_dimension_numbers<[1], [1], [0], [0], [0, 0, 1, 0], [], []>} : vector<8x16xf32>, vector<8x16xf32>, vector<8x8xf32> -> vector<8x8xf32>
    %51 = vector.shape_cast %50 : vector<8x8xf32> to vector<8x1x8xf32>
    %52 = vector.broadcast %51 : vector<8x1x8xf32> to vector<8x8x8xf32>
    %53 = arith.mulf %52, %4 : vector<8x8x8xf32>
    %cst_28 = arith.constant dense<0.000000e+00> : vector<8x8xf32>
    %54 = vector.multi_reduction <add>, %53, %cst_28 [2] : vector<8x8x8xf32> to vector<8x8xf32>
    %55 = arith.addf %47, %54 : vector<8x8xf32>
    %56 = arith.addf %55, %3 : vector<8x8xf32>
    %cst_29 = arith.constant dense<0xFF800000> : vector<8xf32>
    %57 = vector.multi_reduction <maximumf>, %56, %cst_29 [1] : vector<8x8xf32> to vector<8xf32>
    %58 = vector.shape_cast %57 : vector<8xf32> to vector<8x1xf32>
    %59 = vector.broadcast %58 : vector<8x1xf32> to vector<8x8xf32>
    %60 = arith.subf %56, %59 : vector<8x8xf32>
    %61 = math.exp %60 : vector<8x8xf32>
    %cst_30 = arith.constant dense<0.000000e+00> : vector<8xf32>
    %62 = vector.multi_reduction <add>, %61, %cst_30 [1] : vector<8x8xf32> to vector<8xf32>
    %63 = vector.shape_cast %62 : vector<8xf32> to vector<8x1xf32>
    %64 = tpu.reciprocal %63 {approx = true} : vector<8x1xf32> -> vector<8x1xf32>
    %65 = vector.broadcast %64 : vector<8x1xf32> to vector<8x8xf32>
    %66 = arith.mulf %61, %65 : vector<8x8xf32>
    %67 = vector.extract_strided_slice %16 {offsets = [0, 16], sizes = [8, 16], strides = [1, 1]} : vector<8x32xf32> to vector<8x16xf32>
    %cst_31 = arith.constant dense<0.000000e+00> : vector<8x16xf32>
    %68 = tpu.matmul %66, %67, %cst_31 {dimension_numbers = #tpu.dot_dimension_numbers<[1], [0], [0], [1], [0, 0, 1, 1], [], []>} : vector<8x8xf32>, vector<8x16xf32>, vector<8x16xf32> -> vector<8x16xf32>
    %69 = tpu.concatenate %44, %68 in 1 : vector<8x16xf32>, vector<8x16xf32> -> vector<8x32xf32>
    %70 = arith.truncf %69 : vector<8x32xf32> to vector<8x32xbf16>
    %c0_32 = arith.constant 0 : index
    %c0_33 = arith.constant 0 : index
    %c0_34 = arith.constant 0 : index
    %71 = vector.load %arg8[%c0_32, %c0_33, %c0_34] : memref<2x32x32xbf16, #tpu.memory_space<vmem>>, vector<1x32x32xbf16>
    %72 = vector.shape_cast %71 : vector<1x32x32xbf16> to vector<32x32xbf16>
    %cst_35 = arith.constant dense<0.000000e+00> : vector<8x32xf32>
    %73 = tpu.matmul %70, %72, %cst_35 {dimension_numbers = #tpu.dot_dimension_numbers<[1], [0], [0], [1], [0, 0, 1, 1], [], []>} : vector<8x32xbf16>, vector<32x32xbf16>, vector<8x32xf32> -> vector<8x32xf32>
    %74 = arith.addf %1, %73 : vector<8x32xf32>
    %c0_36 = arith.constant 0 : index
    %c0_37 = arith.constant 0 : index
    %c0_38 = arith.constant 0 : index
    %75 = vector.load %arg11[%c0_36, %c0_37, %c0_38] : memref<2x1x32xf32, #tpu.memory_space<vmem>>, vector<1x1x32xf32>
    %76 = vector.shape_cast %75 : vector<1x1x32xf32> to vector<1x32xf32>
    %c0_39 = arith.constant 0 : index
    %c0_40 = arith.constant 0 : index
    %c0_41 = arith.constant 0 : index
    %77 = vector.load %arg12[%c0_39, %c0_40, %c0_41] : memref<2x1x32xf32, #tpu.memory_space<vmem>>, vector<1x1x32xf32>
    %78 = vector.shape_cast %77 : vector<1x1x32xf32> to vector<1x32xf32>
    %cst_42 = arith.constant dense<0.000000e+00> : vector<8xf32>
    %79 = vector.multi_reduction <add>, %74, %cst_42 [1] : vector<8x32xf32> to vector<8xf32>
    %80 = vector.shape_cast %79 : vector<8xf32> to vector<8x1xf32>
    %cst_43 = arith.constant 3.200000e+01 : f32
    %81 = vector.broadcast %cst_43 : f32 to vector<8x1xf32>
    %82 = arith.divf %80, %81 : vector<8x1xf32>
    %83 = vector.broadcast %82 : vector<8x1xf32> to vector<8x32xf32>
    %84 = arith.subf %74, %83 : vector<8x32xf32>
    %85 = arith.mulf %84, %84 : vector<8x32xf32>
    %cst_44 = arith.constant dense<0.000000e+00> : vector<8xf32>
    %86 = vector.multi_reduction <add>, %85, %cst_44 [1] : vector<8x32xf32> to vector<8xf32>
    %87 = vector.shape_cast %86 : vector<8xf32> to vector<8x1xf32>
    %cst_45 = arith.constant 3.200000e+01 : f32
    %88 = vector.broadcast %cst_45 : f32 to vector<8x1xf32>
    %89 = arith.divf %87, %88 : vector<8x1xf32>
    %90 = vector.broadcast %82 : vector<8x1xf32> to vector<8x32xf32>
    %91 = arith.subf %74, %90 : vector<8x32xf32>
    %cst_46 = arith.constant 9.99999974E-6 : f32
    %92 = vector.broadcast %cst_46 : f32 to vector<8x1xf32>
    %93 = arith.addf %89, %92 : vector<8x1xf32>
    %94 = math.rsqrt %93 : vector<8x1xf32>
    %95 = vector.broadcast %94 : vector<8x1xf32> to vector<8x32xf32>
    %96 = arith.mulf %91, %95 : vector<8x32xf32>
    %97 = vector.broadcast %76 : vector<1x32xf32> to vector<8x32xf32>
    %98 = arith.mulf %96, %97 : vector<8x32xf32>
    %99 = vector.broadcast %78 : vector<1x32xf32> to vector<8x32xf32>
    %100 = arith.addf %98, %99 : vector<8x32xf32>
    %101 = arith.truncf %100 : vector<8x32xf32> to vector<8x32xbf16>
    %c0_47 = arith.constant 0 : index
    %c0_48 = arith.constant 0 : index
    %c0_49 = arith.constant 0 : index
    %102 = vector.load %arg13[%c0_47, %c0_48, %c0_49] : memref<2x64x32xbf16, #tpu.memory_space<vmem>>, vector<1x64x32xbf16>
    %103 = vector.shape_cast %102 : vector<1x64x32xbf16> to vector<64x32xbf16>
    %cst_50 = arith.constant dense<0.000000e+00> : vector<8x64xf32>
    %104 = tpu.matmul %101, %103, %cst_50 {dimension_numbers = #tpu.dot_dimension_numbers<[1], [1], [0], [0], [0, 0, 1, 0], [], []>} : vector<8x32xbf16>, vector<64x32xbf16>, vector<8x64xf32> -> vector<8x64xf32>
    %c0_51 = arith.constant 0 : index
    %c0_52 = arith.constant 0 : index
    %c0_53 = arith.constant 0 : index
    %105 = vector.load %arg14[%c0_51, %c0_52, %c0_53] : memref<2x1x64xf32, #tpu.memory_space<vmem>>, vector<1x1x64xf32>
    %106 = vector.shape_cast %105 : vector<1x1x64xf32> to vector<1x64xf32>
    %107 = vector.broadcast %106 : vector<1x64xf32> to vector<8x64xf32>
    %108 = arith.addf %104, %107 : vector<8x64xf32>
    %cst_54 = arith.constant 0.000000e+00 : f32
    %109 = vector.broadcast %cst_54 : f32 to vector<8x64xf32>
    %110 = arith.maximumf %108, %109 : vector<8x64xf32>
    %111 = arith.truncf %110 : vector<8x64xf32> to vector<8x64xbf16>
    %c0_55 = arith.constant 0 : index
    %c0_56 = arith.constant 0 : index
    %c0_57 = arith.constant 0 : index
    %112 = vector.load %arg15[%c0_55, %c0_56, %c0_57] : memref<2x32x64xbf16, #tpu.memory_space<vmem>>, vector<1x32x64xbf16>
    %113 = vector.shape_cast %112 : vector<1x32x64xbf16> to vector<32x64xbf16>
    %cst_58 = arith.constant dense<0.000000e+00> : vector<8x32xf32>
    %114 = tpu.matmul %111, %113, %cst_58 {dimension_numbers = #tpu.dot_dimension_numbers<[1], [1], [0], [0], [0, 0, 1, 0], [], []>} : vector<8x64xbf16>, vector<32x64xbf16>, vector<8x32xf32> -> vector<8x32xf32>
    %c0_59 = arith.constant 0 : index
    %c0_60 = arith.constant 0 : index
    %c0_61 = arith.constant 0 : index
    %115 = vector.load %arg16[%c0_59, %c0_60, %c0_61] : memref<2x1x32xf32, #tpu.memory_space<vmem>>, vector<1x1x32xf32>
    %116 = vector.shape_cast %115 : vector<1x1x32xf32> to vector<1x32xf32>
    %117 = vector.broadcast %116 : vector<1x32xf32> to vector<8x32xf32>
    %118 = arith.addf %114, %117 : vector<8x32xf32>
    %119 = arith.addf %100, %118 : vector<8x32xf32>
    %c0_62 = arith.constant 0 : index
    %c0_63 = arith.constant 0 : index
    %c0_64 = arith.constant 0 : index
    %120 = vector.load %arg17[%c0_62, %c0_63, %c0_64] : memref<2x1x32xf32, #tpu.memory_space<vmem>>, vector<1x1x32xf32>
    %121 = vector.shape_cast %120 : vector<1x1x32xf32> to vector<1x32xf32>
    %c0_65 = arith.constant 0 : index
    %c0_66 = arith.constant 0 : index
    %c0_67 = arith.constant 0 : index
    %122 = vector.load %arg18[%c0_65, %c0_66, %c0_67] : memref<2x1x32xf32, #tpu.memory_space<vmem>>, vector<1x1x32xf32>
    %123 = vector.shape_cast %122 : vector<1x1x32xf32> to vector<1x32xf32>
    %cst_68 = arith.constant dense<0.000000e+00> : vector<8xf32>
    %124 = vector.multi_reduction <add>, %119, %cst_68 [1] : vector<8x32xf32> to vector<8xf32>
    %125 = vector.shape_cast %124 : vector<8xf32> to vector<8x1xf32>
    %cst_69 = arith.constant 3.200000e+01 : f32
    %126 = vector.broadcast %cst_69 : f32 to vector<8x1xf32>
    %127 = arith.divf %125, %126 : vector<8x1xf32>
    %128 = vector.broadcast %127 : vector<8x1xf32> to vector<8x32xf32>
    %129 = arith.subf %119, %128 : vector<8x32xf32>
    %130 = arith.mulf %129, %129 : vector<8x32xf32>
    %cst_70 = arith.constant dense<0.000000e+00> : vector<8xf32>
    %131 = vector.multi_reduction <add>, %130, %cst_70 [1] : vector<8x32xf32> to vector<8xf32>
    %132 = vector.shape_cast %131 : vector<8xf32> to vector<8x1xf32>
    %cst_71 = arith.constant 3.200000e+01 : f32
    %133 = vector.broadcast %cst_71 : f32 to vector<8x1xf32>
    %134 = arith.divf %132, %133 : vector<8x1xf32>
    %135 = vector.broadcast %127 : vector<8x1xf32> to vector<8x32xf32>
    %136 = arith.subf %119, %135 : vector<8x32xf32>
    %cst_72 = arith.constant 9.99999974E-6 : f32
    %137 = vector.broadcast %cst_72 : f32 to vector<8x1xf32>
    %138 = arith.addf %134, %137 : vector<8x1xf32>
    %139 = math.rsqrt %138 : vector<8x1xf32>
    %140 = vector.broadcast %139 : vector<8x1xf32> to vector<8x32xf32>
    %141 = arith.mulf %136, %140 : vector<8x32xf32>
    %142 = vector.broadcast %121 : vector<1x32xf32> to vector<8x32xf32>
    %143 = arith.mulf %141, %142 : vector<8x32xf32>
    %144 = vector.broadcast %123 : vector<1x32xf32> to vector<8x32xf32>
    %145 = arith.addf %143, %144 : vector<8x32xf32>
    %c0_73 = arith.constant 0 : index
    %c0_74 = arith.constant 0 : index
    %c0_75 = arith.constant 0 : index
    %c0_76 = arith.constant 0 : index
    %146 = vector.load %arg26[%c0_73, %c0_74, %c0_75, %c0_76] : memref<2x1x8x32xf32, #tpu.memory_space<vmem>>, vector<1x1x8x32xf32>
    %147 = vector.shape_cast %146 : vector<1x1x8x32xf32> to vector<8x32xf32>
    %148 = vector.shape_cast %145 : vector<8x32xf32> to vector<1x1x8x32xf32>
    tpu.vector_store %arg26[%c0_73, %c0_74, %c0_75, %c0_76], %148 {strides = array<i32>} : memref<2x1x8x32xf32, #tpu.memory_space<vmem>>, vector<1x1x8x32xf32>,
    %149 = arith.truncf %145 : vector<8x32xf32> to vector<8x32xbf16>
    %c1 = arith.constant 1 : index
    %c0_77 = arith.constant 0 : index
    %c0_78 = arith.constant 0 : index
    %150 = vector.load %arg6[%c1, %c0_77, %c0_78] : memref<2x96x32xbf16, #tpu.memory_space<vmem>>, vector<1x96x32xbf16>
    %151 = vector.shape_cast %150 : vector<1x96x32xbf16> to vector<96x32xbf16>
    %cst_79 = arith.constant dense<0.000000e+00> : vector<8x96xf32>
    %152 = tpu.matmul %149, %151, %cst_79 {dimension_numbers = #tpu.dot_dimension_numbers<[1], [1], [0], [0], [0, 0, 1, 0], [], []>} : vector<8x32xbf16>, vector<96x32xbf16>, vector<8x96xf32> -> vector<8x96xf32>
    %c1_80 = arith.constant 1 : index
    %c0_81 = arith.constant 0 : index
    %c0_82 = arith.constant 0 : index
    %153 = vector.load %arg7[%c1_80, %c0_81, %c0_82] : memref<2x32x32xbf16, #tpu.memory_space<vmem>>, vector<1x32x32xbf16>
    %154 = vector.shape_cast %153 : vector<1x32x32xbf16> to vector<32x32xbf16>
    %cst_83 = arith.constant dense<0.000000e+00> : vector<8x32xf32>
    %155 = tpu.matmul %2, %154, %cst_83 {dimension_numbers = #tpu.dot_dimension_numbers<[1], [1], [0], [0], [0, 0, 1, 0], [], []>} : vector<8x32xbf16>, vector<32x32xbf16>, vector<8x32xf32> -> vector<8x32xf32>
    %156 = vector.extract_strided_slice %152 {offsets = [0, 0], sizes = [8, 32], strides = [1, 1]} : vector<8x96xf32> to vector<8x32xf32>
    %157 = vector.extract_strided_slice %152 {offsets = [0, 32], sizes = [8, 32], strides = [1, 1]} : vector<8x96xf32> to vector<8x32xf32>
    %158 = vector.extract_strided_slice %152 {offsets = [0, 64], sizes = [8, 32], strides = [1, 1]} : vector<8x96xf32> to vector<8x32xf32>
    %159 = vector.broadcast %5 : vector<1x32xf32> to vector<8x32xf32>
    %160 = arith.addf %156, %159 : vector<8x32xf32>
    %161 = vector.broadcast %6 : vector<1x32xf32> to vector<8x32xf32>
    %162 = arith.addf %156, %161 : vector<8x32xf32>
    %163 = vector.extract_strided_slice %160 {offsets = [0, 0], sizes = [8, 16], strides = [1, 1]} : vector<8x32xf32> to vector<8x16xf32>
    %164 = vector.extract_strided_slice %157 {offsets = [0, 0], sizes = [8, 16], strides = [1, 1]} : vector<8x32xf32> to vector<8x16xf32>
    %cst_84 = arith.constant dense<0.000000e+00> : vector<8x8xf32>
    %165 = tpu.matmul %163, %164, %cst_84 {dimension_numbers = #tpu.dot_dimension_numbers<[1], [1], [0], [0], [0, 0, 1, 0], [], []>} : vector<8x16xf32>, vector<8x16xf32>, vector<8x8xf32> -> vector<8x8xf32>
    %166 = vector.extract_strided_slice %162 {offsets = [0, 0], sizes = [8, 16], strides = [1, 1]} : vector<8x32xf32> to vector<8x16xf32>
    %167 = vector.extract_strided_slice %155 {offsets = [0, 0], sizes = [8, 16], strides = [1, 1]} : vector<8x32xf32> to vector<8x16xf32>
    %cst_85 = arith.constant dense<0.000000e+00> : vector<8x8xf32>
    %168 = tpu.matmul %166, %167, %cst_85 {dimension_numbers = #tpu.dot_dimension_numbers<[1], [1], [0], [0], [0, 0, 1, 0], [], []>} : vector<8x16xf32>, vector<8x16xf32>, vector<8x8xf32> -> vector<8x8xf32>
    %169 = vector.shape_cast %168 : vector<8x8xf32> to vector<8x1x8xf32>
    %170 = vector.broadcast %169 : vector<8x1x8xf32> to vector<8x8x8xf32>
    %171 = arith.mulf %170, %4 : vector<8x8x8xf32>
    %cst_86 = arith.constant dense<0.000000e+00> : vector<8x8xf32>
    %172 = vector.multi_reduction <add>, %171, %cst_86 [2] : vector<8x8x8xf32> to vector<8x8xf32>
    %173 = arith.addf %165, %172 : vector<8x8xf32>
    %174 = arith.addf %173, %3 : vector<8x8xf32>
    %cst_87 = arith.constant dense<0xFF800000> : vector<8xf32>
    %175 = vector.multi_reduction <maximumf>, %174, %cst_87 [1] : vector<8x8xf32> to vector<8xf32>
    %176 = vector.shape_cast %175 : vector<8xf32> to vector<8x1xf32>
    %177 = vector.broadcast %176 : vector<8x1xf32> to vector<8x8xf32>
    %178 = arith.subf %174, %177 : vector<8x8xf32>
    %179 = math.exp %178 : vector<8x8xf32>
    %cst_88 = arith.constant dense<0.000000e+00> : vector<8xf32>
    %180 = vector.multi_reduction <add>, %179, %cst_88 [1] : vector<8x8xf32> to vector<8xf32>
    %181 = vector.shape_cast %180 : vector<8xf32> to vector<8x1xf32>
    %182 = tpu.reciprocal %181 {approx = true} : vector<8x1xf32> -> vector<8x1xf32>
    %183 = vector.broadcast %182 : vector<8x1xf32> to vector<8x8xf32>
    %184 = arith.mulf %179, %183 : vector<8x8xf32>
    %185 = vector.extract_strided_slice %158 {offsets = [0, 0], sizes = [8, 16], strides = [1, 1]} : vector<8x32xf32> to vector<8x16xf32>
    %cst_89 = arith.constant dense<0.000000e+00> : vector<8x16xf32>
    %186 = tpu.matmul %184, %185, %cst_89 {dimension_numbers = #tpu.dot_dimension_numbers<[1], [0], [0], [1], [0, 0, 1, 1], [], []>} : vector<8x8xf32>, vector<8x16xf32>, vector<8x16xf32> -> vector<8x16xf32>
    %187 = vector.extract_strided_slice %160 {offsets = [0, 16], sizes = [8, 16], strides = [1, 1]} : vector<8x32xf32> to vector<8x16xf32>
    %188 = vector.extract_strided_slice %157 {offsets = [0, 16], sizes = [8, 16], strides = [1, 1]} : vector<8x32xf32> to vector<8x16xf32>
    %cst_90 = arith.constant dense<0.000000e+00> : vector<8x8xf32>
    %189 = tpu.matmul %187, %188, %cst_90 {dimension_numbers = #tpu.dot_dimension_numbers<[1], [1], [0], [0], [0, 0, 1, 0], [], []>} : vector<8x16xf32>, vector<8x16xf32>, vector<8x8xf32> -> vector<8x8xf32>
    %190 = vector.extract_strided_slice %162 {offsets = [0, 16], sizes = [8, 16], strides = [1, 1]} : vector<8x32xf32> to vector<8x16xf32>
    %191 = vector.extract_strided_slice %155 {offsets = [0, 16], sizes = [8, 16], strides = [1, 1]} : vector<8x32xf32> to vector<8x16xf32>
    %cst_91 = arith.constant dense<0.000000e+00> : vector<8x8xf32>
    %192 = tpu.matmul %190, %191, %cst_91 {dimension_numbers = #tpu.dot_dimension_numbers<[1], [1], [0], [0], [0, 0, 1, 0], [], []>} : vector<8x16xf32>, vector<8x16xf32>, vector<8x8xf32> -> vector<8x8xf32>
    %193 = vector.shape_cast %192 : vector<8x8xf32> to vector<8x1x8xf32>
    %194 = vector.broadcast %193 : vector<8x1x8xf32> to vector<8x8x8xf32>
    %195 = arith.mulf %194, %4 : vector<8x8x8xf32>
    %cst_92 = arith.constant dense<0.000000e+00> : vector<8x8xf32>
    %196 = vector.multi_reduction <add>, %195, %cst_92 [2] : vector<8x8x8xf32> to vector<8x8xf32>
    %197 = arith.addf %189, %196 : vector<8x8xf32>
    %198 = arith.addf %197, %3 : vector<8x8xf32>
    %cst_93 = arith.constant dense<0xFF800000> : vector<8xf32>
    %199 = vector.multi_reduction <maximumf>, %198, %cst_93 [1] : vector<8x8xf32> to vector<8xf32>
    %200 = vector.shape_cast %199 : vector<8xf32> to vector<8x1xf32>
    %201 = vector.broadcast %200 : vector<8x1xf32> to vector<8x8xf32>
    %202 = arith.subf %198, %201 : vector<8x8xf32>
    %203 = math.exp %202 : vector<8x8xf32>
    %cst_94 = arith.constant dense<0.000000e+00> : vector<8xf32>
    %204 = vector.multi_reduction <add>, %203, %cst_94 [1] : vector<8x8xf32> to vector<8xf32>
    %205 = vector.shape_cast %204 : vector<8xf32> to vector<8x1xf32>
    %206 = tpu.reciprocal %205 {approx = true} : vector<8x1xf32> -> vector<8x1xf32>
    %207 = vector.broadcast %206 : vector<8x1xf32> to vector<8x8xf32>
    %208 = arith.mulf %203, %207 : vector<8x8xf32>
    %209 = vector.extract_strided_slice %158 {offsets = [0, 16], sizes = [8, 16], strides = [1, 1]} : vector<8x32xf32> to vector<8x16xf32>
    %cst_95 = arith.constant dense<0.000000e+00> : vector<8x16xf32>
    %210 = tpu.matmul %208, %209, %cst_95 {dimension_numbers = #tpu.dot_dimension_numbers<[1], [0], [0], [1], [0, 0, 1, 1], [], []>} : vector<8x8xf32>, vector<8x16xf32>, vector<8x16xf32> -> vector<8x16xf32>
    %211 = tpu.concatenate %186, %210 in 1 : vector<8x16xf32>, vector<8x16xf32> -> vector<8x32xf32>
    %212 = arith.truncf %211 : vector<8x32xf32> to vector<8x32xbf16>
    %c1_96 = arith.constant 1 : index
    %c0_97 = arith.constant 0 : index
    %c0_98 = arith.constant 0 : index
    %213 = vector.load %arg8[%c1_96, %c0_97, %c0_98] : memref<2x32x32xbf16, #tpu.memory_space<vmem>>, vector<1x32x32xbf16>
    %214 = vector.shape_cast %213 : vector<1x32x32xbf16> to vector<32x32xbf16>
    %cst_99 = arith.constant dense<0.000000e+00> : vector<8x32xf32>
    %215 = tpu.matmul %212, %214, %cst_99 {dimension_numbers = #tpu.dot_dimension_numbers<[1], [0], [0], [1], [0, 0, 1, 1], [], []>} : vector<8x32xbf16>, vector<32x32xbf16>, vector<8x32xf32> -> vector<8x32xf32>
    %216 = arith.addf %145, %215 : vector<8x32xf32>
    %c1_100 = arith.constant 1 : index
    %c0_101 = arith.constant 0 : index
    %c0_102 = arith.constant 0 : index
    %217 = vector.load %arg11[%c1_100, %c0_101, %c0_102] : memref<2x1x32xf32, #tpu.memory_space<vmem>>, vector<1x1x32xf32>
    %218 = vector.shape_cast %217 : vector<1x1x32xf32> to vector<1x32xf32>
    %c1_103 = arith.constant 1 : index
    %c0_104 = arith.constant 0 : index
    %c0_105 = arith.constant 0 : index
    %219 = vector.load %arg12[%c1_103, %c0_104, %c0_105] : memref<2x1x32xf32, #tpu.memory_space<vmem>>, vector<1x1x32xf32>
    %220 = vector.shape_cast %219 : vector<1x1x32xf32> to vector<1x32xf32>
    %cst_106 = arith.constant dense<0.000000e+00> : vector<8xf32>
    %221 = vector.multi_reduction <add>, %216, %cst_106 [1] : vector<8x32xf32> to vector<8xf32>
    %222 = vector.shape_cast %221 : vector<8xf32> to vector<8x1xf32>
    %cst_107 = arith.constant 3.200000e+01 : f32
    %223 = vector.broadcast %cst_107 : f32 to vector<8x1xf32>
    %224 = arith.divf %222, %223 : vector<8x1xf32>
    %225 = vector.broadcast %224 : vector<8x1xf32> to vector<8x32xf32>
    %226 = arith.subf %216, %225 : vector<8x32xf32>
    %227 = arith.mulf %226, %226 : vector<8x32xf32>
    %cst_108 = arith.constant dense<0.000000e+00> : vector<8xf32>
    %228 = vector.multi_reduction <add>, %227, %cst_108 [1] : vector<8x32xf32> to vector<8xf32>
    %229 = vector.shape_cast %228 : vector<8xf32> to vector<8x1xf32>
    %cst_109 = arith.constant 3.200000e+01 : f32
    %230 = vector.broadcast %cst_109 : f32 to vector<8x1xf32>
    %231 = arith.divf %229, %230 : vector<8x1xf32>
    %232 = vector.broadcast %224 : vector<8x1xf32> to vector<8x32xf32>
    %233 = arith.subf %216, %232 : vector<8x32xf32>
    %cst_110 = arith.constant 9.99999974E-6 : f32
    %234 = vector.broadcast %cst_110 : f32 to vector<8x1xf32>
    %235 = arith.addf %231, %234 : vector<8x1xf32>
    %236 = math.rsqrt %235 : vector<8x1xf32>
    %237 = vector.broadcast %236 : vector<8x1xf32> to vector<8x32xf32>
    %238 = arith.mulf %233, %237 : vector<8x32xf32>
    %239 = vector.broadcast %218 : vector<1x32xf32> to vector<8x32xf32>
    %240 = arith.mulf %238, %239 : vector<8x32xf32>
    %241 = vector.broadcast %220 : vector<1x32xf32> to vector<8x32xf32>
    %242 = arith.addf %240, %241 : vector<8x32xf32>
    %243 = arith.truncf %242 : vector<8x32xf32> to vector<8x32xbf16>
    %c1_111 = arith.constant 1 : index
    %c0_112 = arith.constant 0 : index
    %c0_113 = arith.constant 0 : index
    %244 = vector.load %arg13[%c1_111, %c0_112, %c0_113] : memref<2x64x32xbf16, #tpu.memory_space<vmem>>, vector<1x64x32xbf16>
    %245 = vector.shape_cast %244 : vector<1x64x32xbf16> to vector<64x32xbf16>
    %cst_114 = arith.constant dense<0.000000e+00> : vector<8x64xf32>
    %246 = tpu.matmul %243, %245, %cst_114 {dimension_numbers = #tpu.dot_dimension_numbers<[1], [1], [0], [0], [0, 0, 1, 0], [], []>} : vector<8x32xbf16>, vector<64x32xbf16>, vector<8x64xf32> -> vector<8x64xf32>
    %c1_115 = arith.constant 1 : index
    %c0_116 = arith.constant 0 : index
    %c0_117 = arith.constant 0 : index
    %247 = vector.load %arg14[%c1_115, %c0_116, %c0_117] : memref<2x1x64xf32, #tpu.memory_space<vmem>>, vector<1x1x64xf32>
    %248 = vector.shape_cast %247 : vector<1x1x64xf32> to vector<1x64xf32>
    %249 = vector.broadcast %248 : vector<1x64xf32> to vector<8x64xf32>
    %250 = arith.addf %246, %249 : vector<8x64xf32>
    %cst_118 = arith.constant 0.000000e+00 : f32
    %251 = vector.broadcast %cst_118 : f32 to vector<8x64xf32>
    %252 = arith.maximumf %250, %251 : vector<8x64xf32>
    %253 = arith.truncf %252 : vector<8x64xf32> to vector<8x64xbf16>
    %c1_119 = arith.constant 1 : index
    %c0_120 = arith.constant 0 : index
    %c0_121 = arith.constant 0 : index
    %254 = vector.load %arg15[%c1_119, %c0_120, %c0_121] : memref<2x32x64xbf16, #tpu.memory_space<vmem>>, vector<1x32x64xbf16>
    %255 = vector.shape_cast %254 : vector<1x32x64xbf16> to vector<32x64xbf16>
    %cst_122 = arith.constant dense<0.000000e+00> : vector<8x32xf32>
    %256 = tpu.matmul %253, %255, %cst_122 {dimension_numbers = #tpu.dot_dimension_numbers<[1], [1], [0], [0], [0, 0, 1, 0], [], []>} : vector<8x64xbf16>, vector<32x64xbf16>, vector<8x32xf32> -> vector<8x32xf32>
    %c1_123 = arith.constant 1 : index
    %c0_124 = arith.constant 0 : index
    %c0_125 = arith.constant 0 : index
    %257 = vector.load %arg16[%c1_123, %c0_124, %c0_125] : memref<2x1x32xf32, #tpu.memory_space<vmem>>, vector<1x1x32xf32>
    %258 = vector.shape_cast %257 : vector<1x1x32xf32> to vector<1x32xf32>
    %259 = vector.broadcast %258 : vector<1x32xf32> to vector<8x32xf32>
    %260 = arith.addf %256, %259 : vector<8x32xf32>
    %261 = arith.addf %242, %260 : vector<8x32xf32>
    %c1_126 = arith.constant 1 : index
    %c0_127 = arith.constant 0 : index
    %c0_128 = arith.constant 0 : index
    %262 = vector.load %arg17[%c1_126, %c0_127, %c0_128] : memref<2x1x32xf32, #tpu.memory_space<vmem>>, vector<1x1x32xf32>
    %263 = vector.shape_cast %262 : vector<1x1x32xf32> to vector<1x32xf32>
    %c1_129 = arith.constant 1 : index
    %c0_130 = arith.constant 0 : index
    %c0_131 = arith.constant 0 : index
    %264 = vector.load %arg18[%c1_129, %c0_130, %c0_131] : memref<2x1x32xf32, #tpu.memory_space<vmem>>, vector<1x1x32xf32>
    %265 = vector.shape_cast %264 : vector<1x1x32xf32> to vector<1x32xf32>
    %cst_132 = arith.constant dense<0.000000e+00> : vector<8xf32>
    %266 = vector.multi_reduction <add>, %261, %cst_132 [1] : vector<8x32xf32> to vector<8xf32>
    %267 = vector.shape_cast %266 : vector<8xf32> to vector<8x1xf32>
    %cst_133 = arith.constant 3.200000e+01 : f32
    %268 = vector.broadcast %cst_133 : f32 to vector<8x1xf32>
    %269 = arith.divf %267, %268 : vector<8x1xf32>
    %270 = vector.broadcast %269 : vector<8x1xf32> to vector<8x32xf32>
    %271 = arith.subf %261, %270 : vector<8x32xf32>
    %272 = arith.mulf %271, %271 : vector<8x32xf32>
    %cst_134 = arith.constant dense<0.000000e+00> : vector<8xf32>
    %273 = vector.multi_reduction <add>, %272, %cst_134 [1] : vector<8x32xf32> to vector<8xf32>
    %274 = vector.shape_cast %273 : vector<8xf32> to vector<8x1xf32>
    %cst_135 = arith.constant 3.200000e+01 : f32
    %275 = vector.broadcast %cst_135 : f32 to vector<8x1xf32>
    %276 = arith.divf %274, %275 : vector<8x1xf32>
    %277 = vector.broadcast %269 : vector<8x1xf32> to vector<8x32xf32>
    %278 = arith.subf %261, %277 : vector<8x32xf32>
    %cst_136 = arith.constant 9.99999974E-6 : f32
    %279 = vector.broadcast %cst_136 : f32 to vector<8x1xf32>
    %280 = arith.addf %276, %279 : vector<8x1xf32>
    %281 = math.rsqrt %280 : vector<8x1xf32>
    %282 = vector.broadcast %281 : vector<8x1xf32> to vector<8x32xf32>
    %283 = arith.mulf %278, %282 : vector<8x32xf32>
    %284 = vector.broadcast %263 : vector<1x32xf32> to vector<8x32xf32>
    %285 = arith.mulf %283, %284 : vector<8x32xf32>
    %286 = vector.broadcast %265 : vector<1x32xf32> to vector<8x32xf32>
    %287 = arith.addf %285, %286 : vector<8x32xf32>
    %c1_137 = arith.constant 1 : index
    %c0_138 = arith.constant 0 : index
    %c0_139 = arith.constant 0 : index
    %c0_140 = arith.constant 0 : index
    %288 = vector.load %arg26[%c1_137, %c0_138, %c0_139, %c0_140] : memref<2x1x8x32xf32, #tpu.memory_space<vmem>>, vector<1x1x8x32xf32>
    %289 = vector.shape_cast %288 : vector<1x1x8x32xf32> to vector<8x32xf32>
    %290 = vector.shape_cast %287 : vector<8x32xf32> to vector<1x1x8x32xf32>
    tpu.vector_store %arg26[%c1_137, %c0_138, %c0_139, %c0_140], %290 {strides = array<i32>} : memref<2x1x8x32xf32, #tpu.memory_space<vmem>>, vector<1x1x8x32xf32>,
    %c0_141 = arith.constant 0 : index
    %c0_142 = arith.constant 0 : index
    %291 = vector.load %arg19[%c0_141, %c0_142] : memref<1x32xf32, #tpu.memory_space<vmem>>, vector<1x32xf32>
    %c0_143 = arith.constant 0 : index
    %c0_144 = arith.constant 0 : index
    %292 = vector.load %arg20[%c0_143, %c0_144] : memref<1x32xf32, #tpu.memory_space<vmem>>, vector<1x32xf32>
    %cst_145 = arith.constant dense<0.000000e+00> : vector<8xf32>
    %293 = vector.multi_reduction <add>, %287, %cst_145 [1] : vector<8x32xf32> to vector<8xf32>
    %294 = vector.shape_cast %293 : vector<8xf32> to vector<8x1xf32>
    %cst_146 = arith.constant 3.200000e+01 : f32
    %295 = vector.broadcast %cst_146 : f32 to vector<8x1xf32>
    %296 = arith.divf %294, %295 : vector<8x1xf32>
    %297 = vector.broadcast %296 : vector<8x1xf32> to vector<8x32xf32>
    %298 = arith.subf %287, %297 : vector<8x32xf32>
    %299 = arith.mulf %298, %298 : vector<8x32xf32>
    %cst_147 = arith.constant dense<0.000000e+00> : vector<8xf32>
    %300 = vector.multi_reduction <add>, %299, %cst_147 [1] : vector<8x32xf32> to vector<8xf32>
    %301 = vector.shape_cast %300 : vector<8xf32> to vector<8x1xf32>
    %cst_148 = arith.constant 3.200000e+01 : f32
    %302 = vector.broadcast %cst_148 : f32 to vector<8x1xf32>
    %303 = arith.divf %301, %302 : vector<8x1xf32>
    %304 = vector.broadcast %296 : vector<8x1xf32> to vector<8x32xf32>
    %305 = arith.subf %287, %304 : vector<8x32xf32>
    %cst_149 = arith.constant 9.99999974E-6 : f32
    %306 = vector.broadcast %cst_149 : f32 to vector<8x1xf32>
    %307 = arith.addf %303, %306 : vector<8x1xf32>
    %308 = math.rsqrt %307 : vector<8x1xf32>
    %309 = vector.broadcast %308 : vector<8x1xf32> to vector<8x32xf32>
    %310 = arith.mulf %305, %309 : vector<8x32xf32>
    %311 = vector.broadcast %291 : vector<1x32xf32> to vector<8x32xf32>
    %312 = arith.mulf %310, %311 : vector<8x32xf32>
    %313 = vector.broadcast %292 : vector<1x32xf32> to vector<8x32xf32>
    %314 = arith.addf %312, %313 : vector<8x32xf32>
    %315 = arith.truncf %314 : vector<8x32xf32> to vector<8x32xbf16>
    %c0_150 = arith.constant 0 : index
    %c0_151 = arith.constant 0 : index
    %316 = vector.load %arg21[%c0_150, %c0_151] : memref<32x32xbf16, #tpu.memory_space<vmem>>, vector<32x32xbf16>
    %cst_152 = arith.constant dense<0.000000e+00> : vector<8x32xf32>
    %317 = tpu.matmul %315, %316, %cst_152 {dimension_numbers = #tpu.dot_dimension_numbers<[1], [1], [0], [0], [0, 0, 1, 0], [], []>} : vector<8x32xbf16>, vector<32x32xbf16>, vector<8x32xf32> -> vector<8x32xf32>
    %c0_153 = arith.constant 0 : index
    %c0_154 = arith.constant 0 : index
    %318 = vector.load %arg22[%c0_153, %c0_154] : memref<1x32xf32, #tpu.memory_space<vmem>>, vector<1x32xf32>
    %319 = vector.broadcast %318 : vector<1x32xf32> to vector<8x32xf32>
    %320 = arith.addf %317, %319 : vector<8x32xf32>
    %321 = arith.truncf %320 : vector<8x32xf32> to vector<8x32xbf16>
    %c0_155 = arith.constant 0 : index
    %c0_156 = arith.constant 0 : index
    %322 = vector.load %arg23[%c0_155, %c0_156] : memref<256x32xbf16, #tpu.memory_space<vmem>>, vector<256x32xbf16>
    %cst_157 = arith.constant dense<0.000000e+00> : vector<8x256xf32>
    %323 = tpu.matmul %321, %322, %cst_157 {dimension_numbers = #tpu.dot_dimension_numbers<[1], [1], [0], [0], [0, 0, 1, 0], [], []>} : vector<8x32xbf16>, vector<256x32xbf16>, vector<8x256xf32> -> vector<8x256xf32>
    %c0_158 = arith.constant 0 : index
    %c0_159 = arith.constant 0 : index
    %324 = vector.load %arg24[%c0_158, %c0_159] : memref<1x256xf32, #tpu.memory_space<vmem>>, vector<1x256xf32>
    %325 = vector.broadcast %324 : vector<1x256xf32> to vector<8x256xf32>
    %326 = arith.addf %323, %325 : vector<8x256xf32>
    %cst_160 = arith.constant dense<0xFF800000> : vector<8xf32>
    %327 = vector.multi_reduction <maximumf>, %326, %cst_160 [1] : vector<8x256xf32> to vector<8xf32>
    %328 = vector.shape_cast %327 : vector<8xf32> to vector<8x1xf32>
    %329 = vector.broadcast %328 : vector<8x1xf32> to vector<8x256xf32>
    %330 = arith.subf %326, %329 : vector<8x256xf32>
    %331 = math.exp %330 : vector<8x256xf32>
    %cst_161 = arith.constant dense<0.000000e+00> : vector<8xf32>
    %332 = vector.multi_reduction <add>, %331, %cst_161 [1] : vector<8x256xf32> to vector<8xf32>
    %333 = vector.shape_cast %332 : vector<8xf32> to vector<8x1xf32>
    %334 = math.log %333 : vector<8x1xf32>
    %335 = arith.addf %328, %334 : vector<8x1xf32>
    %336 = tpu.iota {dimensions = array<i32: 1>} : vector<8x256xi32>
    %c0_162 = arith.constant 0 : index
    %c0_163 = arith.constant 0 : index
    %c0_164 = arith.constant 0 : index
    %337 = vector.load %arg5[%c0_162, %c0_163, %c0_164] : memref<1x8x1xi32, #tpu.memory_space<vmem>>, vector<1x8x1xi32>
    %338 = vector.shape_cast %337 : vector<1x8x1xi32> to vector<8x1xi32>
    %339 = vector.broadcast %338 : vector<8x1xi32> to vector<8x256xi32>
    %340 = arith.cmpi eq, %336, %339 : vector<8x256xi32>
    %cst_165 = arith.constant 0.000000e+00 : f32
    %341 = vector.broadcast %cst_165 : f32 to vector<8x256xf32>
    %342 = arith.select %340, %326, %341 : vector<8x256xi1>, vector<8x256xf32>
    %cst_166 = arith.constant dense<0.000000e+00> : vector<8xf32>
    %343 = vector.multi_reduction <add>, %342, %cst_166 [1] : vector<8x256xf32> to vector<8xf32>
    %344 = vector.shape_cast %343 : vector<8xf32> to vector<8x1xf32>
    %345 = arith.subf %335, %344 : vector<8x1xf32>
    %c0_167 = arith.constant 0 : index
    %c0_168 = arith.constant 0 : index
    %c0_169 = arith.constant 0 : index
    %346 = vector.load %arg25[%c0_167, %c0_168, %c0_169] : memref<1x8x1xf32, #tpu.memory_space<vmem>>, vector<1x8x1xf32>
    %347 = vector.shape_cast %346 : vector<1x8x1xf32> to vector<8x1xf32>
    %348 = vector.shape_cast %345 : vector<8x1xf32> to vector<1x8x1xf32>
    tpu.vector_store %arg25[%c0_167, %c0_168, %c0_169], %348 {strides = array<i32>} : memref<1x8x1xf32, #tpu.memory_space<vmem>>, vector<1x8x1xf32>,
    return
  }
  func.func @transform_0(%arg0: i32) -> (i32, i32, i32) {
    %c0_i32 = arith.constant 0 : i32
    %c0_i32_0 = arith.constant 0 : i32
    %c0_i32_1 = arith.constant 0 : i32
    return %arg0, %c0_i32, %c0_i32_0 : i32, i32, i32
  }
  func.func @transform_1(%arg0: i32) -> (i32, i32) {
    %c0_i32 = arith.constant 0 : i32
    %c0_i32_0 = arith.constant 0 : i32
    %c0_i32_1 = arith.constant 0 : i32
    return %c0_i32, %c0_i32_0 : i32, i32
  }
  func.func @transform_2(%arg0: i32) -> (i32, i32) {
    %c0_i32 = arith.constant 0 : i32
    %c0_i32_0 = arith.constant 0 : i32
    %c0_i32_1 = arith.constant 0 : i32
    return %c0_i32, %c0_i32_0 : i32, i32
  }
  func.func @transform_3(%arg0: i32) -> (i32, i32, i32) {
    %c0_i32 = arith.constant 0 : i32
    %c0_i32_0 = arith.constant 0 : i32
    %c0_i32_1 = arith.constant 0 : i32
    %c0_i32_2 = arith.constant 0 : i32
    return %c0_i32, %c0_i32_0, %c0_i32_1 : i32, i32, i32
  }
  func.func @transform_4(%arg0: i32) -> (i32, i32, i32) {
    %c0_i32 = arith.constant 0 : i32
    %c0_i32_0 = arith.constant 0 : i32
    %c0_i32_1 = arith.constant 0 : i32
    return %arg0, %c0_i32, %c0_i32_0 : i32, i32, i32
  }
  func.func @transform_5(%arg0: i32) -> (i32, i32, i32) {
    %c0_i32 = arith.constant 0 : i32
    %c0_i32_0 = arith.constant 0 : i32
    %c0_i32_1 = arith.constant 0 : i32
    %c0_i32_2 = arith.constant 0 : i32
    return %c0_i32, %c0_i32_0, %c0_i32_1 : i32, i32, i32
  }
  func.func @transform_6(%arg0: i32) -> (i32, i32, i32) {
    %c0_i32 = arith.constant 0 : i32
    %c0_i32_0 = arith.constant 0 : i32
    %c0_i32_1 = arith.constant 0 : i32
    %c0_i32_2 = arith.constant 0 : i32
    return %c0_i32, %c0_i32_0, %c0_i32_1 : i32, i32, i32
  }
  func.func @transform_7(%arg0: i32) -> (i32, i32, i32) {
    %c0_i32 = arith.constant 0 : i32
    %c0_i32_0 = arith.constant 0 : i32
    %c0_i32_1 = arith.constant 0 : i32
    %c0_i32_2 = arith.constant 0 : i32
    return %c0_i32, %c0_i32_0, %c0_i32_1 : i32, i32, i32
  }
  func.func @transform_8(%arg0: i32) -> (i32, i32) {
    %c0_i32 = arith.constant 0 : i32
    %c0_i32_0 = arith.constant 0 : i32
    %c0_i32_1 = arith.constant 0 : i32
    return %c0_i32, %c0_i32_0 : i32, i32
  }
  func.func @transform_9(%arg0: i32) -> (i32, i32) {
    %c0_i32 = arith.constant 0 : i32
    %c0_i32_0 = arith.constant 0 : i32
    %c0_i32_1 = arith.constant 0 : i32
    return %c0_i32, %c0_i32_0 : i32, i32
  }
  func.func @transform_10(%arg0: i32) -> (i32, i32, i32) {
    %c0_i32 = arith.constant 0 : i32
    %c0_i32_0 = arith.constant 0 : i32
    %c0_i32_1 = arith.constant 0 : i32
    %c0_i32_2 = arith.constant 0 : i32
    return %c0_i32, %c0_i32_0, %c0_i32_1 : i32, i32, i32
  }
  func.func @transform_11(%arg0: i32) -> (i32, i32, i32) {
    %c0_i32 = arith.constant 0 : i32
    %c0_i32_0 = arith.constant 0 : i32
    %c0_i32_1 = arith.constant 0 : i32
    %c0_i32_2 = arith.constant 0 : i32
    return %c0_i32, %c0_i32_0, %c0_i32_1 : i32, i32, i32
  }
  func.func @transform_12(%arg0: i32) -> (i32, i32, i32) {
    %c0_i32 = arith.constant 0 : i32
    %c0_i32_0 = arith.constant 0 : i32
    %c0_i32_1 = arith.constant 0 : i32
    %c0_i32_2 = arith.constant 0 : i32
    return %c0_i32, %c0_i32_0, %c0_i32_1 : i32, i32, i32
  }
  func.func @transform_13(%arg0: i32) -> (i32, i32, i32) {
    %c0_i32 = arith.constant 0 : i32
    %c0_i32_0 = arith.constant 0 : i32
    %c0_i32_1 = arith.constant 0 : i32
    %c0_i32_2 = arith.constant 0 : i32
    return %c0_i32, %c0_i32_0, %c0_i32_1 : i32, i32, i32
  }
  func.func @transform_14(%arg0: i32) -> (i32, i32, i32) {
    %c0_i32 = arith.constant 0 : i32
    %c0_i32_0 = arith.constant 0 : i32
    %c0_i32_1 = arith.constant 0 : i32
    %c0_i32_2 = arith.constant 0 : i32
    return %c0_i32, %c0_i32_0, %c0_i32_1 : i32, i32, i32
  }
  func.func @transform_15(%arg0: i32) -> (i32, i32, i32) {
    %c0_i32 = arith.constant 0 : i32
    %c0_i32_0 = arith.constant 0 : i32
    %c0_i32_1 = arith.constant 0 : i32
    %c0_i32_2 = arith.constant 0 : i32
    return %c0_i32, %c0_i32_0, %c0_i32_1 : i32, i32, i32
  }
  func.func @transform_16(%arg0: i32) -> (i32, i32, i32) {
    %c0_i32 = arith.constant 0 : i32
    %c0_i32_0 = arith.constant 0 : i32
    %c0_i32_1 = arith.constant 0 : i32
    %c0_i32_2 = arith.constant 0 : i32
    return %c0_i32, %c0_i32_0, %c0_i32_1 : i32, i32, i32
  }
  func.func @transform_17(%arg0: i32) -> (i32, i32, i32) {
    %c0_i32 = arith.constant 0 : i32
    %c0_i32_0 = arith.constant 0 : i32
    %c0_i32_1 = arith.constant 0 : i32
    %c0_i32_2 = arith.constant 0 : i32
    return %c0_i32, %c0_i32_0, %c0_i32_1 : i32, i32, i32
  }
  func.func @transform_18(%arg0: i32) -> (i32, i32) {
    %c0_i32 = arith.constant 0 : i32
    %c0_i32_0 = arith.constant 0 : i32
    %c0_i32_1 = arith.constant 0 : i32
    return %c0_i32, %c0_i32_0 : i32, i32
  }
  func.func @transform_19(%arg0: i32) -> (i32, i32) {
    %c0_i32 = arith.constant 0 : i32
    %c0_i32_0 = arith.constant 0 : i32
    %c0_i32_1 = arith.constant 0 : i32
    return %c0_i32, %c0_i32_0 : i32, i32
  }
  func.func @transform_20(%arg0: i32) -> (i32, i32) {
    %c0_i32 = arith.constant 0 : i32
    %c0_i32_0 = arith.constant 0 : i32
    %c0_i32_1 = arith.constant 0 : i32
    return %c0_i32, %c0_i32_0 : i32, i32
  }
  func.func @transform_21(%arg0: i32) -> (i32, i32) {
    %c0_i32 = arith.constant 0 : i32
    %c0_i32_0 = arith.constant 0 : i32
    %c0_i32_1 = arith.constant 0 : i32
    return %c0_i32, %c0_i32_0 : i32, i32
  }
  func.func @transform_22(%arg0: i32) -> (i32, i32) {
    %c0_i32 = arith.constant 0 : i32
    %c0_i32_0 = arith.constant 0 : i32
    %c0_i32_1 = arith.constant 0 : i32
    return %c0_i32, %c0_i32_0 : i32, i32
  }
  func.func @transform_23(%arg0: i32) -> (i32, i32) {
    %c0_i32 = arith.constant 0 : i32
    %c0_i32_0 = arith.constant 0 : i32
    %c0_i32_1 = arith.constant 0 : i32
    return %c0_i32, %c0_i32_0 : i32, i32
  }
  func.func @transform_24(%arg0: i32) -> (i32, i32, i32) {
    %c0_i32 = arith.constant 0 : i32
    %c0_i32_0 = arith.constant 0 : i32
    %c0_i32_1 = arith.constant 0 : i32
    return %arg0, %c0_i32, %c0_i32_0 : i32, i32, i32
  }
  func.func @transform_25(%arg0: i32) -> (i32, i32, i32, i32) {
    %c0_i32 = arith.constant 0 : i32
    %c0_i32_0 = arith.constant 0 : i32
    %c0_i32_1 = arith.constant 0 : i32
    %c0_i32_2 = arith.constant 0 : i32
    return %c0_i32, %arg0, %c0_i32_0, %c0_i32_1 : i32, i32, i32, i32
  }
}

</mosaic_0001>

<llo_original>
// kernel: mem_transformer_forward.1
$region0: #{mem_transformer_forward.1}
  #allocation0 [shape = 'u32[]', space=smem, size = 0x4, offset = 0x4, fixed_abs, tag = 'smem constant byte address 0x4 - core index']
  #allocation1 [shape = 'u32[72,128]{1,0:T(1,128)}', space=vmem, size = 0x9000, scoped, tag = 'internal scratch']
  %s0 = inlined_call_operand.vmem [shape: f32[2,8,32], index: 0, kind: input, shape index: {}]
  %s1 = inlined_call_operand.vmem [shape: bf16[8,32], index: 1, kind: input, shape index: {}]
  %s2 = inlined_call_operand.vmem [shape: f32[8,8], index: 2, kind: input, shape index: {}]
  %s3 = inlined_call_operand.vmem [shape: f32[8,8,8], index: 3, kind: input, shape index: {}]
  %s4 = inlined_call_operand.vmem [shape: s32[2,8,1], index: 4, kind: input, shape index: {}]
  %s5 = inlined_call_operand.vmem [shape: bf16[2,96,32], index: 5, kind: input, shape index: {}]
  %s6 = inlined_call_operand.vmem [shape: bf16[2,32,32], index: 6, kind: input, shape index: {}]
  %s7 = inlined_call_operand.vmem [shape: bf16[2,32,32], index: 7, kind: input, shape index: {}]
  %s8 = inlined_call_operand.vmem [shape: f32[1,32], index: 8, kind: input, shape index: {}]
  %s9 = inlined_call_operand.vmem [shape: f32[1,32], index: 9, kind: input, shape index: {}]
  %s10 = inlined_call_operand.vmem [shape: f32[2,1,32], index: 10, kind: input, shape index: {}]
  %s11 = inlined_call_operand.vmem [shape: f32[2,1,32], index: 11, kind: input, shape index: {}]
  %s12 = inlined_call_operand.vmem [shape: bf16[2,64,32], index: 12, kind: input, shape index: {}]
  %s13 = inlined_call_operand.vmem [shape: f32[2,1,64], index: 13, kind: input, shape index: {}]
  %s14 = inlined_call_operand.vmem [shape: bf16[2,32,64], index: 14, kind: input, shape index: {}]
  %s15 = inlined_call_operand.vmem [shape: f32[2,1,32], index: 15, kind: input, shape index: {}]
  %s16 = inlined_call_operand.vmem [shape: f32[2,1,32], index: 16, kind: input, shape index: {}]
  %s17 = inlined_call_operand.vmem [shape: f32[2,1,32], index: 17, kind: input, shape index: {}]
  %s18 = inlined_call_operand.vmem [shape: f32[1,32], index: 18, kind: input, shape index: {}]
  %s19 = inlined_call_operand.vmem [shape: f32[1,32], index: 19, kind: input, shape index: {}]
  %s20 = inlined_call_operand.vmem [shape: bf16[32,32], index: 20, kind: input, shape index: {}]
  %s21 = inlined_call_operand.vmem [shape: f32[1,32], index: 21, kind: input, shape index: {}]
  %s22 = inlined_call_operand.vmem [shape: bf16[256,32], index: 22, kind: input, shape index: {}]
  %s23 = inlined_call_operand.vmem [shape: f32[1,256], index: 23, kind: input, shape index: {}]
  %s24 = inlined_call_operand.vmem [shape: f32[2,8,1], index: 24, kind: output, shape index: {0}]
  %s25 = inlined_call_operand.vmem [shape: f32[2,2,8,32], index: 25, kind: output, shape index: {1}]
  %26 = xla_tuple %s24, %s25
  %s27 = sld [smem:[#allocation0]]
  $region171: #{mem_transformer_forward.1} parent=0
    _
  %s29 = ssub.s32 1, %s27
  %s30 = scalar_select 0, %s29, %s27
  $region1: #{mem_transformer_forward.1} parent=0
    #allocation2 [shape = 'u8[16384]{0}', space=vmem, size = 0x4000, scoped, tag = 'output window, operand 1']
    loop: start=0, step=1, limit=4
    $region2: #{mem_transformer_forward.1} parent=1 // loop_pre_header
      _
    $region3: #{mem_transformer_forward.1} parent=1 // loop_header
      %s32 = sphi 0, %s36
      %p33 = scmp.ge.s32.totalorder %s32, 4
      %s42 = sphi 0, %s44
      %s45 = sphi 0, %s42
      %s46 = sphi 0, %s45
      %s62 = sphi 0, %s46
      %s66 = sphi 0, %s66
      %s68 = sphi 0, %s66
      %s69 = sphi 0, %s68
      %s83 = sphi 0, %s69
      %s87 = sphi 0, %s87
      %s89 = sphi 0, %s87
      %s90 = sphi 0, %s89
      %s104 = sphi 0, %s90
      %s108 = sphi 0, %s108
      %s110 = sphi 0, %s108
      %s111 = sphi 0, %s110
      %s125 = sphi 0, %s111
      %s131 = sphi 0, %s133
      %s134 = sphi 0, %s131
      %s135 = sphi 0, %s134
      %s151 = sphi 0, %s135
      %s155 = sphi 0, %s155
      %s157 = sphi 0, %s155
      %s158 = sphi 0, %s157
      %s172 = sphi 0, %s158
      %s176 = sphi 0, %s176
      %s178 = sphi 0, %s176
      %s179 = sphi 0, %s178
      %s193 = sphi 0, %s179
      %s197 = sphi 0, %s197
      %s199 = sphi 0, %s197
      %s200 = sphi 0, %s199
      %s214 = sphi 0, %s200
      %s218 = sphi 0, %s218
      %s220 = sphi 0, %s218
      %s221 = sphi 0, %s220
      %s235 = sphi 0, %s221
      %s239 = sphi 0, %s239
      %s241 = sphi 0, %s239
      %s242 = sphi 0, %s241
      %s256 = sphi 0, %s242
      %s260 = sphi 0, %s260
      %s262 = sphi 0, %s260
      %s263 = sphi 0, %s262
      %s277 = sphi 0, %s263
      %s281 = sphi 0, %s281
      %s283 = sphi 0, %s281
      %s284 = sphi 0, %s283
      %s298 = sphi 0, %s284
      %s302 = sphi 0, %s302
      %s304 = sphi 0, %s302
      %s305 = sphi 0, %s304
      %s319 = sphi 0, %s305
      %s323 = sphi 0, %s323
      %s325 = sphi 0, %s323
      %s326 = sphi 0, %s325
      %s340 = sphi 0, %s326
      %s344 = sphi 0, %s344
      %s346 = sphi 0, %s344
      %s347 = sphi 0, %s346
      %s361 = sphi 0, %s347
      %s365 = sphi 0, %s365
      %s367 = sphi 0, %s365
      %s368 = sphi 0, %s367
      %s382 = sphi 0, %s368
      %s386 = sphi 0, %s386
      %s388 = sphi 0, %s386
      %s389 = sphi 0, %s388
      %s403 = sphi 0, %s389
      %s407 = sphi 0, %s407
      %s409 = sphi 0, %s407
      %s410 = sphi 0, %s409
      %s424 = sphi 0, %s410
      %s428 = sphi 0, %s428
      %s430 = sphi 0, %s428
      %s431 = sphi 0, %s430
      %s445 = sphi 0, %s431
      %s449 = sphi 0, %s449
      %s451 = sphi 0, %s449
      %s452 = sphi 0, %s451
      %s466 = sphi 0, %s452
      %s470 = sphi 0, %s470
      %s472 = sphi 0, %s470
      %s473 = sphi 0, %s472
      %s487 = sphi 0, %s473
      %s491 = sphi 0, %s491
      %s493 = sphi 0, %s491
      %s494 = sphi 0, %s493
      %s508 = sphi 0, %s494
      %s512 = sphi 0, %s512
      %s514 = sphi 0, %s512
      %s515 = sphi 0, %s514
      %s529 = sphi 0, %s515
      %s533 = sphi 0, %s533
      %s535 = sphi 0, %s533
      %s536 = sphi 0, %s535
      %s550 = sphi 0, %s536
      %s556 = sphi 0, %s558
      %s559 = sphi 0, %s556
      %s560 = sphi 0, %s559
      %s576 = sphi 0, %s560
      %s582 = sphi 0, %s584
      %s585 = sphi 0, %s582
      %s586 = sphi 0, %s585
      %s602 = sphi 0, %s586
    $region4: #{mem_transformer_forward.1} parent=1 // loop_header_branch
      %35 = sbr.rel (%p33) target = $region8
    $region5: #{mem_transformer_forward.1} parent=1 // loop_body
      %s37 = ssub.s32 %s32, 1
      %s38 = ssub.s32 %s32, 2
      %s39 = sadd.s32 %s32, 1
      %s40 = ssub.s32 %s32, %s39
      %p41 = scmp.eq.s32.totalorder %s40, 0
      %s43 = sadd.s32 %s42, 1
      %s44 = scalar_select %p41, %s42, %s43
      %p47 = pneg %p41
      %p48 = scmp.eq.s32.totalorder %s32, 1
      %p49 = por %p47, %p48
      %p50 = scmp.ne.s32.totalorder %s42, %s45
      %p51 = scmp.eq.s32.totalorder %s32, 0
      %p52 = por %p50, %p51
      %p53 = scmp.ne.s32.totalorder %s42, %s45
      %p54 = scmp.eq.s32.totalorder %s37, 1
      %p55 = por %p53, %p54
      %p56 = scmp.ne.s32.totalorder %s45, %s46
      %p57 = scmp.eq.s32.totalorder %s37, 0
      %p58 = por %p56, %p57
      %p59 = scmp.ne.s32.totalorder %s45, %s46
      %p60 = scmp.eq.s32.totalorder %s38, 1
      %p61 = por %p59, %p60
      %p63 = scmp.ne.s32.totalorder %s46, %s62
      %p64 = scmp.eq.s32.totalorder %s38, 0
      %p65 = por %p63, %p64
      %s67 = sadd.s32 %s66, 1
      %p70 = scmp.eq.s32.totalorder %s32, 1
      %p71 = scmp.ne.s32.totalorder %s66, %s68
      %p72 = scmp.eq.s32.totalorder %s32, 0
      %p73 = por %p71, %p72
      %p74 = scmp.ne.s32.totalorder %s66, %s68
      %p75 = scmp.eq.s32.totalorder %s37, 1
      %p76 = por %p74, %p75
      %p77 = scmp.ne.s32.totalorder %s68, %s69
      %p78 = scmp.eq.s32.totalorder %s37, 0
      %p79 = por %p77, %p78
      %p80 = scmp.ne.s32.totalorder %s68, %s69
      %p81 = scmp.eq.s32.totalorder %s38, 1
      %p82 = por %p80, %p81
      %p84 = scmp.ne.s32.totalorder %s69, %s83
      %p85 = scmp.eq.s32.totalorder %s38, 0
      %p86 = por %p84, %p85
      %s88 = sadd.s32 %s87, 1
      %p91 = scmp.eq.s32.totalorder %s32, 1
      %p92 = scmp.ne.s32.totalorder %s87, %s89
      %p93 = scmp.eq.s32.totalorder %s32, 0
      %p94 = por %p92, %p93
      %p95 = scmp.ne.s32.totalorder %s87, %s89
      %p96 = scmp.eq.s32.totalorder %s37, 1
      %p97 = por %p95, %p96
      %p98 = scmp.ne.s32.totalorder %s89, %s90
      %p99 = scmp.eq.s32.totalorder %s37, 0
      %p100 = por %p98, %p99
      %p101 = scmp.ne.s32.totalorder %s89, %s90
      %p102 = scmp.eq.s32.totalorder %s38, 1
      %p103 = por %p101, %p102
      %p105 = scmp.ne.s32.totalorder %s90, %s104
      %p106 = scmp.eq.s32.totalorder %s38, 0
      %p107 = por %p105, %p106
      %s109 = sadd.s32 %s108, 1
      %p112 = scmp.eq.s32.totalorder %s32, 1
      %p113 = scmp.ne.s32.totalorder %s108, %s110
      %p114 = scmp.eq.s32.totalorder %s32, 0
      %p115 = por %p113, %p114
      %p116 = scmp.ne.s32.totalorder %s108, %s110
      %p117 = scmp.eq.s32.totalorder %s37, 1
      %p118 = por %p116, %p117
      %p119 = scmp.ne.s32.totalorder %s110, %s111
      %p120 = scmp.eq.s32.totalorder %s37, 0
      %p121 = por %p119, %p120
      %p122 = scmp.ne.s32.totalorder %s110, %s111
      %p123 = scmp.eq.s32.totalorder %s38, 1
      %p124 = por %p122, %p123
      %p126 = scmp.ne.s32.totalorder %s111, %s125
      %p127 = scmp.eq.s32.totalorder %s38, 0
      %p128 = por %p126, %p127
      %s129 = ssub.s32 %s32, %s39
      %p130 = scmp.eq.s32.totalorder %s129, 0
      %s132 = sadd.s32 %s131, 1
      %s133 = scalar_select %p130, %s131, %s132
      %p136 = pneg %p130
      %p137 = scmp.eq.s32.totalorder %s32, 1
      %p138 = por %p136, %p137
      %p139 = scmp.ne.s32.totalorder %s131, %s134
      %p140 = scmp.eq.s32.totalorder %s32, 0
      %p141 = por %p139, %p140
      %p142 = scmp.ne.s32.totalorder %s131, %s134
      %p143 = scmp.eq.s32.totalorder %s37, 1
      %p144 = por %p142, %p143
      %p145 = scmp.ne.s32.totalorder %s134, %s135
      %p146 = scmp.eq.s32.totalorder %s37, 0
      %p147 = por %p145, %p146
      %p148 = scmp.ne.s32.totalorder %s134, %s135
      %p149 = scmp.eq.s32.totalorder %s38, 1
      %p150 = por %p148, %p149
      %p152 = scmp.ne.s32.totalorder %s135, %s151
      %p153 = scmp.eq.s32.totalorder %s38, 0
      %p154 = por %p152, %p153
      %s156 = sadd.s32 %s155, 1
      %p159 = scmp.eq.s32.totalorder %s32, 1
      %p160 = scmp.ne.s32.totalorder %s155, %s157
      %p161 = scmp.eq.s32.totalorder %s32, 0
      %p162 = por %p160, %p161
      %p163 = scmp.ne.s32.totalorder %s155, %s157
      %p164 = scmp.eq.s32.totalorder %s37, 1
      %p165 = por %p163, %p164
      %p166 = scmp.ne.s32.totalorder %s157, %s158
      %p167 = scmp.eq.s32.totalorder %s37, 0
      %p168 = por %p166, %p167
      %p169 = scmp.ne.s32.totalorder %s157, %s158
      %p170 = scmp.eq.s32.totalorder %s38, 1
      %p171 = por %p169, %p170
      %p173 = scmp.ne.s32.totalorder %s158, %s172
      %p174 = scmp.eq.s32.totalorder %s38, 0
      %p175 = por %p173, %p174
      %s177 = sadd.s32 %s176, 1
      %p180 = scmp.eq.s32.totalorder %s32, 1
      %p181 = scmp.ne.s32.totalorder %s176, %s178
      %p182 = scmp.eq.s32.totalorder %s32, 0
      %p183 = por %p181, %p182
      %p184 = scmp.ne.s32.totalorder %s176, %s178
      %p185 = scmp.eq.s32.totalorder %s37, 1
      %p186 = por %p184, %p185
      %p187 = scmp.ne.s32.totalorder %s178, %s179
      %p188 = scmp.eq.s32.totalorder %s37, 0
      %p189 = por %p187, %p188
      %p190 = scmp.ne.s32.totalorder %s178, %s179
      %p191 = scmp.eq.s32.totalorder %s38, 1
      %p192 = por %p190, %p191
      %p194 = scmp.ne.s32.totalorder %s179, %s193
      %p195 = scmp.eq.s32.totalorder %s38, 0
      %p196 = por %p194, %p195
      %s198 = sadd.s32 %s197, 1
      %p201 = scmp.eq.s32.totalorder %s32, 1
      %p202 = scmp.ne.s32.totalorder %s197, %s199
      %p203 = scmp.eq.s32.totalorder %s32, 0
      %p204 = por %p202, %p203
      %p205 = scmp.ne.s32.totalorder %s197, %s199
      %p206 = scmp.eq.s32.totalorder %s37, 1
      %p207 = por %p205, %p206
      %p208 = scmp.ne.s32.totalorder %s199, %s200
      %p209 = scmp.eq.s32.totalorder %s37, 0
      %p210 = por %p208, %p209
      %p211 = scmp.ne.s32.totalorder %s199, %s200
      %p212 = scmp.eq.s32.totalorder %s38, 1
      %p213 = por %p211, %p212
      %p215 = scmp.ne.s32.totalorder %s200, %s214
      %p216 = scmp.eq.s32.totalorder %s38, 0
      %p217 = por %p215, %p216
      %s219 = sadd.s32 %s218, 1
      %p222 = scmp.eq.s32.totalorder %s32, 1
      %p223 = scmp.ne.s32.totalorder %s218, %s220
      %p224 = scmp.eq.s32.totalorder %s32, 0
      %p225 = por %p223, %p224
      %p226 = scmp.ne.s32.totalorder %s218, %s220
      %p227 = scmp.eq.s32.totalorder %s37, 1
      %p228 = por %p226, %p227
      %p229 = scmp.ne.s32.totalorder %s220, %s221
      %p230 = scmp.eq.s32.totalorder %s37, 0
      %p231 = por %p229, %p230
      %p232 = scmp.ne.s32.totalorder %s220, %s221
      %p233 = scmp.eq.s32.totalorder %s38, 1
      %p234 = por %p232, %p233
      %p236 = scmp.ne.s32.totalorder %s221, %s235
      %p237 = scmp.eq.s32.totalorder %s38, 0
      %p238 = por %p236, %p237
      %s240 = sadd.s32 %s239, 1
      %p243 = scmp.eq.s32.totalorder %s32, 1
      %p244 = scmp.ne.s32.totalorder %s239, %s241
      %p245 = scmp.eq.s32.totalorder %s32, 0
      %p246 = por %p244, %p245
      %p247 = scmp.ne.s32.totalorder %s239, %s241
      %p248 = scmp.eq.s32.totalorder %s37, 1
      %p249 = por %p247, %p248
      %p250 = scmp.ne.s32.totalorder %s241, %s242
      %p251 = scmp.eq.s32.totalorder %s37, 0
      %p252 = por %p250, %p251
      %p253 = scmp.ne.s32.totalorder %s241, %s242
      %p254 = scmp.eq.s32.totalorder %s38, 1
      %p255 = por %p253, %p254
      %p257 = scmp.ne.s32.totalorder %s242, %s256
      %p258 = scmp.eq.s32.totalorder %s38, 0
      %p259 = por %p257, %p258
      %s261 = sadd.s32 %s260, 1
      %p264 = scmp.eq.s32.totalorder %s32, 1
      %p265 = scmp.ne.s32.totalorder %s260, %s262
      %p266 = scmp.eq.s32.totalorder %s32, 0
      %p267 = por %p265, %p266
      %p268 = scmp.ne.s32.totalorder %s260, %s262
      %p269 = scmp.eq.s32.totalorder %s37, 1
      %p270 = por %p268, %p269
      %p271 = scmp.ne.s32.totalorder %s262, %s263
      %p272 = scmp.eq.s32.totalorder %s37, 0
      %p273 = por %p271, %p272
      %p274 = scmp.ne.s32.totalorder %s262, %s263
      %p275 = scmp.eq.s32.totalorder %s38, 1
      %p276 = por %p274, %p275
      %p278 = scmp.ne.s32.totalorder %s263, %s277
      %p279 = scmp.eq.s32.totalorder %s38, 0
      %p280 = por %p278, %p279
      %s282 = sadd.s32 %s281, 1
      %p285 = scmp.eq.s32.totalorder %s32, 1
      %p286 = scmp.ne.s32.totalorder %s281, %s283
      %p287 = scmp.eq.s32.totalorder %s32, 0
      %p288 = por %p286, %p287
      %p289 = scmp.ne.s32.totalorder %s281, %s283
      %p290 = scmp.eq.s32.totalorder %s37, 1
      %p291 = por %p289, %p290
      %p292 = scmp.ne.s32.totalorder %s283, %s284
      %p293 = scmp.eq.s32.totalorder %s37, 0
      %p294 = por %p292, %p293
      %p295 = scmp.ne.s32.totalorder %s283, %s284
      %p296 = scmp.eq.s32.totalorder %s38, 1
      %p297 = por %p295, %p296
      %p299 = scmp.ne.s32.totalorder %s284, %s298
      %p300 = scmp.eq.s32.totalorder %s38, 0
      %p301 = por %p299, %p300
      %s303 = sadd.s32 %s302, 1
      %p306 = scmp.eq.s32.totalorder %s32, 1
      %p307 = scmp.ne.s32.totalorder %s302, %s304
      %p308 = scmp.eq.s32.totalorder %s32, 0
      %p309 = por %p307, %p308
      %p310 = scmp.ne.s32.totalorder %s302, %s304
      %p311 = scmp.eq.s32.totalorder %s37, 1
      %p312 = por %p310, %p311
      %p313 = scmp.ne.s32.totalorder %s304, %s305
      %p314 = scmp.eq.s32.totalorder %s37, 0
      %p315 = por %p313, %p314
      %p316 = scmp.ne.s32.totalorder %s304, %s305
      %p317 = scmp.eq.s32.totalorder %s38, 1
      %p318 = por %p316, %p317
      %p320 = scmp.ne.s32.totalorder %s305, %s319
      %p321 = scmp.eq.s32.totalorder %s38, 0
      %p322 = por %p320, %p321
      %s324 = sadd.s32 %s323, 1
      %p327 = scmp.eq.s32.totalorder %s32, 1
      %p328 = scmp.ne.s32.totalorder %s323, %s325
      %p329 = scmp.eq.s32.totalorder %s32, 0
      %p330 = por %p328, %p329
      %p331 = scmp.ne.s32.totalorder %s323, %s325
      %p332 = scmp.eq.s32.totalorder %s37, 1
      %p333 = por %p331, %p332
      %p334 = scmp.ne.s32.totalorder %s325, %s326
      %p335 = scmp.eq.s32.totalorder %s37, 0
      %p336 = por %p334, %p335
      %p337 = scmp.ne.s32.totalorder %s325, %s326
      %p338 = scmp.eq.s32.totalorder %s38, 1
      %p339 = por %p337, %p338
      %p341 = scmp.ne.s32.totalorder %s326, %s340
      %p342 = scmp.eq.s32.totalorder %s38, 0
      %p343 = por %p341, %p342
      %s345 = sadd.s32 %s344, 1
      %p348 = scmp.eq.s32.totalorder %s32, 1
      %p349 = scmp.ne.s32.totalorder %s344, %s346
      %p350 = scmp.eq.s32.totalorder %s32, 0
      %p351 = por %p349, %p350
      %p352 = scmp.ne.s32.totalorder %s344, %s346
      %p353 = scmp.eq.s32.totalorder %s37, 1
      %p354 = por %p352, %p353
      %p355 = scmp.ne.s32.totalorder %s346, %s347
      %p356 = scmp.eq.s32.totalorder %s37, 0
      %p357 = por %p355, %p356
      %p358 = scmp.ne.s32.totalorder %s346, %s347
      %p359 = scmp.eq.s32.totalorder %s38, 1
      %p360 = por %p358, %p359
      %p362 = scmp.ne.s32.totalorder %s347, %s361
      %p363 = scmp.eq.s32.totalorder %s38, 0
      %p364 = por %p362, %p363
      %s366 = sadd.s32 %s365, 1
      %p369 = scmp.eq.s32.totalorder %s32, 1
      %p370 = scmp.ne.s32.totalorder %s365, %s367
      %p371 = scmp.eq.s32.totalorder %s32, 0
      %p372 = por %p370, %p371
      %p373 = scmp.ne.s32.totalorder %s365, %s367
      %p374 = scmp.eq.s32.totalorder %s37, 1
      %p375 = por %p373, %p374
      %p376 = scmp.ne.s32.totalorder %s367, %s368
      %p377 = scmp.eq.s32.totalorder %s37, 0
      %p378 = por %p376, %p377
      %p379 = scmp.ne.s32.totalorder %s367, %s368
      %p380 = scmp.eq.s32.totalorder %s38, 1
      %p381 = por %p379, %p380
      %p383 = scmp.ne.s32.totalorder %s368, %s382
      %p384 = scmp.eq.s32.totalorder %s38, 0
      %p385 = por %p383, %p384
      %s387 = sadd.s32 %s386, 1
      %p390 = scmp.eq.s32.totalorder %s32, 1
      %p391 = scmp.ne.s32.totalorder %s386, %s388
      %p392 = scmp.eq.s32.totalorder %s32, 0
      %p393 = por %p391, %p392
      %p394 = scmp.ne.s32.totalorder %s386, %s388
      %p395 = scmp.eq.s32.totalorder %s37, 1
      %p396 = por %p394, %p395
      %p397 = scmp.ne.s32.totalorder %s388, %s389
      %p398 = scmp.eq.s32.totalorder %s37, 0
      %p399 = por %p397, %p398
      %p400 = scmp.ne.s32.totalorder %s388, %s389
      %p401 = scmp.eq.s32.totalorder %s38, 1
      %p402 = por %p400, %p401
      %p404 = scmp.ne.s32.totalorder %s389, %s403
      %p405 = scmp.eq.s32.totalorder %s38, 0
      %p406 = por %p404, %p405
      %s408 = sadd.s32 %s407, 1
      %p411 = scmp.eq.s32.totalorder %s32, 1
      %p412 = scmp.ne.s32.totalorder %s407, %s409
      %p413 = scmp.eq.s32.totalorder %s32, 0
      %p414 = por %p412, %p413
      %p415 = scmp.ne.s32.totalorder %s407, %s409
      %p416 = scmp.eq.s32.totalorder %s37, 1
      %p417 = por %p415, %p416
      %p418 = scmp.ne.s32.totalorder %s409, %s410
      %p419 = scmp.eq.s32.totalorder %s37, 0
      %p420 = por %p418, %p419
      %p421 = scmp.ne.s32.totalorder %s409, %s410
      %p422 = scmp.eq.s32.totalorder %s38, 1
      %p423 = por %p421, %p422
      %p425 = scmp.ne.s32.totalorder %s410, %s424
      %p426 = scmp.eq.s32.totalorder %s38, 0
      %p427 = por %p425, %p426
      %s429 = sadd.s32 %s428, 1
      %p432 = scmp.eq.s32.totalorder %s32, 1
      %p433 = scmp.ne.s32.totalorder %s428, %s430
      %p434 = scmp.eq.s32.totalorder %s32, 0
      %p435 = por %p433, %p434
      %p436 = scmp.ne.s32.totalorder %s428, %s430
      %p437 = scmp.eq.s32.totalorder %s37, 1
      %p438 = por %p436, %p437
      %p439 = scmp.ne.s32.totalorder %s430, %s431
      %p440 = scmp.eq.s32.totalorder %s37, 0
      %p441 = por %p439, %p440
      %p442 = scmp.ne.s32.totalorder %s430, %s431
      %p443 = scmp.eq.s32.totalorder %s38, 1
      %p444 = por %p442, %p443
      %p446 = scmp.ne.s32.totalorder %s431, %s445
      %p447 = scmp.eq.s32.totalorder %s38, 0
      %p448 = por %p446, %p447
      %s450 = sadd.s32 %s449, 1
      %p453 = scmp.eq.s32.totalorder %s32, 1
      %p454 = scmp.ne.s32.totalorder %s449, %s451
      %p455 = scmp.eq.s32.totalorder %s32, 0
      %p456 = por %p454, %p455
      %p457 = scmp.ne.s32.totalorder %s449, %s451
      %p458 = scmp.eq.s32.totalorder %s37, 1
      %p459 = por %p457, %p458
      %p460 = scmp.ne.s32.totalorder %s451, %s452
      %p461 = scmp.eq.s32.totalorder %s37, 0
      %p462 = por %p460, %p461
      %p463 = scmp.ne.s32.totalorder %s451, %s452
      %p464 = scmp.eq.s32.totalorder %s38, 1
      %p465 = por %p463, %p464
      %p467 = scmp.ne.s32.totalorder %s452, %s466
      %p468 = scmp.eq.s32.totalorder %s38, 0
      %p469 = por %p467, %p468
      %s471 = sadd.s32 %s470, 1
      %p474 = scmp.eq.s32.totalorder %s32, 1
      %p475 = scmp.ne.s32.totalorder %s470, %s472
      %p476 = scmp.eq.s32.totalorder %s32, 0
      %p477 = por %p475, %p476
      %p478 = scmp.ne.s32.totalorder %s470, %s472
      %p479 = scmp.eq.s32.totalorder %s37, 1
      %p480 = por %p478, %p479
      %p481 = scmp.ne.s32.totalorder %s472, %s473
      %p482 = scmp.eq.s32.totalorder %s37, 0
      %p483 = por %p481, %p482
      %p484 = scmp.ne.s32.totalorder %s472, %s473
      %p485 = scmp.eq.s32.totalorder %s38, 1
      %p486 = por %p484, %p485
      %p488 = scmp.ne.s32.totalorder %s473, %s487
      %p489 = scmp.eq.s32.totalorder %s38, 0
      %p490 = por %p488, %p489
      %s492 = sadd.s32 %s491, 1
      %p495 = scmp.eq.s32.totalorder %s32, 1
      %p496 = scmp.ne.s32.totalorder %s491, %s493
      %p497 = scmp.eq.s32.totalorder %s32, 0
      %p498 = por %p496, %p497
      %p499 = scmp.ne.s32.totalorder %s491, %s493
      %p500 = scmp.eq.s32.totalorder %s37, 1
      %p501 = por %p499, %p500
      %p502 = scmp.ne.s32.totalorder %s493, %s494
      %p503 = scmp.eq.s32.totalorder %s37, 0
      %p504 = por %p502, %p503
      %p505 = scmp.ne.s32.totalorder %s493, %s494
      %p506 = scmp.eq.s32.totalorder %s38, 1
      %p507 = por %p505, %p506
      %p509 = scmp.ne.s32.totalorder %s494, %s508
      %p510 = scmp.eq.s32.totalorder %s38, 0
      %p511 = por %p509, %p510
      %s513 = sadd.s32 %s512, 1
      %p516 = scmp.eq.s32.totalorder %s32, 1
      %p517 = scmp.ne.s32.totalorder %s512, %s514
      %p518 = scmp.eq.s32.totalorder %s32, 0
      %p519 = por %p517, %p518
      %p520 = scmp.ne.s32.totalorder %s512, %s514
      %p521 = scmp.eq.s32.totalorder %s37, 1
      %p522 = por %p520, %p521
      %p523 = scmp.ne.s32.totalorder %s514, %s515
      %p524 = scmp.eq.s32.totalorder %s37, 0
      %p525 = por %p523, %p524
      %p526 = scmp.ne.s32.totalorder %s514, %s515
      %p527 = scmp.eq.s32.totalorder %s38, 1
      %p528 = por %p526, %p527
      %p530 = scmp.ne.s32.totalorder %s515, %s529
      %p531 = scmp.eq.s32.totalorder %s38, 0
      %p532 = por %p530, %p531
      %s534 = sadd.s32 %s533, 1
      %p537 = scmp.eq.s32.totalorder %s32, 1
      %p538 = scmp.ne.s32.totalorder %s533, %s535
      %p539 = scmp.eq.s32.totalorder %s32, 0
      %p540 = por %p538, %p539
      %p541 = scmp.ne.s32.totalorder %s533, %s535
      %p542 = scmp.eq.s32.totalorder %s37, 1
      %p543 = por %p541, %p542
      %p544 = scmp.ne.s32.totalorder %s535, %s536
      %p545 = scmp.eq.s32.totalorder %s37, 0
      %p546 = por %p544, %p545
      %p547 = scmp.ne.s32.totalorder %s535, %s536
      %p548 = scmp.eq.s32.totalorder %s38, 1
      %p549 = por %p547, %p548
      %p551 = scmp.ne.s32.totalorder %s536, %s550
      %p552 = scmp.eq.s32.totalorder %s38, 0
      %p553 = por %p551, %p552
      %s554 = ssub.s32 %s32, %s39
      %p555 = scmp.eq.s32.totalorder %s554, 0
      %s557 = sadd.s32 %s556, 1
      %s558 = scalar_select %p555, %s556, %s557
      %p561 = pneg %p555
      %p562 = scmp.eq.s32.totalorder %s32, 1
      %p563 = por %p561, %p562
      %p564 = scmp.ne.s32.totalorder %s556, %s559
      %p565 = scmp.eq.s32.totalorder %s32, 0
      %p566 = por %p564, %p565
      %p567 = scmp.ne.s32.totalorder %s556, %s559
      %p568 = scmp.eq.s32.totalorder %s37, 1
      %p569 = por %p567, %p568
      %p570 = scmp.ne.s32.totalorder %s559, %s560
      %p571 = scmp.eq.s32.totalorder %s37, 0
      %p572 = por %p570, %p571
      %p573 = scmp.ne.s32.totalorder %s559, %s560
      %p574 = scmp.eq.s32.totalorder %s38, 1
      %p575 = por %p573, %p574
      %p577 = scmp.ne.s32.totalorder %s560, %s576
      %p578 = scmp.eq.s32.totalorder %s38, 0
      %p579 = por %p577, %p578
      %s580 = ssub.s32 %s32, %s39
      %p581 = scmp.eq.s32.totalorder %s580, 0
      %s583 = sadd.s32 %s582, 1
      %s584 = scalar_select %p581, %s582, %s583
      %p587 = pneg %p581
      %p588 = scmp.eq.s32.totalorder %s32, 1
      %p589 = por %p587, %p588
      %p590 = scmp.ne.s32.totalorder %s582, %s585
      %p591 = scmp.eq.s32.totalorder %s32, 0
      %p592 = por %p590, %p591
      %p593 = scmp.ne.s32.totalorder %s582, %s585
      %p594 = scmp.eq.s32.totalorder %s37, 1
      %p595 = por %p593, %p594
      %p596 = scmp.ne.s32.totalorder %s585, %s586
      %p597 = scmp.eq.s32.totalorder %s37, 0
      %p598 = por %p596, %p597
      %p599 = scmp.ne.s32.totalorder %s585, %s586
      %p600 = scmp.eq.s32.totalorder %s38, 1
      %p601 = por %p599, %p600
      %p603 = scmp.ne.s32.totalorder %s586, %s602
      %p604 = scmp.eq.s32.totalorder %s38, 0
      %p605 = por %p603, %p604
      %p606 = scmp.le.s32.totalorder 1, %s32
      %p607 = scmp.lt.s32.totalorder %s32, 3
      %p608 = pnand %p606, %p607
      %p609 = pneg %p608
      // Predicated region
      $region9: #{mem_transformer_forward.1} parent=5 // pred_check
        _
      $region10: #{mem_transformer_forward.1} parent=5 // pred_check_branch
        %611 = sbr.rel (%p608) target = $region12
      $region11: #{mem_transformer_forward.1} parent=5 // pred_region
        %s612 = ssub.s32 %s32, 1
        // Predicated region
        $region13: #{mem_transformer_forward.1} parent=11 // pred_check
          %p613 = pneg %p79
        $region14: #{mem_transformer_forward.1} parent=11 // pred_check_branch
          %615 = sbr.rel (%p613) target = $region16
        $region15: #{mem_transformer_forward.1} parent=11 // pred_region
          _
        $region16: #{mem_transformer_forward.1} parent=11 // pred_fallthru
          _
        // Predicated region
        $region17: #{mem_transformer_forward.1} parent=11 // pred_check
          %p616 = pneg %p100
        $region18: #{mem_transformer_forward.1} parent=11 // pred_check_branch
          %618 = sbr.rel (%p616) target = $region20
        $region19: #{mem_transformer_forward.1} parent=11 // pred_region
          _
        $region20: #{mem_transformer_forward.1} parent=11 // pred_fallthru
          _
        // Predicated region
        $region21: #{mem_transformer_forward.1} parent=11 // pred_check
          %p619 = pneg %p121
        $region22: #{mem_transformer_forward.1} parent=11 // pred_check_branch
          %621 = sbr.rel (%p619) target = $region24
        $region23: #{mem_transformer_forward.1} parent=11 // pred_region
          _
        $region24: #{mem_transformer_forward.1} parent=11 // pred_fallthru
          _
        // Predicated region
        $region25: #{mem_transformer_forward.1} parent=11 // pred_check
          %p622 = pneg %p168
        $region26: #{mem_transformer_forward.1} parent=11 // pred_check_branch
          %624 = sbr.rel (%p622) target = $region28
        $region27: #{mem_transformer_forward.1} parent=11 // pred_region
          _
        $region28: #{mem_transformer_forward.1} parent=11 // pred_fallthru
          _
        // Predicated region
        $region29: #{mem_transformer_forward.1} parent=11 // pred_check
          %p625 = pneg %p189
        $region30: #{mem_transformer_forward.1} parent=11 // pred_check_branch
          %627 = sbr.rel (%p625) target = $region32
        $region31: #{mem_transformer_forward.1} parent=11 // pred_region
          _
        $region32: #{mem_transformer_forward.1} parent=11 // pred_fallthru
          _
        // Predicated region
        $region33: #{mem_transformer_forward.1} parent=11 // pred_check
          %p628 = pneg %p210
        $region34: #{mem_transformer_forward.1} parent=11 // pred_check_branch
          %630 = sbr.rel (%p628) target = $region36
        $region35: #{mem_transformer_forward.1} parent=11 // pred_region
          _
        $region36: #{mem_transformer_forward.1} parent=11 // pred_fallthru
          _
        // Predicated region
        $region37: #{mem_transformer_forward.1} parent=11 // pred_check
          %p631 = pneg %p231
        $region38: #{mem_transformer_forward.1} parent=11 // pred_check_branch
          %633 = sbr.rel (%p631) target = $region40
        $region39: #{mem_transformer_forward.1} parent=11 // pred_region
          _
        $region40: #{mem_transformer_forward.1} parent=11 // pred_fallthru
          _
        // Predicated region
        $region41: #{mem_transformer_forward.1} parent=11 // pred_check
          %p634 = pneg %p252
        $region42: #{mem_transformer_forward.1} parent=11 // pred_check_branch
          %636 = sbr.rel (%p634) target = $region44
        $region43: #{mem_transformer_forward.1} parent=11 // pred_region
          _
        $region44: #{mem_transformer_forward.1} parent=11 // pred_fallthru
          _
        // Predicated region
        $region45: #{mem_transformer_forward.1} parent=11 // pred_check
          %p637 = pneg %p273
        $region46: #{mem_transformer_forward.1} parent=11 // pred_check_branch
          %639 = sbr.rel (%p637) target = $region48
        $region47: #{mem_transformer_forward.1} parent=11 // pred_region
          _
        $region48: #{mem_transformer_forward.1} parent=11 // pred_fallthru
          _
        // Predicated region
        $region49: #{mem_transformer_forward.1} parent=11 // pred_check
          %p640 = pneg %p294
        $region50: #{mem_transformer_forward.1} parent=11 // pred_check_branch
          %642 = sbr.rel (%p640) target = $region52
        $region51: #{mem_transformer_forward.1} parent=11 // pred_region
          _
        $region52: #{mem_transformer_forward.1} parent=11 // pred_fallthru
          _
        // Predicated region
        $region53: #{mem_transformer_forward.1} parent=11 // pred_check
          %p643 = pneg %p315
        $region54: #{mem_transformer_forward.1} parent=11 // pred_check_branch
          %645 = sbr.rel (%p643) target = $region56
        $region55: #{mem_transformer_forward.1} parent=11 // pred_region
          _
        $region56: #{mem_transformer_forward.1} parent=11 // pred_fallthru
          _
        // Predicated region
        $region57: #{mem_transformer_forward.1} parent=11 // pred_check
          %p646 = pneg %p336
        $region58: #{mem_transformer_forward.1} parent=11 // pred_check_branch
          %648 = sbr.rel (%p646) target = $region60
        $region59: #{mem_transformer_forward.1} parent=11 // pred_region
          _
        $region60: #{mem_transformer_forward.1} parent=11 // pred_fallthru
          _
        // Predicated region
        $region61: #{mem_transformer_forward.1} parent=11 // pred_check
          %p649 = pneg %p357
        $region62: #{mem_transformer_forward.1} parent=11 // pred_check_branch
          %651 = sbr.rel (%p649) target = $region64
        $region63: #{mem_transformer_forward.1} parent=11 // pred_region
          _
        $region64: #{mem_transformer_forward.1} parent=11 // pred_fallthru
          _
        // Predicated region
        $region65: #{mem_transformer_forward.1} parent=11 // pred_check
          %p652 = pneg %p378
        $region66: #{mem_transformer_forward.1} parent=11 // pred_check_branch
          %654 = sbr.rel (%p652) target = $region68
        $region67: #{mem_transformer_forward.1} parent=11 // pred_region
          _
        $region68: #{mem_transformer_forward.1} parent=11 // pred_fallthru
          _
        // Predicated region
        $region69: #{mem_transformer_forward.1} parent=11 // pred_check
          %p655 = pneg %p399
        $region70: #{mem_transformer_forward.1} parent=11 // pred_check_branch
          %657 = sbr.rel (%p655) target = $region72
        $region71: #{mem_transformer_forward.1} parent=11 // pred_region
          _
        $region72: #{mem_transformer_forward.1} parent=11 // pred_fallthru
          _
        // Predicated region
        $region73: #{mem_transformer_forward.1} parent=11 // pred_check
          %p658 = pneg %p420
        $region74: #{mem_transformer_forward.1} parent=11 // pred_check_branch
          %660 = sbr.rel (%p658) target = $region76
        $region75: #{mem_transformer_forward.1} parent=11 // pred_region
          _
        $region76: #{mem_transformer_forward.1} parent=11 // pred_fallthru
          _
        // Predicated region
        $region77: #{mem_transformer_forward.1} parent=11 // pred_check
          %p661 = pneg %p441
        $region78: #{mem_transformer_forward.1} parent=11 // pred_check_branch
          %663 = sbr.rel (%p661) target = $region80
        $region79: #{mem_transformer_forward.1} parent=11 // pred_region
          _
        $region80: #{mem_transformer_forward.1} parent=11 // pred_fallthru
          _
        // Predicated region
        $region81: #{mem_transformer_forward.1} parent=11 // pred_check
          %p664 = pneg %p462
        $region82: #{mem_transformer_forward.1} parent=11 // pred_check_branch
          %666 = sbr.rel (%p664) target = $region84
        $region83: #{mem_transformer_forward.1} parent=11 // pred_region
          _
        $region84: #{mem_transformer_forward.1} parent=11 // pred_fallthru
          _
        // Predicated region
        $region85: #{mem_transformer_forward.1} parent=11 // pred_check
          %p667 = pneg %p483
        $region86: #{mem_transformer_forward.1} parent=11 // pred_check_branch
          %669 = sbr.rel (%p667) target = $region88
        $region87: #{mem_transformer_forward.1} parent=11 // pred_region
          _
        $region88: #{mem_transformer_forward.1} parent=11 // pred_fallthru
          _
        // Predicated region
        $region89: #{mem_transformer_forward.1} parent=11 // pred_check
          %p670 = pneg %p504
        $region90: #{mem_transformer_forward.1} parent=11 // pred_check_branch
          %672 = sbr.rel (%p670) target = $region92
        $region91: #{mem_transformer_forward.1} parent=11 // pred_region
          _
        $region92: #{mem_transformer_forward.1} parent=11 // pred_fallthru
          _
        // Predicated region
        $region93: #{mem_transformer_forward.1} parent=11 // pred_check
          %p673 = pneg %p525
        $region94: #{mem_transformer_forward.1} parent=11 // pred_check_branch
          %675 = sbr.rel (%p673) target = $region96
        $region95: #{mem_transformer_forward.1} parent=11 // pred_region
          _
        $region96: #{mem_transformer_forward.1} parent=11 // pred_fallthru
          _
        // Predicated region
        $region97: #{mem_transformer_forward.1} parent=11 // pred_check
          %p676 = pneg %p546
        $region98: #{mem_transformer_forward.1} parent=11 // pred_check_branch
          %678 = sbr.rel (%p676) target = $region100
        $region99: #{mem_transformer_forward.1} parent=11 // pred_region
          _
        $region100: #{mem_transformer_forward.1} parent=11 // pred_fallthru
          _
      $region12: #{mem_transformer_forward.1} parent=5 // pred_fallthru
        _
      %p679 = scmp.lt.s32.totalorder %s32, 2
      // Predicated region
      $region101: #{mem_transformer_forward.1} parent=5 // pred_check
        %p680 = pneg %p679
      $region102: #{mem_transformer_forward.1} parent=5 // pred_check_branch
        %682 = sbr.rel (%p680) target = $region104
      $region103: #{mem_transformer_forward.1} parent=5 // pred_region
        // Predicated region
        $region105: #{mem_transformer_forward.1} parent=103 // pred_check
          %p683 = pneg %p52
        $region106: #{mem_transformer_forward.1} parent=103 // pred_check_branch
          %685 = sbr.rel (%p683) target = $region108
        $region107: #{mem_transformer_forward.1} parent=103 // pred_region
          %p686 = scmp.lt.s32.totalorder %s32, 1
          %s687 = scalar_select %p686, %s32, 1
          %s688 = smul.addr %s687, 8
          %s689 = scalar_lea.vmem %s0, %s688
        $region108: #{mem_transformer_forward.1} parent=103 // pred_fallthru
          _
        // Predicated region
        $region109: #{mem_transformer_forward.1} parent=103 // pred_check
          %p690 = pneg %p141
        $region110: #{mem_transformer_forward.1} parent=103 // pred_check_branch
          %692 = sbr.rel (%p690) target = $region112
        $region111: #{mem_transformer_forward.1} parent=103 // pred_region
          %p693 = scmp.lt.s32.totalorder %s32, 1
          %s694 = scalar_select %p693, %s32, 1
          %s695 = smul.addr %s694, 8
          %s696 = scalar_lea.vmem %s4, %s695
        $region112: #{mem_transformer_forward.1} parent=103 // pred_fallthru
          _
      $region104: #{mem_transformer_forward.1} parent=5 // pred_fallthru
        _
      %p697 = scmp.le.s32.totalorder 1, %s32
      %p698 = scmp.lt.s32.totalorder %s32, 3
      %p699 = pnand %p697, %p698
      %p700 = pneg %p699
      // Predicated region
      $region113: #{mem_transformer_forward.1} parent=5 // pred_check
        _
      $region114: #{mem_transformer_forward.1} parent=5 // pred_check_branch
        %702 = sbr.rel (%p699) target = $region116
      $region115: #{mem_transformer_forward.1} parent=5 // pred_region
        %s703 = ssub.s32 %s32, 1
        %p704 = scmp.lt.s32.totalorder %s37, 1
        %s705 = scalar_select %p704, %s37, 1
        %s706 = smul.addr %s705, 8
        %s707 = scalar_lea.vmem %s0, %s706
        %p708 = pneg %p58
        %p709 = pneg %p55
        %p710 = pneg %p79
        %p711 = pneg %p76
        %p712 = pneg %p100
        %p713 = pneg %p97
        %p714 = pneg %p121
        %p715 = pneg %p118
        %p716 = scmp.lt.s32.totalorder %s37, 1
        %s717 = scalar_select %p716, %s37, 1
        %s718 = smul.addr %s717, 8
        %s719 = scalar_lea.vmem %s4, %s718
        %p720 = pneg %p147
        %p721 = pneg %p144
        %p722 = pneg %p168
        %p723 = pneg %p165
        %p724 = pneg %p189
        %p725 = pneg %p186
        %p726 = pneg %p210
        %p727 = pneg %p207
        %p728 = pneg %p231
        %p729 = pneg %p228
        %p730 = pneg %p252
        %p731 = pneg %p249
        %p732 = pneg %p273
        %p733 = pneg %p270
        %p734 = pneg %p294
        %p735 = pneg %p291
        %p736 = pneg %p315
        %p737 = pneg %p312
        %p738 = pneg %p336
        %p739 = pneg %p333
        %p740 = pneg %p357
        %p741 = pneg %p354
        %p742 = pneg %p378
        %p743 = pneg %p375
        %p744 = pneg %p399
        %p745 = pneg %p396
        %p746 = pneg %p420
        %p747 = pneg %p417
        %p748 = pneg %p441
        %p749 = pneg %p438
        %p750 = pneg %p462
        %p751 = pneg %p459
        %p752 = pneg %p483
        %p753 = pneg %p480
        %p754 = pneg %p504
        %p755 = pneg %p501
        %p756 = pneg %p525
        %p757 = pneg %p522
        %p758 = pneg %p546
        %p759 = pneg %p543
        %p760 = pneg %p572
        %p761 = pneg %p569
        %p762 = scmp.lt.s32.totalorder %s37, 1
        %s763 = scalar_select %p762, %s37, 1
        %s764 = smul.addr %s763, 8
        %s765 = scalar_lea.vmem %s24, %s764
        %p766 = pneg %p598
        %p767 = pneg %p595
        %s768 = sand.u32 %s585, 1
        %s769 = sand.u32 %s585, 1
        %s770 = smul.addr %s769, 16
        %s771 = scalar_lea.vmem [#allocation2], %s770
        %p772 = scmp.lt.s32.totalorder %s37, 1
        %s773 = scalar_select %p772, %s37, 1
        %s774 = smul.addr %s773, 8
        %s775 = scalar_lea.vmem %s0, %s774
        %p776 = scmp.lt.s32.totalorder %s37, 1
        %s777 = scalar_select %p776, %s37, 1
        %s778 = smul.addr %s777, 8
        %s779 = scalar_lea.vmem %s4, %s778
        %p780 = scmp.lt.s32.totalorder %s37, 1
        %s781 = scalar_select %p780, %s37, 1
        %s782 = smul.addr %s781, 8
        %s783 = scalar_lea.vmem %s24, %s782
        %v785 = vld [vmem:[%s775] sm:$0xff]
        %v786 = vld [vmem:[%s1] sm:$0xf]
        %v787 = vld [vmem:[%s2] sm:$0xff]
        %v788 = vld [vmem:[%s3] sm:$0xff]
        %v789 = vld [vmem:[%s3 + $0x8] sm:$0xff]
        %v790 = vld [vmem:[%s3 + $0x10] sm:$0xff]
        %v791 = vld [vmem:[%s3 + $0x18] sm:$0xff]
        %v792 = vld [vmem:[%s3 + $0x20] sm:$0xff]
        %v793 = vld [vmem:[%s3 + $0x28] sm:$0xff]
        %v794 = vld [vmem:[%s3 + $0x30] sm:$0xff]
        %v795 = vld [vmem:[%s3 + $0x38] sm:$0xff]
        %v796 = vld [vmem:[%s8] sm:$0x1]
        %v797 = vld [vmem:[%s9] sm:$0x1]
        %v798 = vpack.c.bf16 %v785, %v785
        %v799 = vld [vmem:[%s5] sm:$0xf]
        %v800 = vld [vmem:[%s5 + $0x4] sm:$0xf]
        %v801 = vld [vmem:[%s5 + $0x8] sm:$0xf]
        %v802 = vld [vmem:[%s5 + $0xc] sm:$0xf]
        %v803 = vld [vmem:[%s5 + $0x10] sm:$0xf]
        %v804 = vld [vmem:[%s5 + $0x14] sm:$0xf]
        %v805 = vld [vmem:[%s5 + $0x18] sm:$0xf]
        %v806 = vld [vmem:[%s5 + $0x1c] sm:$0xf]
        %v807 = vld [vmem:[%s5 + $0x20] sm:$0xf]
        %v808 = vld [vmem:[%s5 + $0x24] sm:$0xf]
        %v809 = vld [vmem:[%s5 + $0x28] sm:$0xf]
        %v810 = vld [vmem:[%s5 + $0x2c] sm:$0xf]
        %v823 = vunpack.c.l.b16 %v799
        %v824 = vunpack.c.l.b16 %v800
        %v825 = vunpack.c.l.b16 %v801
        %v826 = vunpack.c.l.b16 %v802
        %v827 = vunpack.c.l.b16 %v803
        %v828 = vunpack.c.l.b16 %v804
        %v829 = vunpack.c.l.b16 %v805
        %v830 = vunpack.c.l.b16 %v806
        %v831 = vunpack.c.l.b16 %v807
        %v832 = vunpack.c.l.b16 %v808
        %v833 = vunpack.c.l.b16 %v809
        %v834 = vunpack.c.l.b16 %v810
        %v835 = vpack.c.b16 %v824, %v823
        %v836 = vpack.c.b16 %v826, %v825
        %v837 = vpack.c.b16 %v828, %v827
        %v838 = vpack.c.b16 %v830, %v829
        %v839 = vpack.c.b16 %v832, %v831
        %v840 = vpack.c.b16 %v834, %v833
        %vm841 = vcmask 261120
        %v843 = vsel %vm841, %v798, 0
        %v846 = vsel %vm841, %v835, 0
        %v849 = vsel %vm841, %v836, 0
        %v852 = vsel %vm841, %v837, 0
        %v855 = vsel %vm841, %v838, 0
        %v858 = vsel %vm841, %v839, 0
        %v861 = vsel %vm841, %v840, 0
        %863 = vmatpush.bf16.xpose.msra.mxu0 0
        %864 = vmatpush.bf16.xpose.msra.mxu0 0
        %865 = vmatpush.bf16.xpose.msra.mxu0 %v861
        %866 = vmatpush.bf16.xpose.msra.mxu0 %v858
        %867 = vmatpush.bf16.xpose.msra.mxu0 %v855
        %868 = vmatpush.bf16.xpose.msra.mxu0 %v852
        %869 = vmatpush.bf16.xpose.msra.mxu0 %v849
        %870 = vmatpush.bf16.xpose.msra.mxu0 %v846
        %871 = vmatmul.bf16.gmra.mxu0 %v843
        %v872 = vpop.f32.mrf.mxu0
        %v873 = vadd.f32 0.0, %v872
        %v874 = vpop.f32.mrf.mxu0
        %875 = vdwg.mxu0
        %v876 = vld [vmem:[%s6] sm:$0xf]
        %v877 = vld [vmem:[%s6 + $0x4] sm:$0xf]
        %v878 = vld [vmem:[%s6 + $0x8] sm:$0xf]
        %v879 = vld [vmem:[%s6 + $0xc] sm:$0xf]
        %v884 = vunpack.c.l.b16 %v876
        %v885 = vunpack.c.l.b16 %v877
        %v886 = vunpack.c.l.b16 %v878
        %v887 = vunpack.c.l.b16 %v879
        %v888 = vpack.c.b16 %v885, %v884
        %v889 = vpack.c.b16 %v887, %v886
        %v891 = vsel %vm841, %v786, 0
        %v894 = vsel %vm841, %v888, 0
        %v897 = vsel %vm841, %v889, 0
        %899 = vmatpush.bf16.xpose.msra.mxu0 0
        %900 = vmatpush.bf16.xpose.msra.mxu0 0
        %901 = vmatpush.bf16.xpose.msra.mxu0 0
        %902 = vmatpush.bf16.xpose.msra.mxu0 0
        %903 = vmatpush.bf16.xpose.msra.mxu0 0
        %904 = vmatpush.bf16.xpose.msra.mxu0 0
        %905 = vmatpush.bf16.xpose.msra.mxu0 %v897
        %906 = vmatpush.bf16.xpose.msra.mxu0 %v894
        %907 = vmatmul.bf16.gmra.mxu0 %v891
        %v908 = vpop.f32.mrf.mxu0
        %v909 = vadd.f32 0.0, %v908
        %v910 = vpop.f32.mrf.mxu0
        %911 = vdwg.mxu0
        %v913 = vperm.slane %v796, 0
        %v915 = vadd.f32 %v873, %v913
        %v917 = vperm.slane %v797, 0
        %v919 = vadd.f32 %v873, %v917
        %vm920 = vcmask 130048
        %v922 = vsel %vm920, %v919, 0
        %v925 = vsel %vm920, %v909, 0
        %927 = vmatpush.xpose.msra.mxu0 0.0
        %928 = vmatpush.xpose.msra.mxu0 0.0
        %929 = vmatpush.xpose.msra.mxu0 0.0
        %930 = vmatpush.xpose.msra.mxu0 0.0
        %931 = vmatpush.xpose.msra.mxu0 0.0
        %932 = vmatpush.xpose.msra.mxu0 0.0
        %933 = vmatpush.xpose.msra.mxu0 0.0
        %934 = vmatpush.xpose.msra.mxu0 0.0
        %935 = vmatpush.xpose.msra.mxu0 0.0
        %936 = vmatpush.xpose.msra.mxu0 0.0
        %937 = vmatpush.xpose.msra.mxu0 0.0
        %938 = vmatpush.xpose.msra.mxu0 0.0
        %939 = vmatpush.xpose.msra.mxu0 0.0
        %940 = vmatpush.xpose.msra.mxu0 0.0
        %941 = vmatpush.xpose.msra.mxu0 0.0
        %942 = vmatpush.xpose.msra.mxu0 %v925
        %943 = vmatmul.f32.gmra.mxu0 %v922
        %v944 = vpop.f32.mrf.mxu0
        %v945 = vadd.f32 0.0, %v944
        %946 = vdwg.mxu0
        %v948 = vrot.slane %v945, 1
        %v949 = vrot.slane %v945, 2
        %v950 = vrot.slane %v945, 3
        %v951 = vrot.slane %v945, 4
        %v952 = vrot.slane %v945, 5
        %v953 = vrot.slane %v945, 6
        %v954 = vrot.slane %v945, 7
        %v955 = vperm.slane %v945, 0
        %v956 = vperm.slane %v948, 0
        %v957 = vperm.slane %v949, 0
        %v958 = vperm.slane %v950, 0
        %v959 = vperm.slane %v951, 0
        %v960 = vperm.slane %v952, 0
        %v961 = vperm.slane %v953, 0
        %v962 = vperm.slane %v954, 0
        %v971 = vmul.f32 %v955, %v788
        %v972 = vmul.f32 %v956, %v789
        %v973 = vmul.f32 %v957, %v790
        %v974 = vmul.f32 %v958, %v791
        %v975 = vmul.f32 %v959, %v792
        %v976 = vmul.f32 %v960, %v793
        %v977 = vmul.f32 %v961, %v794
        %v978 = vmul.f32 %v962, %v795
        %vm979 = vcmask 64512
        %v980 = vsel %vm979, %v971, 0.0
        %981 = vadd.xlane.f32.xlu0 %v980
        %v982 = vpop.xlane.xlu0 %981
        %v983 = vsel %vm979, %v972, 0.0
        %984 = vadd.xlane.f32.xlu0 %v983
        %v985 = vpop.xlane.xlu0 %984
        %v986 = vsel %vm979, %v973, 0.0
        %987 = vadd.xlane.f32.xlu0 %v986
        %v988 = vpop.xlane.xlu0 %987
        %v989 = vsel %vm979, %v974, 0.0
        %990 = vadd.xlane.f32.xlu0 %v989
        %v991 = vpop.xlane.xlu0 %990
        %v992 = vsel %vm979, %v975, 0.0
        %993 = vadd.xlane.f32.xlu0 %v992
        %v994 = vpop.xlane.xlu0 %993
        %v995 = vsel %vm979, %v976, 0.0
        %996 = vadd.xlane.f32.xlu0 %v995
        %v997 = vpop.xlane.xlu0 %996
        %v998 = vsel %vm979, %v977, 0.0
        %999 = vadd.xlane.f32.xlu0 %v998
        %v1000 = vpop.xlane.xlu0 %999
        %v1001 = vsel %vm979, %v978, 0.0
        %1002 = vadd.xlane.f32.xlu0 %v1001
        %v1003 = vpop.xlane.xlu0 %1002
        %1005 = vrot.lane.b32.xlu0 %v873, 96
        %v1006 = vpop.permute.xlu0 %1005
        %v1015 = vlaneseq
        %v1016 = vand.u32 %v1015, 127
        %v1017 = vperm.slane %v982, %v1016
        %v1018 = vperm.slane %v985, %v1016
        %v1019 = vperm.slane %v988, %v1016
        %v1020 = vperm.slane %v991, %v1016
        %v1021 = vperm.slane %v994, %v1016
        %v1022 = vperm.slane %v997, %v1016
        %v1023 = vperm.slane %v1000, %v1016
        %v1024 = vperm.slane %v1003, %v1016
        %vm1025 = vcmask 1041409
        %v1026 = vsel %vm1025, %v1018, %v1017
        %vm1027 = vcmask 1042434
        %v1028 = vsel %vm1027, %v1019, %v1026
        %vm1029 = vcmask 1043459
        %v1030 = vsel %vm1029, %v1020, %v1028
        %vm1031 = vcmask 1044484
        %v1032 = vsel %vm1031, %v1021, %v1030
        %vm1033 = vcmask 1045509
        %v1034 = vsel %vm1033, %v1022, %v1032
        %vm1035 = vcmask 1046534
        %v1036 = vsel %vm1035, %v1023, %v1034
        %vm1037 = vcmask 1047559
        %v1038 = vsel %vm1037, %v1024, %v1036
        %v1041 = vsel %vm920, %v915, 0
        %v1043 = vsel %vm920, %v1006, 0
        %1045 = vmatpush.xpose.msra.mxu0 0.0
        %1046 = vmatpush.xpose.msra.mxu0 0.0
        %1047 = vmatpush.xpose.msra.mxu0 0.0
        %1048 = vmatpush.xpose.msra.mxu0 0.0
        %1049 = vmatpush.xpose.msra.mxu0 0.0
        %1050 = vmatpush.xpose.msra.mxu0 0.0
        %1051 = vmatpush.xpose.msra.mxu0 0.0
        %1052 = vmatpush.xpose.msra.mxu0 0.0
        %1053 = vmatpush.xpose.msra.mxu0 0.0
        %1054 = vmatpush.xpose.msra.mxu0 0.0
        %1055 = vmatpush.xpose.msra.mxu0 0.0
        %1056 = vmatpush.xpose.msra.mxu0 0.0
        %1057 = vmatpush.xpose.msra.mxu0 0.0
        %1058 = vmatpush.xpose.msra.mxu0 0.0
        %1059 = vmatpush.xpose.msra.mxu0 0.0
        %1060 = vmatpush.xpose.msra.mxu0 %v1043
        %1061 = vmatmul.f32.gmra.mxu0 %v1041
        %v1062 = vpop.f32.mrf.mxu0
        %v1063 = vadd.f32 %v1038, %v1062
        %1064 = vdwg.mxu0
        %v1065 = vadd.f32 %v1063, %v787
        %v1066 = vsel %vm979, %v1065, -inf
        %1067 = vmax.xlane.f32.xlu0 %v1066
        %v1068 = vpop.xlane.xlu0 %1067
        %v1069 = vsub.f32 %v1065, %v1068
        %v1070 = vmul.f32 %v1069, 1.442695
        %v1071 = vpow.pop %v1070
        %v1072 = vsel %vm979, %v1071, 0.0
        %1073 = vadd.xlane.f32.xlu0 %v1072
        %v1074 = vpop.xlane.xlu0 %1073
        %v1075 = vrcp.pop %v1074
        %v1076 = vmul.f32 %v1071, %v1075
        %1077 = vrot.lane.b32.xlu0 %v873, 64
        %v1078 = vpop.permute.xlu0 %1077
        %v1081 = vsel %vm979, %v1076, 0
        %1083 = vmatpush.msra.mxu0 0.0
        %1084 = vmatpush.msra.mxu0 0.0
        %1085 = vmatpush.msra.mxu0 0.0
        %1086 = vmatpush.msra.mxu0 0.0
        %1087 = vmatpush.msra.mxu0 0.0
        %1088 = vmatpush.msra.mxu0 0.0
        %1089 = vmatpush.msra.mxu0 0.0
        %1090 = vmatpush.msra.mxu0 0.0
        %1091 = vmatpush.msra.mxu0 0.0
        %1092 = vmatpush.msra.mxu0 0.0
        %1093 = vmatpush.msra.mxu0 0.0
        %1094 = vmatpush.msra.mxu0 0.0
        %1095 = vmatpush.msra.mxu0 0.0
        %1096 = vmatpush.msra.mxu0 0.0
        %1097 = vmatpush.msra.mxu0 0.0
        %1098 = vmatpush.msra.mxu0 %v1078
        %1099 = vmatmul.f32.gmra.mxu0 %v1081
        %v1100 = vpop.f32.mrf.mxu0
        %v1101 = vadd.f32 0.0, %v1100
        %1102 = vdwg.mxu0
        %1103 = vrot.lane.b32.xlu0 %v919, 112
        %v1104 = vpop.permute.xlu0 %1103
        %1105 = vrot.lane.b32.xlu0 %v909, 112
        %v1106 = vpop.permute.xlu0 %1105
        %v1107 = vsel %vm920, %v1104, 0
        %v1109 = vsel %vm920, %v1106, 0
        %1111 = vmatpush.xpose.msra.mxu0 0.0
        %1112 = vmatpush.xpose.msra.mxu0 0.0
        %1113 = vmatpush.xpose.msra.mxu0 0.0
        %1114 = vmatpush.xpose.msra.mxu0 0.0
        %1115 = vmatpush.xpose.msra.mxu0 0.0
        %1116 = vmatpush.xpose.msra.mxu0 0.0
        %1117 = vmatpush.xpose.msra.mxu0 0.0
        %1118 = vmatpush.xpose.msra.mxu0 0.0
        %1119 = vmatpush.xpose.msra.mxu0 0.0
        %1120 = vmatpush.xpose.msra.mxu0 0.0
        %1121 = vmatpush.xpose.msra.mxu0 0.0
        %1122 = vmatpush.xpose.msra.mxu0 0.0
        %1123 = vmatpush.xpose.msra.mxu0 0.0
        %1124 = vmatpush.xpose.msra.mxu0 0.0
        %1125 = vmatpush.xpose.msra.mxu0 0.0
        %1126 = vmatpush.xpose.msra.mxu0 %v1109
        %1127 = vmatmul.f32.gmra.mxu0 %v1107
        %v1128 = vpop.f32.mrf.mxu0
        %v1129 = vadd.f32 0.0, %v1128
        %1130 = vdwg.mxu0
        %v1132 = vrot.slane %v1129, 1
        %v1133 = vrot.slane %v1129, 2
        %v1134 = vrot.slane %v1129, 3
        %v1135 = vrot.slane %v1129, 4
        %v1136 = vrot.slane %v1129, 5
        %v1137 = vrot.slane %v1129, 6
        %v1138 = vrot.slane %v1129, 7
        %v1139 = vperm.slane %v1129, 0
        %v1140 = vperm.slane %v1132, 0
        %v1141 = vperm.slane %v1133, 0
        %v1142 = vperm.slane %v1134, 0
        %v1143 = vperm.slane %v1135, 0
        %v1144 = vperm.slane %v1136, 0
        %v1145 = vperm.slane %v1137, 0
        %v1146 = vperm.slane %v1138, 0
        %v1155 = vmul.f32 %v1139, %v788
        %v1156 = vmul.f32 %v1140, %v789
        %v1157 = vmul.f32 %v1141, %v790
        %v1158 = vmul.f32 %v1142, %v791
        %v1159 = vmul.f32 %v1143, %v792
        %v1160 = vmul.f32 %v1144, %v793
        %v1161 = vmul.f32 %v1145, %v794
        %v1162 = vmul.f32 %v1146, %v795
        %v1163 = vsel %vm979, %v1155, 0.0
        %1164 = vadd.xlane.f32.xlu0 %v1163
        %v1165 = vpop.xlane.xlu0 %1164
        %v1166 = vsel %vm979, %v1156, 0.0
        %1167 = vadd.xlane.f32.xlu0 %v1166
        %v1168 = vpop.xlane.xlu0 %1167
        %v1169 = vsel %vm979, %v1157, 0.0
        %1170 = vadd.xlane.f32.xlu0 %v1169
        %v1171 = vpop.xlane.xlu0 %1170
        %v1172 = vsel %vm979, %v1158, 0.0
        %1173 = vadd.xlane.f32.xlu0 %v1172
        %v1174 = vpop.xlane.xlu0 %1173
        %v1175 = vsel %vm979, %v1159, 0.0
        %1176 = vadd.xlane.f32.xlu0 %v1175
        %v1177 = vpop.xlane.xlu0 %1176
        %v1178 = vsel %vm979, %v1160, 0.0
        %1179 = vadd.xlane.f32.xlu0 %v1178
        %v1180 = vpop.xlane.xlu0 %1179
        %v1181 = vsel %vm979, %v1161, 0.0
        %1182 = vadd.xlane.f32.xlu0 %v1181
        %v1183 = vpop.xlane.xlu0 %1182
        %v1184 = vsel %vm979, %v1162, 0.0
        %1185 = vadd.xlane.f32.xlu0 %v1184
        %v1186 = vpop.xlane.xlu0 %1185
        %1187 = vrot.lane.b32.xlu0 %v915, 112
        %v1188 = vpop.permute.xlu0 %1187
        %1189 = vrot.lane.b32.xlu0 %v873, 80
        %v1190 = vpop.permute.xlu0 %1189
        %v1199 = vperm.slane %v1165, %v1016
        %v1200 = vperm.slane %v1168, %v1016
        %v1201 = vperm.slane %v1171, %v1016
        %v1202 = vperm.slane %v1174, %v1016
        %v1203 = vperm.slane %v1177, %v1016
        %v1204 = vperm.slane %v1180, %v1016
        %v1205 = vperm.slane %v1183, %v1016
        %v1206 = vperm.slane %v1186, %v1016
        %v1207 = vsel %vm1025, %v1200, %v1199
        %v1208 = vsel %vm1027, %v1201, %v1207
        %v1209 = vsel %vm1029, %v1202, %v1208
        %v1210 = vsel %vm1031, %v1203, %v1209
        %v1211 = vsel %vm1033, %v1204, %v1210
        %v1212 = vsel %vm1035, %v1205, %v1211
        %v1213 = vsel %vm1037, %v1206, %v1212
        %v1215 = vsel %vm920, %v1188, 0
        %v1217 = vsel %vm920, %v1190, 0
        %1219 = vmatpush.xpose.msra.mxu0 0.0
        %1220 = vmatpush.xpose.msra.mxu0 0.0
        %1221 = vmatpush.xpose.msra.mxu0 0.0
        %1222 = vmatpush.xpose.msra.mxu0 0.0
        %1223 = vmatpush.xpose.msra.mxu0 0.0
        %1224 = vmatpush.xpose.msra.mxu0 0.0
        %1225 = vmatpush.xpose.msra.mxu0 0.0
        %1226 = vmatpush.xpose.msra.mxu0 0.0
        %1227 = vmatpush.xpose.msra.mxu0 0.0
        %1228 = vmatpush.xpose.msra.mxu0 0.0
        %1229 = vmatpush.xpose.msra.mxu0 0.0
        %1230 = vmatpush.xpose.msra.mxu0 0.0
        %1231 = vmatpush.xpose.msra.mxu0 0.0
        %1232 = vmatpush.xpose.msra.mxu0 0.0
        %1233 = vmatpush.xpose.msra.mxu0 0.0
        %1234 = vmatpush.xpose.msra.mxu0 %v1217
        %1235 = vmatmul.f32.gmra.mxu0 %v1215
        %v1236 = vpop.f32.mrf.mxu0
        %v1237 = vadd.f32 %v1213, %v1236
        %1238 = vdwg.mxu0
        %v1239 = vadd.f32 %v1237, %v787
        %v1240 = vsel %vm979, %v1239, -inf
        %1241 = vmax.xlane.f32.xlu0 %v1240
        %v1242 = vpop.xlane.xlu0 %1241
        %v1243 = vsub.f32 %v1239, %v1242
        %v1244 = vmul.f32 %v1243, 1.442695
        %v1245 = vpow.pop %v1244
        %v1246 = vsel %vm979, %v1245, 0.0
        %1247 = vadd.xlane.f32.xlu0 %v1246
        %v1248 = vpop.xlane.xlu0 %1247
        %v1249 = vrcp.pop %v1248
        %v1250 = vmul.f32 %v1245, %v1249
        %1251 = vrot.lane.b32.xlu0 %v873, 48
        %v1252 = vpop.permute.xlu0 %1251
        %v1255 = vsel %vm979, %v1250, 0
        %1257 = vmatpush.msra.mxu0 0.0
        %1258 = vmatpush.msra.mxu0 0.0
        %1259 = vmatpush.msra.mxu0 0.0
        %1260 = vmatpush.msra.mxu0 0.0
        %1261 = vmatpush.msra.mxu0 0.0
        %1262 = vmatpush.msra.mxu0 0.0
        %1263 = vmatpush.msra.mxu0 0.0
        %1264 = vmatpush.msra.mxu0 0.0
        %1265 = vmatpush.msra.mxu0 0.0
        %1266 = vmatpush.msra.mxu0 0.0
        %1267 = vmatpush.msra.mxu0 0.0
        %1268 = vmatpush.msra.mxu0 0.0
        %1269 = vmatpush.msra.mxu0 0.0
        %1270 = vmatpush.msra.mxu0 0.0
        %1271 = vmatpush.msra.mxu0 0.0
        %1272 = vmatpush.msra.mxu0 %v1252
        %1273 = vmatmul.f32.gmra.mxu0 %v1255
        %v1274 = vpop.f32.mrf.mxu0
        %v1275 = vadd.f32 0.0, %v1274
        %1276 = vdwg.mxu0
        %1278 = vrot.lane.b32.xlu0 %v1275, 16
        %v1279 = vpop.permute.xlu0 %1278
        %v1281 = vsel %vm920, %v1101, %v1279
        %v1282 = vpack.c.bf16 %v1281, %v1281
        %v1283 = vld [vmem:[%s7] sm:$0xf]
        %v1284 = vld [vmem:[%s7 + $0x4] sm:$0xf]
        %v1285 = vld [vmem:[%s7 + $0x8] sm:$0xf]
        %v1286 = vld [vmem:[%s7 + $0xc] sm:$0xf]
        %v1291 = vunpack.c.l.b16 %v1283
        %v1292 = vunpack.c.l.b16 %v1284
        %v1293 = vunpack.c.l.b16 %v1285
        %v1294 = vunpack.c.l.b16 %v1286
        %v1295 = vpack.c.b16 %v1292, %v1291
        %v1296 = vpack.c.b16 %v1294, %v1293
        %v1300 = vsel %vm841, %v1282, 0
        %1302 = vmatpush.bf16.msra.mxu0 0
        %1303 = vmatpush.bf16.msra.mxu0 0
        %1304 = vmatpush.bf16.msra.mxu0 0
        %1305 = vmatpush.bf16.msra.mxu0 0
        %1306 = vmatpush.bf16.msra.mxu0 0
        %1307 = vmatpush.bf16.msra.mxu0 0
        %1308 = vmatpush.bf16.msra.mxu0 %v1296
        %1309 = vmatpush.bf16.msra.mxu0 %v1295
        %1310 = vmatmul.bf16.gmra.mxu0 %v1300
        %v1311 = vpop.f32.mrf.mxu0
        %v1312 = vadd.f32 0.0, %v1311
        %v1313 = vpop.f32.mrf.mxu0
        %1314 = vdwg.mxu0
        %v1315 = vadd.f32 %v785, %v1312
        %v1316 = vld [vmem:[%s10] sm:$0x1]
        %v1317 = vld [vmem:[%s11] sm:$0x1]
        %v1318 = vsel %vm841, %v1315, 0.0
        %1319 = vadd.xlane.f32.xlu0 %v1318
        %v1320 = vpop.xlane.xlu0 %1319
        %v1321 = vrcp.pop 32.0
        %v1322 = vmul.f32 32.0, %v1321
        %v1323 = vsub.f32 1.0, %v1322
        %v1324 = vmul.f32 %v1321, %v1323
        %v1325 = vadd.f32 %v1321, %v1324
        %vm1326 = vweird.f32 %v1321
        %v1327 = vsel %vm1326, %v1321, %v1325
        %v1328 = vmul.f32 %v1320, %v1327
        %v1329 = vsub.f32 %v1315, %v1328
        %v1330 = vmul.f32 %v1329, %v1329
        %v1331 = vsel %vm841, %v1330, 0.0
        %1332 = vadd.xlane.f32.xlu0 %v1331
        %v1333 = vpop.xlane.xlu0 %1332
        %v1334 = vmul.f32 %v1333, %v1327
        %v1335 = vadd.f32 %v1334, 1e-05
        %v1336 = vrsqrt.pop %v1335
        %v1337 = vmul.f32 %v1336, %v1335
        %v1338 = vmul.f32 %v1337, %v1336
        %v1339 = vmul.f32 0.5, %v1338
        %v1340 = vsub.f32 1.5, %v1339
        %v1341 = vmul.f32 %v1336, %v1340
        %vm1342 = vweird.f32 %v1335
        %vm1343 = vweird.f32 %v1336
        %vm1344 = vmor %vm1342, %vm1343
        %v1345 = vsel %vm1344, %v1336, %v1341
        %v1346 = vmul.f32 %v1329, %v1345
        %v1348 = vperm.slane %v1316, 0
        %v1350 = vmul.f32 %v1346, %v1348
        %v1352 = vperm.slane %v1317, 0
        %v1354 = vadd.f32 %v1350, %v1352
        %v1355 = vpack.c.bf16 %v1354, %v1354
        %v1356 = vld [vmem:[%s12] sm:$0xf]
        %v1357 = vld [vmem:[%s12 + $0x4] sm:$0xf]
        %v1358 = vld [vmem:[%s12 + $0x8] sm:$0xf]
        %v1359 = vld [vmem:[%s12 + $0xc] sm:$0xf]
        %v1360 = vld [vmem:[%s12 + $0x10] sm:$0xf]
        %v1361 = vld [vmem:[%s12 + $0x14] sm:$0xf]
        %v1362 = vld [vmem:[%s12 + $0x18] sm:$0xf]
        %v1363 = vld [vmem:[%s12 + $0x1c] sm:$0xf]
        %v1364 = vld [vmem:[%s13] sm:$0x1]
        %v1366 = vperm.slane %v1364, 0
        %v1376 = vunpack.c.l.b16 %v1356
        %v1377 = vunpack.c.l.b16 %v1357
        %v1378 = vunpack.c.l.b16 %v1358
        %v1379 = vunpack.c.l.b16 %v1359
        %v1380 = vunpack.c.l.b16 %v1360
        %v1381 = vunpack.c.l.b16 %v1361
        %v1382 = vunpack.c.l.b16 %v1362
        %v1383 = vunpack.c.l.b16 %v1363
        %v1384 = vpack.c.b16 %v1377, %v1376
        %v1385 = vpack.c.b16 %v1379, %v1378
        %v1386 = vpack.c.b16 %v1381, %v1380
        %v1387 = vpack.c.b16 %v1383, %v1382
        %v1389 = vsel %vm841, %v1355, 0
        %v1392 = vsel %vm841, %v1384, 0
        %v1395 = vsel %vm841, %v1385, 0
        %v1398 = vsel %vm841, %v1386, 0
        %v1401 = vsel %vm841, %v1387, 0
        %1403 = vmatpush.bf16.xpose.msra.mxu0 0
        %1404 = vmatpush.bf16.xpose.msra.mxu0 0
        %1405 = vmatpush.bf16.xpose.msra.mxu0 0
        %1406 = vmatpush.bf16.xpose.msra.mxu0 0
        %1407 = vmatpush.bf16.xpose.msra.mxu0 %v1401
        %1408 = vmatpush.bf16.xpose.msra.mxu0 %v1398
        %1409 = vmatpush.bf16.xpose.msra.mxu0 %v1395
        %1410 = vmatpush.bf16.xpose.msra.mxu0 %v1392
        %1411 = vmatmul.bf16.gmra.mxu0 %v1389
        %v1412 = vpop.f32.mrf.mxu0
        %v1413 = vadd.f32 %v1366, %v1412
        %v1414 = vpop.f32.mrf.mxu0
        %1415 = vdwg.mxu0
        %v1416 = vmax.f32 %v1413, 0.0
        %v1417 = vpack.c.bf16 %v1416, %v1416
        %v1418 = vld [vmem:[%s14] sm:$0xf]
        %v1419 = vld [vmem:[%s14 + $0x4] sm:$0xf]
        %v1420 = vld [vmem:[%s14 + $0x8] sm:$0xf]
        %v1421 = vld [vmem:[%s14 + $0xc] sm:$0xf]
        %v1422 = vld [vmem:[%s15] sm:$0x1]
        %v1424 = vperm.slane %v1422, 0
        %v1430 = vunpack.c.l.b16 %v1418
        %v1431 = vunpack.c.l.b16 %v1419
        %v1432 = vunpack.c.l.b16 %v1420
        %v1433 = vunpack.c.l.b16 %v1421
        %v1434 = vpack.c.b16 %v1431, %v1430
        %v1435 = vpack.c.b16 %v1433, %v1432
        %vm1436 = vcmask 523264
        %v1438 = vsel %vm1436, %v1417, 0
        %v1441 = vsel %vm1436, %v1434, 0
        %v1444 = vsel %vm1436, %v1435, 0
        %1446 = vmatpush.bf16.xpose.msra.mxu0 0
        %1447 = vmatpush.bf16.xpose.msra.mxu0 0
        %1448 = vmatpush.bf16.xpose.msra.mxu0 0
        %1449 = vmatpush.bf16.xpose.msra.mxu0 0
        %1450 = vmatpush.bf16.xpose.msra.mxu0 0
        %1451 = vmatpush.bf16.xpose.msra.mxu0 0
        %1452 = vmatpush.bf16.xpose.msra.mxu0 %v1444
        %1453 = vmatpush.bf16.xpose.msra.mxu0 %v1441
        %1454 = vmatmul.bf16.gmra.mxu0 %v1438
        %v1455 = vpop.f32.mrf.mxu0
        %v1456 = vadd.f32 %v1424, %v1455
        %v1457 = vpop.f32.mrf.mxu0
        %1458 = vdwg.mxu0
        %v1459 = vadd.f32 %v1354, %v1456
        %v1460 = vld [vmem:[%s16] sm:$0x1]
        %v1461 = vld [vmem:[%s17] sm:$0x1]
        %v1462 = vsel %vm841, %v1459, 0.0
        %1463 = vadd.xlane.f32.xlu0 %v1462
        %v1464 = vpop.xlane.xlu0 %1463
        %v1465 = vmul.f32 %v1464, %v1327
        %v1466 = vsub.f32 %v1459, %v1465
        %v1467 = vmul.f32 %v1466, %v1466
        %v1468 = vsel %vm841, %v1467, 0.0
        %1469 = vadd.xlane.f32.xlu0 %v1468
        %v1470 = vpop.xlane.xlu0 %1469
        %v1471 = vmul.f32 %v1470, %v1327
        %v1472 = vadd.f32 %v1471, 1e-05
        %v1473 = vrsqrt.pop %v1472
        %v1474 = vmul.f32 %v1473, %v1472
        %v1475 = vmul.f32 %v1474, %v1473
        %v1476 = vmul.f32 0.5, %v1475
        %v1477 = vsub.f32 1.5, %v1476
        %v1478 = vmul.f32 %v1473, %v1477
        %vm1479 = vweird.f32 %v1472
        %vm1480 = vweird.f32 %v1473
        %vm1481 = vmor %vm1479, %vm1480
        %v1482 = vsel %vm1481, %v1473, %v1478
        %v1483 = vmul.f32 %v1466, %v1482
        %v1485 = vperm.slane %v1460, 0
        %v1487 = vmul.f32 %v1483, %v1485
        %v1489 = vperm.slane %v1461, 0
        %v1491 = vadd.f32 %v1487, %v1489
        %1492 = vst.msk [vmem:[%s771] sm:$0xff] %vm841, %v1491
        %v1493 = vpack.c.bf16 %v1491, %v1491
        %s1494 = scalar_lea.vmem %s5, 48
        %v1495 = vld [vmem:[%s1494] sm:$0xf]
        %v1496 = vld [vmem:[%s1494 + $0x4] sm:$0xf]
        %v1497 = vld [vmem:[%s1494 + $0x8] sm:$0xf]
        %v1498 = vld [vmem:[%s1494 + $0xc] sm:$0xf]
        %v1499 = vld [vmem:[%s1494 + $0x10] sm:$0xf]
        %v1500 = vld [vmem:[%s1494 + $0x14] sm:$0xf]
        %v1501 = vld [vmem:[%s1494 + $0x18] sm:$0xf]
        %v1502 = vld [vmem:[%s1494 + $0x1c] sm:$0xf]
        %v1503 = vld [vmem:[%s1494 + $0x20] sm:$0xf]
        %v1504 = vld [vmem:[%s1494 + $0x24] sm:$0xf]
        %v1505 = vld [vmem:[%s1494 + $0x28] sm:$0xf]
        %v1506 = vld [vmem:[%s1494 + $0x2c] sm:$0xf]
        %v1519 = vunpack.c.l.b16 %v1495
        %v1520 = vunpack.c.l.b16 %v1496
        %v1521 = vunpack.c.l.b16 %v1497
        %v1522 = vunpack.c.l.b16 %v1498
        %v1523 = vunpack.c.l.b16 %v1499
        %v1524 = vunpack.c.l.b16 %v1500
        %v1525 = vunpack.c.l.b16 %v1501
        %v1526 = vunpack.c.l.b16 %v1502
        %v1527 = vunpack.c.l.b16 %v1503
        %v1528 = vunpack.c.l.b16 %v1504
        %v1529 = vunpack.c.l.b16 %v1505
        %v1530 = vunpack.c.l.b16 %v1506
        %v1531 = vpack.c.b16 %v1520, %v1519
        %v1532 = vpack.c.b16 %v1522, %v1521
        %v1533 = vpack.c.b16 %v1524, %v1523
        %v1534 = vpack.c.b16 %v1526, %v1525
        %v1535 = vpack.c.b16 %v1528, %v1527
        %v1536 = vpack.c.b16 %v1530, %v1529
        %v1538 = vsel %vm841, %v1493, 0
        %v1541 = vsel %vm841, %v1531, 0
        %v1544 = vsel %vm841, %v1532, 0
        %v1547 = vsel %vm841, %v1533, 0
        %v1550 = vsel %vm841, %v1534, 0
        %v1553 = vsel %vm841, %v1535, 0
        %v1556 = vsel %vm841, %v1536, 0
        %1558 = vmatpush.bf16.xpose.msra.mxu0 0
        %1559 = vmatpush.bf16.xpose.msra.mxu0 0
        %1560 = vmatpush.bf16.xpose.msra.mxu0 %v1556
        %1561 = vmatpush.bf16.xpose.msra.mxu0 %v1553
        %1562 = vmatpush.bf16.xpose.msra.mxu0 %v1550
        %1563 = vmatpush.bf16.xpose.msra.mxu0 %v1547
        %1564 = vmatpush.bf16.xpose.msra.mxu0 %v1544
        %1565 = vmatpush.bf16.xpose.msra.mxu0 %v1541
        %1566 = vmatmul.bf16.gmra.mxu0 %v1538
        %v1567 = vpop.f32.mrf.mxu0
        %v1568 = vadd.f32 0.0, %v1567
        %v1569 = vpop.f32.mrf.mxu0
        %1570 = vdwg.mxu0
        %s1571 = scalar_lea.vmem %s6, 16
        %v1572 = vld [vmem:[%s1571] sm:$0xf]
        %v1573 = vld [vmem:[%s1571 + $0x4] sm:$0xf]
        %v1574 = vld [vmem:[%s1571 + $0x8] sm:$0xf]
        %v1575 = vld [vmem:[%s1571 + $0xc] sm:$0xf]
        %v1580 = vunpack.c.l.b16 %v1572
        %v1581 = vunpack.c.l.b16 %v1573
        %v1582 = vunpack.c.l.b16 %v1574
        %v1583 = vunpack.c.l.b16 %v1575
        %v1584 = vpack.c.b16 %v1581, %v1580
        %v1585 = vpack.c.b16 %v1583, %v1582
        %v1587 = vsel %vm841, %v1584, 0
        %v1590 = vsel %vm841, %v1585, 0
        %1592 = vmatpush.bf16.xpose.msra.mxu0 0
        %1593 = vmatpush.bf16.xpose.msra.mxu0 0
        %1594 = vmatpush.bf16.xpose.msra.mxu0 0
        %1595 = vmatpush.bf16.xpose.msra.mxu0 0
        %1596 = vmatpush.bf16.xpose.msra.mxu0 0
        %1597 = vmatpush.bf16.xpose.msra.mxu0 0
        %1598 = vmatpush.bf16.xpose.msra.mxu0 %v1590
        %1599 = vmatpush.bf16.xpose.msra.mxu0 %v1587
        %1600 = vmatmul.bf16.gmra.mxu0 %v891
        %v1601 = vpop.f32.mrf.mxu0
        %v1602 = vadd.f32 0.0, %v1601
        %v1603 = vpop.f32.mrf.mxu0
        %1604 = vdwg.mxu0
        %v1605 = vadd.f32 %v1568, %v913
        %v1606 = vadd.f32 %v1568, %v917
        %v1608 = vsel %vm920, %v1606, 0
        %v1611 = vsel %vm920, %v1602, 0
        %1613 = vmatpush.xpose.msra.mxu0 0.0
        %1614 = vmatpush.xpose.msra.mxu0 0.0
        %1615 = vmatpush.xpose.msra.mxu0 0.0
        %1616 = vmatpush.xpose.msra.mxu0 0.0
        %1617 = vmatpush.xpose.msra.mxu0 0.0
        %1618 = vmatpush.xpose.msra.mxu0 0.0
        %1619 = vmatpush.xpose.msra.mxu0 0.0
        %1620 = vmatpush.xpose.msra.mxu0 0.0
        %1621 = vmatpush.xpose.msra.mxu0 0.0
        %1622 = vmatpush.xpose.msra.mxu0 0.0
        %1623 = vmatpush.xpose.msra.mxu0 0.0
        %1624 = vmatpush.xpose.msra.mxu0 0.0
        %1625 = vmatpush.xpose.msra.mxu0 0.0
        %1626 = vmatpush.xpose.msra.mxu0 0.0
        %1627 = vmatpush.xpose.msra.mxu0 0.0
        %1628 = vmatpush.xpose.msra.mxu0 %v1611
        %1629 = vmatmul.f32.gmra.mxu0 %v1608
        %v1630 = vpop.f32.mrf.mxu0
        %v1631 = vadd.f32 0.0, %v1630
        %1632 = vdwg.mxu0
        %v1634 = vrot.slane %v1631, 1
        %v1635 = vrot.slane %v1631, 2
        %v1636 = vrot.slane %v1631, 3
        %v1637 = vrot.slane %v1631, 4
        %v1638 = vrot.slane %v1631, 5
        %v1639 = vrot.slane %v1631, 6
        %v1640 = vrot.slane %v1631, 7
        %v1641 = vperm.slane %v1631, 0
        %v1642 = vperm.slane %v1634, 0
        %v1643 = vperm.slane %v1635, 0
        %v1644 = vperm.slane %v1636, 0
        %v1645 = vperm.slane %v1637, 0
        %v1646 = vperm.slane %v1638, 0
        %v1647 = vperm.slane %v1639, 0
        %v1648 = vperm.slane %v1640, 0
        %v1657 = vmul.f32 %v1641, %v788
        %v1658 = vmul.f32 %v1642, %v789
        %v1659 = vmul.f32 %v1643, %v790
        %v1660 = vmul.f32 %v1644, %v791
        %v1661 = vmul.f32 %v1645, %v792
        %v1662 = vmul.f32 %v1646, %v793
        %v1663 = vmul.f32 %v1647, %v794
        %v1664 = vmul.f32 %v1648, %v795
        %v1665 = vsel %vm979, %v1657, 0.0
        %1666 = vadd.xlane.f32.xlu0 %v1665
        %v1667 = vpop.xlane.xlu0 %1666
        %v1668 = vsel %vm979, %v1658, 0.0
        %1669 = vadd.xlane.f32.xlu0 %v1668
        %v1670 = vpop.xlane.xlu0 %1669
        %v1671 = vsel %vm979, %v1659, 0.0
        %1672 = vadd.xlane.f32.xlu0 %v1671
        %v1673 = vpop.xlane.xlu0 %1672
        %v1674 = vsel %vm979, %v1660, 0.0
        %1675 = vadd.xlane.f32.xlu0 %v1674
        %v1676 = vpop.xlane.xlu0 %1675
        %v1677 = vsel %vm979, %v1661, 0.0
        %1678 = vadd.xlane.f32.xlu0 %v1677
        %v1679 = vpop.xlane.xlu0 %1678
        %v1680 = vsel %vm979, %v1662, 0.0
        %1681 = vadd.xlane.f32.xlu0 %v1680
        %v1682 = vpop.xlane.xlu0 %1681
        %v1683 = vsel %vm979, %v1663, 0.0
        %1684 = vadd.xlane.f32.xlu0 %v1683
        %v1685 = vpop.xlane.xlu0 %1684
        %v1686 = vsel %vm979, %v1664, 0.0
        %1687 = vadd.xlane.f32.xlu0 %v1686
        %v1688 = vpop.xlane.xlu0 %1687
        %1690 = vrot.lane.b32.xlu0 %v1568, 96
        %v1691 = vpop.permute.xlu0 %1690
        %v1700 = vperm.slane %v1667, %v1016
        %v1701 = vperm.slane %v1670, %v1016
        %v1702 = vperm.slane %v1673, %v1016
        %v1703 = vperm.slane %v1676, %v1016
        %v1704 = vperm.slane %v1679, %v1016
        %v1705 = vperm.slane %v1682, %v1016
        %v1706 = vperm.slane %v1685, %v1016
        %v1707 = vperm.slane %v1688, %v1016
        %v1708 = vsel %vm1025, %v1701, %v1700
        %v1709 = vsel %vm1027, %v1702, %v1708
        %v1710 = vsel %vm1029, %v1703, %v1709
        %v1711 = vsel %vm1031, %v1704, %v1710
        %v1712 = vsel %vm1033, %v1705, %v1711
        %v1713 = vsel %vm1035, %v1706, %v1712
        %v1714 = vsel %vm1037, %v1707, %v1713
        %v1717 = vsel %vm920, %v1605, 0
        %v1719 = vsel %vm920, %v1691, 0
        %1721 = vmatpush.xpose.msra.mxu0 0.0
        %1722 = vmatpush.xpose.msra.mxu0 0.0
        %1723 = vmatpush.xpose.msra.mxu0 0.0
        %1724 = vmatpush.xpose.msra.mxu0 0.0
        %1725 = vmatpush.xpose.msra.mxu0 0.0
        %1726 = vmatpush.xpose.msra.mxu0 0.0
        %1727 = vmatpush.xpose.msra.mxu0 0.0
        %1728 = vmatpush.xpose.msra.mxu0 0.0
        %1729 = vmatpush.xpose.msra.mxu0 0.0
        %1730 = vmatpush.xpose.msra.mxu0 0.0
        %1731 = vmatpush.xpose.msra.mxu0 0.0
        %1732 = vmatpush.xpose.msra.mxu0 0.0
        %1733 = vmatpush.xpose.msra.mxu0 0.0
        %1734 = vmatpush.xpose.msra.mxu0 0.0
        %1735 = vmatpush.xpose.msra.mxu0 0.0
        %1736 = vmatpush.xpose.msra.mxu0 %v1719
        %1737 = vmatmul.f32.gmra.mxu0 %v1717
        %v1738 = vpop.f32.mrf.mxu0
        %v1739 = vadd.f32 %v1714, %v1738
        %1740 = vdwg.mxu0
        %v1741 = vadd.f32 %v1739, %v787
        %v1742 = vsel %vm979, %v1741, -inf
        %1743 = vmax.xlane.f32.xlu0 %v1742
        %v1744 = vpop.xlane.xlu0 %1743
        %v1745 = vsub.f32 %v1741, %v1744
        %v1746 = vmul.f32 %v1745, 1.442695
        %v1747 = vpow.pop %v1746
        %v1748 = vsel %vm979, %v1747, 0.0
        %1749 = vadd.xlane.f32.xlu0 %v1748
        %v1750 = vpop.xlane.xlu0 %1749
        %v1751 = vrcp.pop %v1750
        %v1752 = vmul.f32 %v1747, %v1751
        %1753 = vrot.lane.b32.xlu0 %v1568, 64
        %v1754 = vpop.permute.xlu0 %1753
        %v1757 = vsel %vm979, %v1752, 0
        %1759 = vmatpush.msra.mxu0 0.0
        %1760 = vmatpush.msra.mxu0 0.0
        %1761 = vmatpush.msra.mxu0 0.0
        %1762 = vmatpush.msra.mxu0 0.0
        %1763 = vmatpush.msra.mxu0 0.0
        %1764 = vmatpush.msra.mxu0 0.0
        %1765 = vmatpush.msra.mxu0 0.0
        %1766 = vmatpush.msra.mxu0 0.0
        %1767 = vmatpush.msra.mxu0 0.0
        %1768 = vmatpush.msra.mxu0 0.0
        %1769 = vmatpush.msra.mxu0 0.0
        %1770 = vmatpush.msra.mxu0 0.0
        %1771 = vmatpush.msra.mxu0 0.0
        %1772 = vmatpush.msra.mxu0 0.0
        %1773 = vmatpush.msra.mxu0 0.0
        %1774 = vmatpush.msra.mxu0 %v1754
        %1775 = vmatmul.f32.gmra.mxu0 %v1757
        %v1776 = vpop.f32.mrf.mxu0
        %v1777 = vadd.f32 0.0, %v1776
        %1778 = vdwg.mxu0
        %1779 = vrot.lane.b32.xlu0 %v1606, 112
        %v1780 = vpop.permute.xlu0 %1779
        %1781 = vrot.lane.b32.xlu0 %v1602, 112
        %v1782 = vpop.permute.xlu0 %1781
        %v1783 = vsel %vm920, %v1780, 0
        %v1785 = vsel %vm920, %v1782, 0
        %1787 = vmatpush.xpose.msra.mxu0 0.0
        %1788 = vmatpush.xpose.msra.mxu0 0.0
        %1789 = vmatpush.xpose.msra.mxu0 0.0
        %1790 = vmatpush.xpose.msra.mxu0 0.0
        %1791 = vmatpush.xpose.msra.mxu0 0.0
        %1792 = vmatpush.xpose.msra.mxu0 0.0
        %1793 = vmatpush.xpose.msra.mxu0 0.0
        %1794 = vmatpush.xpose.msra.mxu0 0.0
        %1795 = vmatpush.xpose.msra.mxu0 0.0
        %1796 = vmatpush.xpose.msra.mxu0 0.0
        %1797 = vmatpush.xpose.msra.mxu0 0.0
        %1798 = vmatpush.xpose.msra.mxu0 0.0
        %1799 = vmatpush.xpose.msra.mxu0 0.0
        %1800 = vmatpush.xpose.msra.mxu0 0.0
        %1801 = vmatpush.xpose.msra.mxu0 0.0
        %1802 = vmatpush.xpose.msra.mxu0 %v1785
        %1803 = vmatmul.f32.gmra.mxu0 %v1783
        %v1804 = vpop.f32.mrf.mxu0
        %v1805 = vadd.f32 0.0, %v1804
        %1806 = vdwg.mxu0
        %v1808 = vrot.slane %v1805, 1
        %v1809 = vrot.slane %v1805, 2
        %v1810 = vrot.slane %v1805, 3
        %v1811 = vrot.slane %v1805, 4
        %v1812 = vrot.slane %v1805, 5
        %v1813 = vrot.slane %v1805, 6
        %v1814 = vrot.slane %v1805, 7
        %v1815 = vperm.slane %v1805, 0
        %v1816 = vperm.slane %v1808, 0
        %v1817 = vperm.slane %v1809, 0
        %v1818 = vperm.slane %v1810, 0
        %v1819 = vperm.slane %v1811, 0
        %v1820 = vperm.slane %v1812, 0
        %v1821 = vperm.slane %v1813, 0
        %v1822 = vperm.slane %v1814, 0
        %v1831 = vmul.f32 %v1815, %v788
        %v1832 = vmul.f32 %v1816, %v789
        %v1833 = vmul.f32 %v1817, %v790
        %v1834 = vmul.f32 %v1818, %v791
        %v1835 = vmul.f32 %v1819, %v792
        %v1836 = vmul.f32 %v1820, %v793
        %v1837 = vmul.f32 %v1821, %v794
        %v1838 = vmul.f32 %v1822, %v795
        %v1839 = vsel %vm979, %v1831, 0.0
        %1840 = vadd.xlane.f32.xlu0 %v1839
        %v1841 = vpop.xlane.xlu0 %1840
        %v1842 = vsel %vm979, %v1832, 0.0
        %1843 = vadd.xlane.f32.xlu0 %v1842
        %v1844 = vpop.xlane.xlu0 %1843
        %v1845 = vsel %vm979, %v1833, 0.0
        %1846 = vadd.xlane.f32.xlu0 %v1845
        %v1847 = vpop.xlane.xlu0 %1846
        %v1848 = vsel %vm979, %v1834, 0.0
        %1849 = vadd.xlane.f32.xlu0 %v1848
        %v1850 = vpop.xlane.xlu0 %1849
        %v1851 = vsel %vm979, %v1835, 0.0
        %1852 = vadd.xlane.f32.xlu0 %v1851
        %v1853 = vpop.xlane.xlu0 %1852
        %v1854 = vsel %vm979, %v1836, 0.0
        %1855 = vadd.xlane.f32.xlu0 %v1854
        %v1856 = vpop.xlane.xlu0 %1855
        %v1857 = vsel %vm979, %v1837, 0.0
        %1858 = vadd.xlane.f32.xlu0 %v1857
        %v1859 = vpop.xlane.xlu0 %1858
        %v1860 = vsel %vm979, %v1838, 0.0
        %1861 = vadd.xlane.f32.xlu0 %v1860
        %v1862 = vpop.xlane.xlu0 %1861
        %1863 = vrot.lane.b32.xlu0 %v1605, 112
        %v1864 = vpop.permute.xlu0 %1863
        %1865 = vrot.lane.b32.xlu0 %v1568, 80
        %v1866 = vpop.permute.xlu0 %1865
        %v1875 = vperm.slane %v1841, %v1016
        %v1876 = vperm.slane %v1844, %v1016
        %v1877 = vperm.slane %v1847, %v1016
        %v1878 = vperm.slane %v1850, %v1016
        %v1879 = vperm.slane %v1853, %v1016
        %v1880 = vperm.slane %v1856, %v1016
        %v1881 = vperm.slane %v1859, %v1016
        %v1882 = vperm.slane %v1862, %v1016
        %v1883 = vsel %vm1025, %v1876, %v1875
        %v1884 = vsel %vm1027, %v1877, %v1883
        %v1885 = vsel %vm1029, %v1878, %v1884
        %v1886 = vsel %vm1031, %v1879, %v1885
        %v1887 = vsel %vm1033, %v1880, %v1886
        %v1888 = vsel %vm1035, %v1881, %v1887
        %v1889 = vsel %vm1037, %v1882, %v1888
        %v1891 = vsel %vm920, %v1864, 0
        %v1893 = vsel %vm920, %v1866, 0
        %1895 = vmatpush.xpose.msra.mxu0 0.0
        %1896 = vmatpush.xpose.msra.mxu0 0.0
        %1897 = vmatpush.xpose.msra.mxu0 0.0
        %1898 = vmatpush.xpose.msra.mxu0 0.0
        %1899 = vmatpush.xpose.msra.mxu0 0.0
        %1900 = vmatpush.xpose.msra.mxu0 0.0
        %1901 = vmatpush.xpose.msra.mxu0 0.0
        %1902 = vmatpush.xpose.msra.mxu0 0.0
        %1903 = vmatpush.xpose.msra.mxu0 0.0
        %1904 = vmatpush.xpose.msra.mxu0 0.0
        %1905 = vmatpush.xpose.msra.mxu0 0.0
        %1906 = vmatpush.xpose.msra.mxu0 0.0
        %1907 = vmatpush.xpose.msra.mxu0 0.0
        %1908 = vmatpush.xpose.msra.mxu0 0.0
        %1909 = vmatpush.xpose.msra.mxu0 0.0
        %1910 = vmatpush.xpose.msra.mxu0 %v1893
        %1911 = vmatmul.f32.gmra.mxu0 %v1891
        %v1912 = vpop.f32.mrf.mxu0
        %v1913 = vadd.f32 %v1889, %v1912
        %1914 = vdwg.mxu0
        %v1915 = vadd.f32 %v1913, %v787
        %v1916 = vsel %vm979, %v1915, -inf
        %1917 = vmax.xlane.f32.xlu0 %v1916
        %v1918 = vpop.xlane.xlu0 %1917
        %v1919 = vsub.f32 %v1915, %v1918
        %v1920 = vmul.f32 %v1919, 1.442695
        %v1921 = vpow.pop %v1920
        %v1922 = vsel %vm979, %v1921, 0.0
        %1923 = vadd.xlane.f32.xlu0 %v1922
        %v1924 = vpop.xlane.xlu0 %1923
        %v1925 = vrcp.pop %v1924
        %v1926 = vmul.f32 %v1921, %v1925
        %1927 = vrot.lane.b32.xlu0 %v1568, 48
        %v1928 = vpop.permute.xlu0 %1927
        %v1931 = vsel %vm979, %v1926, 0
        %1933 = vmatpush.msra.mxu0 0.0
        %1934 = vmatpush.msra.mxu0 0.0
        %1935 = vmatpush.msra.mxu0 0.0
        %1936 = vmatpush.msra.mxu0 0.0
        %1937 = vmatpush.msra.mxu0 0.0
        %1938 = vmatpush.msra.mxu0 0.0
        %1939 = vmatpush.msra.mxu0 0.0
        %1940 = vmatpush.msra.mxu0 0.0
        %1941 = vmatpush.msra.mxu0 0.0
        %1942 = vmatpush.msra.mxu0 0.0
        %1943 = vmatpush.msra.mxu0 0.0
        %1944 = vmatpush.msra.mxu0 0.0
        %1945 = vmatpush.msra.mxu0 0.0
        %1946 = vmatpush.msra.mxu0 0.0
        %1947 = vmatpush.msra.mxu0 0.0
        %1948 = vmatpush.msra.mxu0 %v1928
        %1949 = vmatmul.f32.gmra.mxu0 %v1931
        %v1950 = vpop.f32.mrf.mxu0
        %v1951 = vadd.f32 0.0, %v1950
        %1952 = vdwg.mxu0
        %1954 = vrot.lane.b32.xlu0 %v1951, 16
        %v1955 = vpop.permute.xlu0 %1954
        %v1957 = vsel %vm920, %v1777, %v1955
        %v1958 = vpack.c.bf16 %v1957, %v1957
        %s1959 = scalar_lea.vmem %s7, 16
        %v1960 = vld [vmem:[%s1959] sm:$0xf]
        %v1961 = vld [vmem:[%s1959 + $0x4] sm:$0xf]
        %v1962 = vld [vmem:[%s1959 + $0x8] sm:$0xf]
        %v1963 = vld [vmem:[%s1959 + $0xc] sm:$0xf]
        %v1968 = vunpack.c.l.b16 %v1960
        %v1969 = vunpack.c.l.b16 %v1961
        %v1970 = vunpack.c.l.b16 %v1962
        %v1971 = vunpack.c.l.b16 %v1963
        %v1972 = vpack.c.b16 %v1969, %v1968
        %v1973 = vpack.c.b16 %v1971, %v1970
        %v1977 = vsel %vm841, %v1958, 0
        %1979 = vmatpush.bf16.msra.mxu0 0
        %1980 = vmatpush.bf16.msra.mxu0 0
        %1981 = vmatpush.bf16.msra.mxu0 0
        %1982 = vmatpush.bf16.msra.mxu0 0
        %1983 = vmatpush.bf16.msra.mxu0 0
        %1984 = vmatpush.bf16.msra.mxu0 0
        %1985 = vmatpush.bf16.msra.mxu0 %v1973
        %1986 = vmatpush.bf16.msra.mxu0 %v1972
        %1987 = vmatmul.bf16.gmra.mxu0 %v1977
        %v1988 = vpop.f32.mrf.mxu0
        %v1989 = vadd.f32 0.0, %v1988
        %v1990 = vpop.f32.mrf.mxu0
        %1991 = vdwg.mxu0
        %v1992 = vadd.f32 %v1491, %v1989
        %s1993 = scalar_lea.vmem %s10, 1
        %v1994 = vld [vmem:[%s1993] sm:$0x1]
        %s1995 = scalar_lea.vmem %s11, 1
        %v1996 = vld [vmem:[%s1995] sm:$0x1]
        %v1997 = vsel %vm841, %v1992, 0.0
        %1998 = vadd.xlane.f32.xlu0 %v1997
        %v1999 = vpop.xlane.xlu0 %1998
        %v2000 = vmul.f32 %v1999, %v1327
        %v2001 = vsub.f32 %v1992, %v2000
        %v2002 = vmul.f32 %v2001, %v2001
        %v2003 = vsel %vm841, %v2002, 0.0
        %2004 = vadd.xlane.f32.xlu0 %v2003
        %v2005 = vpop.xlane.xlu0 %2004
        %v2006 = vmul.f32 %v2005, %v1327
        %v2007 = vadd.f32 %v2006, 1e-05
        %v2008 = vrsqrt.pop %v2007
        %v2009 = vmul.f32 %v2008, %v2007
        %v2010 = vmul.f32 %v2009, %v2008
        %v2011 = vmul.f32 0.5, %v2010
        %v2012 = vsub.f32 1.5, %v2011
        %v2013 = vmul.f32 %v2008, %v2012
        %vm2014 = vweird.f32 %v2007
        %vm2015 = vweird.f32 %v2008
        %vm2016 = vmor %vm2014, %vm2015
        %v2017 = vsel %vm2016, %v2008, %v2013
        %v2018 = vmul.f32 %v2001, %v2017
        %v2020 = vperm.slane %v1994, 0
        %v2022 = vmul.f32 %v2018, %v2020
        %v2024 = vperm.slane %v1996, 0
        %v2026 = vadd.f32 %v2022, %v2024
        %v2027 = vpack.c.bf16 %v2026, %v2026
        %s2028 = scalar_lea.vmem %s12, 32
        %v2029 = vld [vmem:[%s2028] sm:$0xf]
        %v2030 = vld [vmem:[%s2028 + $0x4] sm:$0xf]
        %v2031 = vld [vmem:[%s2028 + $0x8] sm:$0xf]
        %v2032 = vld [vmem:[%s2028 + $0xc] sm:$0xf]
        %v2033 = vld [vmem:[%s2028 + $0x10] sm:$0xf]
        %v2034 = vld [vmem:[%s2028 + $0x14] sm:$0xf]
        %v2035 = vld [vmem:[%s2028 + $0x18] sm:$0xf]
        %v2036 = vld [vmem:[%s2028 + $0x1c] sm:$0xf]
        %s2037 = scalar_lea.vmem %s13, 1
        %v2038 = vld [vmem:[%s2037] sm:$0x1]
        %v2040 = vperm.slane %v2038, 0
        %v2050 = vunpack.c.l.b16 %v2029
        %v2051 = vunpack.c.l.b16 %v2030
        %v2052 = vunpack.c.l.b16 %v2031
        %v2053 = vunpack.c.l.b16 %v2032
        %v2054 = vunpack.c.l.b16 %v2033
        %v2055 = vunpack.c.l.b16 %v2034
        %v2056 = vunpack.c.l.b16 %v2035
        %v2057 = vunpack.c.l.b16 %v2036
        %v2058 = vpack.c.b16 %v2051, %v2050
        %v2059 = vpack.c.b16 %v2053, %v2052
        %v2060 = vpack.c.b16 %v2055, %v2054
        %v2061 = vpack.c.b16 %v2057, %v2056
        %v2063 = vsel %vm841, %v2027, 0
        %v2066 = vsel %vm841, %v2058, 0
        %v2069 = vsel %vm841, %v2059, 0
        %v2072 = vsel %vm841, %v2060, 0
        %v2075 = vsel %vm841, %v2061, 0
        %2077 = vmatpush.bf16.xpose.msra.mxu0 0
        %2078 = vmatpush.bf16.xpose.msra.mxu0 0
        %2079 = vmatpush.bf16.xpose.msra.mxu0 0
        %2080 = vmatpush.bf16.xpose.msra.mxu0 0
        %2081 = vmatpush.bf16.xpose.msra.mxu0 %v2075
        %2082 = vmatpush.bf16.xpose.msra.mxu0 %v2072
        %2083 = vmatpush.bf16.xpose.msra.mxu0 %v2069
        %2084 = vmatpush.bf16.xpose.msra.mxu0 %v2066
        %2085 = vmatmul.bf16.gmra.mxu0 %v2063
        %v2086 = vpop.f32.mrf.mxu0
        %v2087 = vadd.f32 %v2040, %v2086
        %v2088 = vpop.f32.mrf.mxu0
        %2089 = vdwg.mxu0
        %v2090 = vmax.f32 %v2087, 0.0
        %v2091 = vpack.c.bf16 %v2090, %v2090
        %s2092 = scalar_lea.vmem %s14, 16
        %v2093 = vld [vmem:[%s2092] sm:$0xf]
        %v2094 = vld [vmem:[%s2092 + $0x4] sm:$0xf]
        %v2095 = vld [vmem:[%s2092 + $0x8] sm:$0xf]
        %v2096 = vld [vmem:[%s2092 + $0xc] sm:$0xf]
        %s2097 = scalar_lea.vmem %s15, 1
        %v2098 = vld [vmem:[%s2097] sm:$0x1]
        %v2100 = vperm.slane %v2098, 0
        %v2106 = vunpack.c.l.b16 %v2093
        %v2107 = vunpack.c.l.b16 %v2094
        %v2108 = vunpack.c.l.b16 %v2095
        %v2109 = vunpack.c.l.b16 %v2096
        %v2110 = vpack.c.b16 %v2107, %v2106
        %v2111 = vpack.c.b16 %v2109, %v2108
        %v2113 = vsel %vm1436, %v2091, 0
        %v2116 = vsel %vm1436, %v2110, 0
        %v2119 = vsel %vm1436, %v2111, 0
        %2121 = vmatpush.bf16.xpose.msra.mxu0 0
        %2122 = vmatpush.bf16.xpose.msra.mxu0 0
        %2123 = vmatpush.bf16.xpose.msra.mxu0 0
        %2124 = vmatpush.bf16.xpose.msra.mxu0 0
        %2125 = vmatpush.bf16.xpose.msra.mxu0 0
        %2126 = vmatpush.bf16.xpose.msra.mxu0 0
        %2127 = vmatpush.bf16.xpose.msra.mxu0 %v2119
        %2128 = vmatpush.bf16.xpose.msra.mxu0 %v2116
        %2129 = vmatmul.bf16.gmra.mxu0 %v2113
        %v2130 = vpop.f32.mrf.mxu0
        %v2131 = vadd.f32 %v2100, %v2130
        %v2132 = vpop.f32.mrf.mxu0
        %2133 = vdwg.mxu0
        %v2134 = vadd.f32 %v2026, %v2131
        %s2135 = scalar_lea.vmem %s16, 1
        %v2136 = vld [vmem:[%s2135] sm:$0x1]
        %s2137 = scalar_lea.vmem %s17, 1
        %v2138 = vld [vmem:[%s2137] sm:$0x1]
        %v2139 = vsel %vm841, %v2134, 0.0
        %2140 = vadd.xlane.f32.xlu0 %v2139
        %v2141 = vpop.xlane.xlu0 %2140
        %v2142 = vmul.f32 %v2141, %v1327
        %v2143 = vsub.f32 %v2134, %v2142
        %v2144 = vmul.f32 %v2143, %v2143
        %v2145 = vsel %vm841, %v2144, 0.0
        %2146 = vadd.xlane.f32.xlu0 %v2145
        %v2147 = vpop.xlane.xlu0 %2146
        %v2148 = vmul.f32 %v2147, %v1327
        %v2149 = vadd.f32 %v2148, 1e-05
        %v2150 = vrsqrt.pop %v2149
        %v2151 = vmul.f32 %v2150, %v2149
        %v2152 = vmul.f32 %v2151, %v2150
        %v2153 = vmul.f32 0.5, %v2152
        %v2154 = vsub.f32 1.5, %v2153
        %v2155 = vmul.f32 %v2150, %v2154
        %vm2156 = vweird.f32 %v2149
        %vm2157 = vweird.f32 %v2150
        %vm2158 = vmor %vm2156, %vm2157
        %v2159 = vsel %vm2158, %v2150, %v2155
        %v2160 = vmul.f32 %v2143, %v2159
        %v2162 = vperm.slane %v2136, 0
        %v2164 = vmul.f32 %v2160, %v2162
        %v2166 = vperm.slane %v2138, 0
        %v2168 = vadd.f32 %v2164, %v2166
        %s2169 = scalar_lea.vmem %s771, 8 [#allocation2]
        %2170 = vst.msk [vmem:[%s2169] sm:$0xff] %vm841, %v2168
        %v2171 = vld [vmem:[%s18] sm:$0x1]
        %v2172 = vld [vmem:[%s19] sm:$0x1]
        %v2173 = vsel %vm841, %v2168, 0.0
        %2174 = vadd.xlane.f32.xlu0 %v2173
        %v2175 = vpop.xlane.xlu0 %2174
        %v2176 = vmul.f32 %v2175, %v1327
        %v2177 = vsub.f32 %v2168, %v2176
        %v2178 = vmul.f32 %v2177, %v2177
        %v2179 = vsel %vm841, %v2178, 0.0
        %2180 = vadd.xlane.f32.xlu0 %v2179
        %v2181 = vpop.xlane.xlu0 %2180
        %v2182 = vmul.f32 %v2181, %v1327
        %v2183 = vadd.f32 %v2182, 1e-05
        %v2184 = vrsqrt.pop %v2183
        %v2185 = vmul.f32 %v2184, %v2183
        %v2186 = vmul.f32 %v2185, %v2184
        %v2187 = vmul.f32 0.5, %v2186
        %v2188 = vsub.f32 1.5, %v2187
        %v2189 = vmul.f32 %v2184, %v2188
        %vm2190 = vweird.f32 %v2183
        %vm2191 = vweird.f32 %v2184
        %vm2192 = vmor %vm2190, %vm2191
        %v2193 = vsel %vm2192, %v2184, %v2189
        %v2194 = vmul.f32 %v2177, %v2193
        %v2196 = vperm.slane %v2171, 0
        %v2198 = vmul.f32 %v2194, %v2196
        %v2200 = vperm.slane %v2172, 0
        %v2202 = vadd.f32 %v2198, %v2200
        %v2203 = vpack.c.bf16 %v2202, %v2202
        %v2204 = vld [vmem:[%s20] sm:$0xf]
        %v2205 = vld [vmem:[%s20 + $0x4] sm:$0xf]
        %v2206 = vld [vmem:[%s20 + $0x8] sm:$0xf]
        %v2207 = vld [vmem:[%s20 + $0xc] sm:$0xf]
        %v2208 = vld [vmem:[%s21] sm:$0x1]
        %v2210 = vperm.slane %v2208, 0
        %v2216 = vunpack.c.l.b16 %v2204
        %v2217 = vunpack.c.l.b16 %v2205
        %v2218 = vunpack.c.l.b16 %v2206
        %v2219 = vunpack.c.l.b16 %v2207
        %v2220 = vpack.c.b16 %v2217, %v2216
        %v2221 = vpack.c.b16 %v2219, %v2218
        %v2223 = vsel %vm841, %v2203, 0
        %v2226 = vsel %vm841, %v2220, 0
        %v2229 = vsel %vm841, %v2221, 0
        %2231 = vmatpush.bf16.xpose.msra.mxu0 0
        %2232 = vmatpush.bf16.xpose.msra.mxu0 0
        %2233 = vmatpush.bf16.xpose.msra.mxu0 0
        %2234 = vmatpush.bf16.xpose.msra.mxu0 0
        %2235 = vmatpush.bf16.xpose.msra.mxu0 0
        %2236 = vmatpush.bf16.xpose.msra.mxu0 0
        %2237 = vmatpush.bf16.xpose.msra.mxu0 %v2229
        %2238 = vmatpush.bf16.xpose.msra.mxu0 %v2226
        %2239 = vmatmul.bf16.gmra.mxu0 %v2223
        %v2240 = vpop.f32.mrf.mxu0
        %v2241 = vadd.f32 %v2210, %v2240
        %v2242 = vpop.f32.mrf.mxu0
        %2243 = vdwg.mxu0
        %v2244 = vpack.c.bf16 %v2241, %v2241
        %v2245 = vld [vmem:[%s22] sm:$0xf]
        %v2246 = vld [vmem:[%s22 + $0x4] sm:$0xf]
        %v2247 = vld [vmem:[%s22 + $0x8] sm:$0xf]
        %v2248 = vld [vmem:[%s22 + $0xc] sm:$0xf]
        %v2249 = vld [vmem:[%s22 + $0x10] sm:$0xf]
        %v2250 = vld [vmem:[%s22 + $0x14] sm:$0xf]
        %v2251 = vld [vmem:[%s22 + $0x18] sm:$0xf]
        %v2252 = vld [vmem:[%s22 + $0x1c] sm:$0xf]
        %v2253 = vld [vmem:[%s22 + $0x20] sm:$0xf]
        %v2254 = vld [vmem:[%s22 + $0x24] sm:$0xf]
        %v2255 = vld [vmem:[%s22 + $0x28] sm:$0xf]
        %v2256 = vld [vmem:[%s22 + $0x2c] sm:$0xf]
        %v2257 = vld [vmem:[%s22 + $0x30] sm:$0xf]
        %v2258 = vld [vmem:[%s22 + $0x34] sm:$0xf]
        %v2259 = vld [vmem:[%s22 + $0x38] sm:$0xf]
        %v2260 = vld [vmem:[%s22 + $0x3c] sm:$0xf]
        %v2261 = vld [vmem:[%s22 + $0x40] sm:$0xf]
        %v2262 = vld [vmem:[%s22 + $0x44] sm:$0xf]
        %v2263 = vld [vmem:[%s22 + $0x48] sm:$0xf]
        %v2264 = vld [vmem:[%s22 + $0x4c] sm:$0xf]
        %v2265 = vld [vmem:[%s22 + $0x50] sm:$0xf]
        %v2266 = vld [vmem:[%s22 + $0x54] sm:$0xf]
        %v2267 = vld [vmem:[%s22 + $0x58] sm:$0xf]
        %v2268 = vld [vmem:[%s22 + $0x5c] sm:$0xf]
        %v2269 = vld [vmem:[%s22 + $0x60] sm:$0xf]
        %v2270 = vld [vmem:[%s22 + $0x64] sm:$0xf]
        %v2271 = vld [vmem:[%s22 + $0x68] sm:$0xf]
        %v2272 = vld [vmem:[%s22 + $0x6c] sm:$0xf]
        %v2273 = vld [vmem:[%s22 + $0x70] sm:$0xf]
        %v2274 = vld [vmem:[%s22 + $0x74] sm:$0xf]
        %v2275 = vld [vmem:[%s22 + $0x78] sm:$0xf]
        %v2276 = vld [vmem:[%s22 + $0x7c] sm:$0xf]
        %v2277 = vld [vmem:[%s23] sm:$0x3]
        %v2279 = vperm.slane %v2277, 0
        %v2280 = vperm.slane %v2277, 1
        %v2315 = vunpack.c.l.b16 %v2245
        %v2316 = vunpack.c.l.b16 %v2246
        %v2317 = vunpack.c.l.b16 %v2247
        %v2318 = vunpack.c.l.b16 %v2248
        %v2319 = vunpack.c.l.b16 %v2249
        %v2320 = vunpack.c.l.b16 %v2250
        %v2321 = vunpack.c.l.b16 %v2251
        %v2322 = vunpack.c.l.b16 %v2252
        %v2323 = vunpack.c.l.b16 %v2253
        %v2324 = vunpack.c.l.b16 %v2254
        %v2325 = vunpack.c.l.b16 %v2255
        %v2326 = vunpack.c.l.b16 %v2256
        %v2327 = vunpack.c.l.b16 %v2257
        %v2328 = vunpack.c.l.b16 %v2258
        %v2329 = vunpack.c.l.b16 %v2259
        %v2330 = vunpack.c.l.b16 %v2260
        %v2331 = vunpack.c.l.b16 %v2261
        %v2332 = vunpack.c.l.b16 %v2262
        %v2333 = vunpack.c.l.b16 %v2263
        %v2334 = vunpack.c.l.b16 %v2264
        %v2335 = vunpack.c.l.b16 %v2265
        %v2336 = vunpack.c.l.b16 %v2266
        %v2337 = vunpack.c.l.b16 %v2267
        %v2338 = vunpack.c.l.b16 %v2268
        %v2339 = vunpack.c.l.b16 %v2269
        %v2340 = vunpack.c.l.b16 %v2270
        %v2341 = vunpack.c.l.b16 %v2271
        %v2342 = vunpack.c.l.b16 %v2272
        %v2343 = vunpack.c.l.b16 %v2273
        %v2344 = vunpack.c.l.b16 %v2274
        %v2345 = vunpack.c.l.b16 %v2275
        %v2346 = vunpack.c.l.b16 %v2276
        %v2347 = vpack.c.b16 %v2316, %v2315
        %v2348 = vpack.c.b16 %v2318, %v2317
        %v2349 = vpack.c.b16 %v2320, %v2319
        %v2350 = vpack.c.b16 %v2322, %v2321
        %v2351 = vpack.c.b16 %v2324, %v2323
        %v2352 = vpack.c.b16 %v2326, %v2325
        %v2353 = vpack.c.b16 %v2328, %v2327
        %v2354 = vpack.c.b16 %v2330, %v2329
        %v2355 = vpack.c.b16 %v2332, %v2331
        %v2356 = vpack.c.b16 %v2334, %v2333
        %v2357 = vpack.c.b16 %v2336, %v2335
        %v2358 = vpack.c.b16 %v2338, %v2337
        %v2359 = vpack.c.b16 %v2340, %v2339
        %v2360 = vpack.c.b16 %v2342, %v2341
        %v2361 = vpack.c.b16 %v2344, %v2343
        %v2362 = vpack.c.b16 %v2346, %v2345
        %v2364 = vsel %vm841, %v2244, 0
        %v2367 = vsel %vm841, %v2347, 0
        %v2370 = vsel %vm841, %v2348, 0
        %v2373 = vsel %vm841, %v2349, 0
        %v2376 = vsel %vm841, %v2350, 0
        %v2379 = vsel %vm841, %v2351, 0
        %v2382 = vsel %vm841, %v2352, 0
        %v2385 = vsel %vm841, %v2353, 0
        %v2388 = vsel %vm841, %v2354, 0
        %v2391 = vsel %vm841, %v2355, 0
        %v2394 = vsel %vm841, %v2356, 0
        %v2397 = vsel %vm841, %v2357, 0
        %v2400 = vsel %vm841, %v2358, 0
        %v2403 = vsel %vm841, %v2359, 0
        %v2406 = vsel %vm841, %v2360, 0
        %v2409 = vsel %vm841, %v2361, 0
        %v2412 = vsel %vm841, %v2362, 0
        %2414 = vmatpush.bf16.xpose.msra.mxu0 %v2388
        %2415 = vmatpush.bf16.xpose.msra.mxu0 %v2385
        %2416 = vmatpush.bf16.xpose.msra.mxu0 %v2382
        %2417 = vmatpush.bf16.xpose.msra.mxu0 %v2379
        %2418 = vmatpush.bf16.xpose.msra.mxu0 %v2376
        %2419 = vmatpush.bf16.xpose.msra.mxu0 %v2373
        %2420 = vmatpush.bf16.xpose.msra.mxu0 %v2370
        %2421 = vmatpush.bf16.xpose.msra.mxu0 %v2367
        %2422 = vmatmul.bf16.gmra.mxu0 %v2364
        %v2423 = vpop.f32.mrf.mxu0
        %v2424 = vadd.f32 %v2279, %v2423
        %v2425 = vpop.f32.mrf.mxu0
        %2426 = vdwg.mxu0
        %2427 = vmatpush.bf16.xpose.msra.mxu0 %v2412
        %2428 = vmatpush.bf16.xpose.msra.mxu0 %v2409
        %2429 = vmatpush.bf16.xpose.msra.mxu0 %v2406
        %2430 = vmatpush.bf16.xpose.msra.mxu0 %v2403
        %2431 = vmatpush.bf16.xpose.msra.mxu0 %v2400
        %2432 = vmatpush.bf16.xpose.msra.mxu0 %v2397
        %2433 = vmatpush.bf16.xpose.msra.mxu0 %v2394
        %2434 = vmatpush.bf16.xpose.msra.mxu0 %v2391
        %2435 = vmatmul.bf16.gmra.mxu0 %v2364
        %v2436 = vpop.f32.mrf.mxu0
        %v2437 = vadd.f32 %v2280, %v2436
        %v2438 = vpop.f32.mrf.mxu0
        %2439 = vdwg.mxu0
        %v2440 = vmax.f32 %v2424, %v2437
        %2441 = vmax.xlane.f32.xlu0 %v2440
        %v2442 = vpop.xlane.xlu0 %2441
        %v2443 = vsub.f32 %v2424, %v2442
        %v2444 = vsub.f32 %v2437, %v2442
        %v2445 = vmul.f32 %v2443, 1.442695
        %v2446 = vpow.pop %v2445
        %v2447 = vmul.f32 %v2444, 1.442695
        %v2448 = vpow.pop %v2447
        %v2449 = vadd.f32 %v2446, %v2448
        %2450 = vadd.xlane.f32.xlu0 %v2449
        %v2451 = vpop.xlane.xlu0 %2450
        %v2452 = vlog2.pop %v2451
        %v2453 = vmul.f32 %v2452, 0.6931472
        %v2454 = vadd.f32 %v2442, %v2453
        %v2455 = vadd.s32 %v1016, 128
        %v2456 = vld [vmem:[%s779] sm:$0xff]
        %2457 = vset.pattern.permute.xlu0 0
        %2458 = vperm.xlu0 %2457, %v2456
        %v2459 = vpop.permute.xlu0 %2458
        %vm2460 = vcmp.eq.s32.totalorder %v1016, %v2459
        %vm2461 = vcmp.eq.s32.totalorder %v2455, %v2459
        %v2462 = vsel %vm2460, %v2424, 0.0
        %v2463 = vsel %vm2461, %v2437, 0.0
        %v2464 = vadd.f32 %v2462, %v2463
        %2465 = vadd.xlane.f32.xlu0 %v2464
        %v2466 = vpop.xlane.xlu0 %2465
        %v2467 = vsub.f32 %v2454, %v2466
        %vm2468 = vcmask 7168
        %2469 = vst.msk [vmem:[%s783] sm:$0xff] %vm2468, %v2467
        %p2470 = scmp.lt.s32.totalorder %s37, 1
        %s2471 = scalar_select %p2470, %s37, 1
        %s2472 = smul.addr %s2471, 8
        %s2473 = scalar_lea.vmem %s24, %s2472
        %s2474 = sand.u32 %s585, 1
        %s2475 = sand.u32 %s585, 1
        %s2476 = smul.addr %s2475, 16
        %s2477 = scalar_lea.vmem [#allocation2], %s2476
        // Predicated region
        $region117: #{mem_transformer_forward.1} parent=115 // pred_check
          %p2478 = pneg %p569
        $region118: #{mem_transformer_forward.1} parent=115 // pred_check_branch
          %2480 = sbr.rel (%p2478) target = $region120
        $region119: #{mem_transformer_forward.1} parent=115 // pred_region
          _
        $region120: #{mem_transformer_forward.1} parent=115 // pred_fallthru
          _
        // Predicated region
        $region121: #{mem_transformer_forward.1} parent=115 // pred_check
          %p2481 = pneg %p595
        $region122: #{mem_transformer_forward.1} parent=115 // pred_check_branch
          %2483 = sbr.rel (%p2481) target = $region124
        $region123: #{mem_transformer_forward.1} parent=115 // pred_region
          %s2484 = smul.addr %s37, 8
          %s2485 = scalar_lea.vmem %s25, %s2484
          // Predicated region
          $region125: #{mem_transformer_forward.1} parent=123 // pred_check
            _
          $region126: #{mem_transformer_forward.1} parent=123 // pred_check_branch
            %2487 = sbr.rel (0) target = $region128
          $region127: #{mem_transformer_forward.1} parent=123 // pred_region
            // Predicated region
            $region129: #{mem_transformer_forward.1} parent=127 // pred_check
              _
            $region130: #{mem_transformer_forward.1} parent=127 // pred_check_branch
              %2489 = sbr.rel (0) target = $region132
            $region131: #{mem_transformer_forward.1} parent=127 // pred_region
              // Predicated region
              $region144: #{mem_transformer_forward.1} parent=131 // pred_check
                _
              $region145: #{mem_transformer_forward.1} parent=131 // pred_check_branch
                %2507 = sbr.rel (0) target = $region147
              $region146: #{mem_transformer_forward.1} parent=131 // pred_region
                loop: start=0, step=1, limit=1
                $region148: #{mem_transformer_forward.1} parent=146 // loop_pre_header
                  _
                $region149: #{mem_transformer_forward.1} parent=146 // loop_header
                  %s2509 = sphi 0, %s2513
                  %p2510 = scmp.ge.s32.totalorder %s2509, 1
                  %s2514 = sphi %s2477, %s2477
                  %s2515 = sphi %s2485, %s2485
                $region150: #{mem_transformer_forward.1} parent=146 // loop_header_branch
                  %2512 = sbr.rel (%p2510) target = $region154
                $region151: #{mem_transformer_forward.1} parent=146 // loop_body
                  %v2516 = vld [vmem:[%s2514] sm:$0xff]
                  %2517 = vst [vmem:[%s2515] sm:$0xff] %v2516
                  %v2518 = vld [vmem:[%s2514 + $0x8] sm:$0xff]
                  %2519 = vst [vmem:[%s2515 + $0x10] sm:$0xff] %v2518
                $region152: #{mem_transformer_forward.1} parent=146 // loop_footer
                  %s2513 = sadd.s32 1, %s2509
                $region153: #{mem_transformer_forward.1} parent=146 // loop_footer_branch
                  %2508 = sbr.rel target = $region149
                $region154: #{mem_transformer_forward.1} parent=146 // loop_exit
                  _
              $region147: #{mem_transformer_forward.1} parent=131 // pred_fallthru
                _
              // Predicated region
              $region155: #{mem_transformer_forward.1} parent=131 // pred_check
                _
              $region156: #{mem_transformer_forward.1} parent=131 // pred_check_branch
                %2521 = sbr.rel target = $region158
              $region157: #{mem_transformer_forward.1} parent=131 // pred_region
                _
              $region158: #{mem_transformer_forward.1} parent=131 // pred_fallthru
                _
            $region132: #{mem_transformer_forward.1} parent=127 // pred_fallthru
              _
            // Predicated region
            $region133: #{mem_transformer_forward.1} parent=127 // pred_check
              _
            $region134: #{mem_transformer_forward.1} parent=127 // pred_check_branch
              %2491 = sbr.rel target = $region136
            $region135: #{mem_transformer_forward.1} parent=127 // pred_region
              %s2493 = ssub.s32 256, 1
              loop: start=0, step=1, limit=1
              $region137: #{mem_transformer_forward.1} parent=135 // loop_pre_header
                _
              $region138: #{mem_transformer_forward.1} parent=135 // loop_header
                %s2495 = sphi 0, %s2499
                %p2496 = scmp.ge.s32.totalorder %s2495, 1
                %s2500 = sphi %s2477, %s2477
                %s2501 = sphi %s2485, %s2485
              $region139: #{mem_transformer_forward.1} parent=135 // loop_header_branch
                %2498 = sbr.rel (%p2496) target = $region143
              $region140: #{mem_transformer_forward.1} parent=135 // loop_body
                %v2502 = vld [vmem:[%s2500] sm:%s2493]
                %2503 = vst [vmem:[%s2501] sm:%s2493] %v2502
                %v2504 = vld [vmem:[%s2500 + $0x8] sm:%s2493]
                %2505 = vst [vmem:[%s2501 + $0x10] sm:%s2493] %v2504
              $region141: #{mem_transformer_forward.1} parent=135 // loop_footer
                %s2499 = sadd.s32 1, %s2495
              $region142: #{mem_transformer_forward.1} parent=135 // loop_footer_branch
                %2494 = sbr.rel target = $region138
              $region143: #{mem_transformer_forward.1} parent=135 // loop_exit
                _
            $region136: #{mem_transformer_forward.1} parent=127 // pred_fallthru
              _
          $region128: #{mem_transformer_forward.1} parent=123 // pred_fallthru
            _
          %2522 = vnop
        $region124: #{mem_transformer_forward.1} parent=115 // pred_fallthru
          _
      $region116: #{mem_transformer_forward.1} parent=5 // pred_fallthru
        _
      %p2523 = scmp.le.s32.totalorder 2, %s32
      // Predicated region
      $region159: #{mem_transformer_forward.1} parent=5 // pred_check
        %p2524 = pneg %p2523
      $region160: #{mem_transformer_forward.1} parent=5 // pred_check_branch
        %2526 = sbr.rel (%p2524) target = $region162
      $region161: #{mem_transformer_forward.1} parent=5 // pred_region
        %s2527 = ssub.s32 %s32, 2
        // Predicated region
        $region163: #{mem_transformer_forward.1} parent=161 // pred_check
          %p2528 = pneg %p575
        $region164: #{mem_transformer_forward.1} parent=161 // pred_check_branch
          %2530 = sbr.rel (%p2528) target = $region166
        $region165: #{mem_transformer_forward.1} parent=161 // pred_region
          %p2531 = scmp.lt.s32.totalorder %s38, 1
          %s2532 = scalar_select %p2531, %s38, 1
          %s2533 = smul.addr %s2532, 8
          %s2534 = scalar_lea.vmem %s24, %s2533
        $region166: #{mem_transformer_forward.1} parent=161 // pred_fallthru
          _
        // Predicated region
        $region167: #{mem_transformer_forward.1} parent=161 // pred_check
          %p2535 = pneg %p601
        $region168: #{mem_transformer_forward.1} parent=161 // pred_check_branch
          %2537 = sbr.rel (%p2535) target = $region170
        $region169: #{mem_transformer_forward.1} parent=161 // pred_region
          %s2538 = sand.u32 %s586, 1
          %s2539 = sand.u32 %s586, 1
          %s2540 = smul.addr %s2539, 16
          %s2541 = scalar_lea.vmem [#allocation2], %s2540
        $region170: #{mem_transformer_forward.1} parent=161 // pred_fallthru
          _
      $region162: #{mem_transformer_forward.1} parent=5 // pred_fallthru
        _
    $region6: #{mem_transformer_forward.1} parent=1 // loop_footer
      %s36 = sadd.s32 1, %s32
    $region7: #{mem_transformer_forward.1} parent=1 // loop_footer_branch
      %31 = sbr.rel target = $region3
    $region8: #{mem_transformer_forward.1} parent=1 // loop_exit
      _

</llo_original>
